<compile_context>
chip_gen: v7x
topology: tpu7x:2x2x1
jax: 0.10.0
libtpu: 0.0.40
codegen_flags: <defaults>
</compile_context>

<pallas_src>
import numpy as np
import jax
import jax.numpy as jnp
from jax.experimental import pallas as pl
from jax.experimental.pallas import tpu as pltpu


# --------------------------------- fused CBAM kernel ---------------------------------
def make_cbam_kernel(C, HW, hidden):
    def kernel(x_ref, w1t_ref, b1_ref, w2_ref, b2_ref, wb_ref, out_ref):
        x = x_ref[0]                                        # (C, HW), lane-dense

        # ---- channel attention: global pools + tiny shared MLP (VPU/XLU, no MXU) ----
        p_max = jnp.max(x, axis=1, keepdims=True)           # (C, 1)  adaptive_max_pool2d
        p_avg = jnp.mean(x, axis=1, keepdims=True)          # (C, 1)  adaptive_avg_pool2d
        pooled = jnp.concatenate([p_max, p_avg], axis=1)    # (C, 2)  [max | avg] branches

        o = jnp.broadcast_to(b2_ref[...], (C, 2))           # layer-2 bias, both branches
        for j in range(hidden):                             # hidden = C // 16 (tiny) -> static unroll
            hj = jnp.sum(w1t_ref[:, j:j + 1] * pooled, axis=0, keepdims=True) + b1_ref[j]
            hj = jnp.maximum(hj, 0.0)                       # (1, 2)  ReLU
            o = o + w2_ref[:, j:j + 1] * hj                 # (C, 2)
        scale = jax.nn.sigmoid(o[:, 0:1] + o[:, 1:2])       # (C, 1)  sigmoid(mlp(max)+mlp(avg))
        xca = x * scale                                     # (C, HW) CA output

        # ---- spatial attention: channel mean/max maps -> ONE MXU matmul ----
        m_avg = jnp.mean(xca, axis=0, keepdims=True)        # (1, HW) conv in-channel 0 (avg)
        m_max = jnp.max(xca, axis=0, keepdims=True)         # (1, HW) conv in-channel 1 (max)
        maps = jnp.concatenate([m_avg, m_max], axis=1)      # (1, 2*HW), 128-aligned lane concat
        lhs = jnp.broadcast_to(maps, (8, 2 * HW))           # fill a full sublane group for the MXU
        conv = jnp.dot(lhs, wb_ref[...],                    # (8, HW): padded KxK conv, flattened
                       precision=jax.lax.Precision.HIGHEST,
                       preferred_element_type=jnp.float32)
        sp = jax.nn.sigmoid(conv[0:1, :])                   # (1, HW) spatial attention map

        # ---- residual: out = x + SA(CA(x)) ----
        out_ref[0] = x + sp * xca

    return kernel


# ---------------- host-side precompute: conv as a block-Toeplitz matmul ----------------
def build_spatial_conv_matrix(wconv, H, W):
    """Wb (2*H*W, H*W) such that, for maps_flat = [avg.ravel() | max.ravel()],
       (maps_flat @ Wb).reshape(H, W) == conv2d(stack([avg, max]), wconv, padding=K//2).
    The zero padding and the (H, W) <-> (HW,) flattening are folded into the matrix."""
    w = np.asarray(wconv, dtype=np.float32)[0]               # (2, K, K); ch0 = avg, ch1 = max
    K = w.shape[-1]
    p = K // 2
    ky = np.arange(H)[:, None] - np.arange(H)[None, :] + p   # [y_src, y_out] -> kernel row
    kx = np.arange(W)[:, None] - np.arange(W)[None, :] + p   # [x_src, x_out] -> kernel col
    valid = (((ky >= 0) & (ky < K))[:, None, :, None]
             & ((kx >= 0) & (kx < K))[None, :, None, :])     # (H, W, H, W)
    kyc = np.clip(ky, 0, K - 1)
    kxc = np.clip(kx, 0, K - 1)
    wb = w[:, kyc[:, None, :, None], kxc[None, :, None, :]]  # (2, H, W, H, W)
    wb = wb * valid.astype(np.float32)
    return jnp.asarray(wb.reshape(2 * H * W, H * W))


# ------------------------------------ wrapper (glue) ------------------------------------
@jax.jit
def cbam_pallas(x, w1, b1, w2, b2, wb):
    N, C, H, W = x.shape
    HW = H * W
    hidden = w1.shape[0]

    x_flat = x.reshape(N, C, HW)
    w1t = w1.T                        # (C, hidden)
    b2c = b2.reshape(C, 1)

    out_flat = pl.pallas_call(
        make_cbam_kernel(C, HW, hidden),
        out_shape=jax.ShapeDtypeStruct((N, C, HW), jnp.float32),
        grid=(N,),
        in_specs=[
            pl.BlockSpec((1, C, HW), lambda n: (n, 0, 0)),       # x (flattened, lane-dense)
            pl.BlockSpec((C, hidden), lambda n: (0, 0)),         # W1^T
            pl.BlockSpec(memory_space=pltpu.MemorySpace.SMEM),   # b1 scalars
            pl.BlockSpec((C, hidden), lambda n: (0, 0)),         # W2
            pl.BlockSpec((C, 1), lambda n: (0, 0)),              # b2
            pl.BlockSpec((2 * HW, HW), lambda n: (0, 0)),        # Toeplitz conv matrix (resident)
        ],
        out_specs=pl.BlockSpec((1, C, HW), lambda n: (n, 0, 0)),
        compiler_params=pltpu.CompilerParams(dimension_semantics=("parallel",)),
    )(x_flat, w1t, b1, w2, b2c, wb)

    return out_flat.reshape(N, C, H, W)


# --------------------------------- pure-JAX reference ---------------------------------
def cbam_ref(x, w1, b1, w2, b2, wconv):
    hi = jax.lax.Precision.HIGHEST
    p_max = jnp.max(x, axis=(2, 3))                          # (N, C)
    p_avg = jnp.mean(x, axis=(2, 3))

    def mlp(pv):
        h = jnp.maximum(jnp.dot(pv, w1.T, precision=hi) + b1, 0.0)
        return jnp.dot(h, w2.T, precision=hi) + b2

    scale = jax.nn.sigmoid(mlp(p_max) + mlp(p_avg))          # (N, C)
    x_ca = x * scale[:, :, None, None]

    m_avg = jnp.mean(x_ca, axis=1, keepdims=True)
    m_max = jnp.max(x_ca, axis=1, keepdims=True)
    maps = jnp.concatenate([m_avg, m_max], axis=1)           # (N, 2, H, W)
    K = wconv.shape[-1]
    p = K // 2
    conv = jax.lax.conv_general_dilated(
        maps, wconv, window_strides=(1, 1), padding=[(p, p), (p, p)],
        dimension_numbers=("NCHW", "OIHW", "NCHW"), precision=hi)
    sp = jax.nn.sigmoid(conv)                                # (N, 1, H, W)
    return x + sp * x_ca


if __name__ == "__main__":
    N, C, H, W = 2, 17, 16, 16      # in_features = 17 (see NOTE above)
    r = 16
    hidden = C // r                 # 1
    K = C                           # Spatial_Attention(kernel_size=in_features)

    key = jax.random.PRNGKey(0)
    kx, k1, k2, k3, k4, k5 = jax.random.split(key, 6)
    x = jax.random.normal(kx, (N, C, H, W), dtype=jnp.float32)
    w1 = 0.2 * jax.random.normal(k1, (hidden, C), dtype=jnp.float32)       # Linear(C, C//r).weight
    b1 = 0.1 * jax.random.normal(k2, (hidden,), dtype=jnp.float32)         # Linear(C, C//r).bias
    w2 = 0.2 * jax.random.normal(k3, (C, hidden), dtype=jnp.float32)       # Linear(C//r, C).weight
    b2 = 0.1 * jax.random.normal(k4, (C,), dtype=jnp.float32)              # Linear(C//r, C).bias
    wconv = 0.05 * jax.random.normal(k5, (1, 2, K, K), dtype=jnp.float32)  # Conv2d(2,1,K) no bias

    wb = build_spatial_conv_matrix(wconv, H, W)              # host-side precompute (2*HW, HW)

    out = cbam_pallas(x, w1, b1, w2, b2, wb)
    out = jax.block_until_ready(out)

    ref = cbam_ref(x, w1, b1, w2, b2, wconv)
    err = float(jnp.max(jnp.abs(out - ref)))
    assert err < 1e-4, f"mismatch vs reference: max abs err = {err}"

    print("KERNEL_OK")
</pallas_src>

<mosaic_0001>
module attributes {stable_mosaic.version = 11 : i64} {
  func.func @kernel(%arg0: i32, %arg1: memref<1x17x256xf32, #tpu.memory_space<vmem>>, %arg2: memref<17x1xf32, #tpu.memory_space<vmem>>, %arg3: memref<1xf32, #tpu.memory_space<smem>>, %arg4: memref<17x1xf32, #tpu.memory_space<vmem>>, %arg5: memref<17x1xf32, #tpu.memory_space<vmem>>, %arg6: memref<512x256xf32, #tpu.memory_space<vmem>>, %arg7: memref<1x17x256xf32, #tpu.memory_space<vmem>>) attributes {dimension_semantics = [#tpu.dimension_semantics<parallel>], iteration_bounds = array<i64: 2>, scalar_prefetch = 0 : i64, scratch_operands = 0 : i64, tpu.core_type = #tpu.core_type<tc>, window_params = [{transform_indices = @transform_0, window_bounds = array<i64: 1, 17, 256>}, {pipeline_mode = #tpu.pipeline_mode<synchronous>, transform_indices = @transform_1, window_bounds = array<i64: 17, 1>}, {transform_indices = @transform_2, window_bounds = array<i64: 1>}, {pipeline_mode = #tpu.pipeline_mode<synchronous>, transform_indices = @transform_3, window_bounds = array<i64: 17, 1>}, {pipeline_mode = #tpu.pipeline_mode<synchronous>, transform_indices = @transform_4, window_bounds = array<i64: 17, 1>}, {pipeline_mode = #tpu.pipeline_mode<synchronous>, transform_indices = @transform_5, window_bounds = array<i64: 512, 256>}, {transform_indices = @transform_6, window_bounds = array<i64: 1, 17, 256>}]} {
    %c0 = arith.constant 0 : index
    %c0_0 = arith.constant 0 : index
    %c0_1 = arith.constant 0 : index
    %0 = vector.load %arg1[%c0, %c0_0, %c0_1] : memref<1x17x256xf32, #tpu.memory_space<vmem>>, vector<1x17x256xf32>
    %1 = vector.shape_cast %0 : vector<1x17x256xf32> to vector<17x256xf32>
    %cst = arith.constant dense<0xFF800000> : vector<17xf32>
    %2 = vector.multi_reduction <maximumf>, %1, %cst [1] : vector<17x256xf32> to vector<17xf32>
    %3 = vector.shape_cast %2 : vector<17xf32> to vector<17x1xf32>
    %cst_2 = arith.constant dense<0.000000e+00> : vector<17xf32>
    %4 = vector.multi_reduction <add>, %1, %cst_2 [1] : vector<17x256xf32> to vector<17xf32>
    %5 = vector.shape_cast %4 : vector<17xf32> to vector<17x1xf32>
    %cst_3 = arith.constant 2.560000e+02 : f32
    %6 = vector.broadcast %cst_3 : f32 to vector<17x1xf32>
    %7 = arith.divf %5, %6 : vector<17x1xf32>
    %8 = tpu.concatenate %3, %7 in 1 : vector<17x1xf32>, vector<17x1xf32> -> vector<17x2xf32>
    %c0_4 = arith.constant 0 : index
    %c0_5 = arith.constant 0 : index
    %9 = vector.load %arg5[%c0_4, %c0_5] : memref<17x1xf32, #tpu.memory_space<vmem>>, vector<17x1xf32>
    %10 = vector.shape_cast %9 : vector<17x1xf32> to vector<17x1xf32>
    %11 = vector.broadcast %10 : vector<17x1xf32> to vector<17x2xf32>
    %c0_6 = arith.constant 0 : index
    %c0_7 = arith.constant 0 : index
    %12 = vector.load %arg2[%c0_6, %c0_7] : memref<17x1xf32, #tpu.memory_space<vmem>>, vector<17x1xf32>
    %13 = vector.broadcast %12 : vector<17x1xf32> to vector<17x2xf32>
    %14 = arith.mulf %13, %8 : vector<17x2xf32>
    %cst_8 = arith.constant dense<0.000000e+00> : vector<2xf32>
    %15 = vector.multi_reduction <add>, %14, %cst_8 [0] : vector<17x2xf32> to vector<2xf32>
    %16 = vector.shape_cast %15 : vector<2xf32> to vector<1x2xf32>
    %c0_9 = arith.constant 0 : index
    %17 = memref.load %arg3[%c0_9] : memref<1xf32, #tpu.memory_space<smem>>
    %18 = vector.broadcast %17 : f32 to vector<1x2xf32>
    %19 = arith.addf %16, %18 : vector<1x2xf32>
    %cst_10 = arith.constant 0.000000e+00 : f32
    %20 = vector.broadcast %cst_10 : f32 to vector<1x2xf32>
    %21 = arith.maximumf %19, %20 : vector<1x2xf32>
    %c0_11 = arith.constant 0 : index
    %c0_12 = arith.constant 0 : index
    %22 = vector.load %arg4[%c0_11, %c0_12] : memref<17x1xf32, #tpu.memory_space<vmem>>, vector<17x1xf32>
    %23 = vector.broadcast %22 : vector<17x1xf32> to vector<17x2xf32>
    %24 = vector.broadcast %21 : vector<1x2xf32> to vector<17x2xf32>
    %25 = arith.mulf %23, %24 : vector<17x2xf32>
    %26 = arith.addf %11, %25 : vector<17x2xf32>
    %27 = vector.extract_strided_slice %26 {offsets = [0, 0], sizes = [17, 1], strides = [1, 1]} : vector<17x2xf32> to vector<17x1xf32>
    %28 = vector.extract_strided_slice %26 {offsets = [0, 1], sizes = [17, 1], strides = [1, 1]} : vector<17x2xf32> to vector<17x1xf32>
    %29 = arith.addf %27, %28 : vector<17x1xf32>
    %30 = arith.negf %29 : vector<17x1xf32>
    %31 = math.exp %30 : vector<17x1xf32>
    %cst_13 = arith.constant 1.000000e+00 : f32
    %32 = vector.broadcast %cst_13 : f32 to vector<17x1xf32>
    %33 = arith.addf %32, %31 : vector<17x1xf32>
    %34 = arith.divf %32, %33 : vector<17x1xf32>
    %35 = vector.broadcast %34 : vector<17x1xf32> to vector<17x256xf32>
    %36 = arith.mulf %1, %35 : vector<17x256xf32>
    %cst_14 = arith.constant dense<0.000000e+00> : vector<256xf32>
    %37 = vector.multi_reduction <add>, %36, %cst_14 [0] : vector<17x256xf32> to vector<256xf32>
    %38 = vector.shape_cast %37 : vector<256xf32> to vector<1x256xf32>
    %cst_15 = arith.constant 1.700000e+01 : f32
    %39 = vector.broadcast %cst_15 : f32 to vector<1x256xf32>
    %40 = arith.divf %38, %39 : vector<1x256xf32>
    %cst_16 = arith.constant dense<0xFF800000> : vector<256xf32>
    %41 = vector.multi_reduction <maximumf>, %36, %cst_16 [0] : vector<17x256xf32> to vector<256xf32>
    %42 = vector.shape_cast %41 : vector<256xf32> to vector<1x256xf32>
    %43 = tpu.concatenate %40, %42 in 1 : vector<1x256xf32>, vector<1x256xf32> -> vector<1x512xf32>
    %44 = vector.shape_cast %43 : vector<1x512xf32> to vector<1x512xf32>
    %45 = vector.broadcast %44 : vector<1x512xf32> to vector<8x512xf32>
    %c0_17 = arith.constant 0 : index
    %c0_18 = arith.constant 0 : index
    %46 = vector.load %arg6[%c0_17, %c0_18] : memref<512x256xf32, #tpu.memory_space<vmem>>, vector<512x256xf32>
    %cst_19 = arith.constant dense<0.000000e+00> : vector<8x256xf32>
    %47 = tpu.matmul %45, %46, %cst_19 {dimension_numbers = #tpu.dot_dimension_numbers<[1], [0], [0], [1], [0, 0, 1, 1], [], []>, precision = #tpu.contract_precision<fp32>} : vector<8x512xf32>, vector<512x256xf32>, vector<8x256xf32> -> vector<8x256xf32>
    %48 = vector.extract_strided_slice %47 {offsets = [0, 0], sizes = [1, 256], strides = [1, 1]} : vector<8x256xf32> to vector<1x256xf32>
    %49 = arith.negf %48 : vector<1x256xf32>
    %50 = math.exp %49 : vector<1x256xf32>
    %cst_20 = arith.constant 1.000000e+00 : f32
    %51 = vector.broadcast %cst_20 : f32 to vector<1x256xf32>
    %52 = arith.addf %51, %50 : vector<1x256xf32>
    %53 = arith.divf %51, %52 : vector<1x256xf32>
    %54 = vector.broadcast %53 : vector<1x256xf32> to vector<17x256xf32>
    %55 = arith.mulf %54, %36 : vector<17x256xf32>
    %56 = arith.addf %1, %55 : vector<17x256xf32>
    %c0_21 = arith.constant 0 : index
    %c0_22 = arith.constant 0 : index
    %c0_23 = arith.constant 0 : index
    %57 = vector.load %arg7[%c0_21, %c0_22, %c0_23] : memref<1x17x256xf32, #tpu.memory_space<vmem>>, vector<1x17x256xf32>
    %58 = vector.shape_cast %57 : vector<1x17x256xf32> to vector<17x256xf32>
    %59 = vector.shape_cast %56 : vector<17x256xf32> to vector<1x17x256xf32>
    tpu.vector_store %arg7[%c0_21, %c0_22, %c0_23], %59 {strides = array<i32>} : memref<1x17x256xf32, #tpu.memory_space<vmem>>, vector<1x17x256xf32>,
    return
  }
  func.func @transform_0(%arg0: i32) -> (i32, i32, i32) {
    %c0_i32 = arith.constant 0 : i32
    %c0_i32_0 = arith.constant 0 : i32
    %c0_i32_1 = arith.constant 0 : i32
    return %arg0, %c0_i32, %c0_i32_0 : i32, i32, i32
  }
  func.func @transform_1(%arg0: i32) -> (i32, i32) {
    %c0_i32 = arith.constant 0 : i32
    %c0_i32_0 = arith.constant 0 : i32
    %c0_i32_1 = arith.constant 0 : i32
    return %c0_i32, %c0_i32_0 : i32, i32
  }
  func.func @transform_2(%arg0: i32) -> i32 {
    %c0_i32 = arith.constant 0 : i32
    %c0_i32_0 = arith.constant 0 : i32
    return %c0_i32 : i32
  }
  func.func @transform_3(%arg0: i32) -> (i32, i32) {
    %c0_i32 = arith.constant 0 : i32
    %c0_i32_0 = arith.constant 0 : i32
    %c0_i32_1 = arith.constant 0 : i32
    return %c0_i32, %c0_i32_0 : i32, i32
  }
  func.func @transform_4(%arg0: i32) -> (i32, i32) {
    %c0_i32 = arith.constant 0 : i32
    %c0_i32_0 = arith.constant 0 : i32
    %c0_i32_1 = arith.constant 0 : i32
    return %c0_i32, %c0_i32_0 : i32, i32
  }
  func.func @transform_5(%arg0: i32) -> (i32, i32) {
    %c0_i32 = arith.constant 0 : i32
    %c0_i32_0 = arith.constant 0 : i32
    %c0_i32_1 = arith.constant 0 : i32
    return %c0_i32, %c0_i32_0 : i32, i32
  }
  func.func @transform_6(%arg0: i32) -> (i32, i32, i32) {
    %c0_i32 = arith.constant 0 : i32
    %c0_i32_0 = arith.constant 0 : i32
    %c0_i32_1 = arith.constant 0 : i32
    return %arg0, %c0_i32, %c0_i32_0 : i32, i32, i32
  }
}

</mosaic_0001>

<llo_original>
// kernel: cbam_pallas.1
$region0: #{cbam_pallas.1}
  #allocation0 [shape = 'u32[]', space=smem, size = 0x4, offset = 0x4, fixed_abs, tag = 'smem constant byte address 0x4 - core index']
  #allocation1 [shape = 'u32[144,128]{1,0:T(1,128)}', space=vmem, size = 0x12000, scoped, tag = 'internal scratch']
  #allocation2 [shape = 'f32[1]{0:T(128)S(6)}', space=smem, size = 0x200, scoped, tag = 'scoped memory for cbam_pallas.1']
  %s0 = inlined_call_operand.vmem [shape: f32[2,17,256], index: 0, kind: input, shape index: {}]
  %s1 = inlined_call_operand.vmem [shape: f32[17,1], index: 1, kind: input, shape index: {}]
  %s2 = inlined_call_operand.<no memory space> [shape: f32[1], index: 2, kind: input, shape index: {}]
  %s3 = inlined_call_operand.vmem [shape: f32[17,1], index: 3, kind: input, shape index: {}]
  %s4 = inlined_call_operand.vmem [shape: f32[17,1], index: 4, kind: input, shape index: {}]
  %s5 = inlined_call_operand.hbm [shape: f32[512,256], index: 5, kind: input, shape index: {}]
  %s6 = inlined_call_operand.vmem [shape: f32[2,17,256], index: 6, kind: output, shape index: {}]
  %s7 = sld [smem:[#allocation0]]
  $region61: #{cbam_pallas.1} parent=0
    _
  %s9 = ssub.s32 1, %s7
  %s10 = scalar_select 0, %s9, %s7
  %11 = sst [smem:[#allocation2]] %s2
  $region1: #{cbam_pallas.1} parent=0
    #allocation3 [shape = 'u8[524288]{0}', space=vmem, size = 0x80000, scoped, tag = 'input window, operand 5, single buffered']
    #allocation4 [shape = 's32[2]{0}', space=sflag, size = 0x8, scoped, tag = 'scoped memory for cbam_pallas.1']
    %12 = vsyncpa [#allocation4], 0
    loop: start=0, step=1, limit=4
    $region2: #{cbam_pallas.1} parent=1 // loop_pre_header
      _
    $region3: #{cbam_pallas.1} parent=1 // loop_header
      %s14 = sphi 0, %s18
      %p15 = scmp.ge.s32.totalorder %s14, 4
      %s24 = sphi 0, %s26
      %s27 = sphi 0, %s24
      %s28 = sphi 0, %s27
      %s44 = sphi 0, %s28
      %s48 = sphi 0, %s48
      %s50 = sphi 0, %s48
      %s51 = sphi 0, %s50
      %s65 = sphi 0, %s51
      %s69 = sphi 0, %s69
      %s71 = sphi 0, %s69
      %s72 = sphi 0, %s71
      %s86 = sphi 0, %s72
      %s90 = sphi 0, %s90
      %s92 = sphi 0, %s90
      %s93 = sphi 0, %s92
      %s107 = sphi 0, %s93
      %s111 = sphi 0, %s111
      %s113 = sphi 0, %s111
      %s114 = sphi 0, %s113
      %s128 = sphi 0, %s114
      %s132 = sphi 0, %s132
      %s134 = sphi 0, %s132
      %s135 = sphi 0, %s134
      %s149 = sphi 0, %s135
      %s155 = sphi 0, %s157
      %s158 = sphi 0, %s155
      %s159 = sphi 0, %s158
      %s175 = sphi 0, %s159
    $region4: #{cbam_pallas.1} parent=1 // loop_header_branch
      %17 = sbr.rel (%p15) target = $region8
    $region5: #{cbam_pallas.1} parent=1 // loop_body
      %s19 = ssub.s32 %s14, 1
      %s20 = ssub.s32 %s14, 2
      %s21 = sadd.s32 %s14, 1
      %s22 = ssub.s32 %s14, %s21
      %p23 = scmp.eq.s32.totalorder %s22, 0
      %s25 = sadd.s32 %s24, 1
      %s26 = scalar_select %p23, %s24, %s25
      %p29 = pneg %p23
      %p30 = scmp.eq.s32.totalorder %s14, 1
      %p31 = por %p29, %p30
      %p32 = scmp.ne.s32.totalorder %s24, %s27
      %p33 = scmp.eq.s32.totalorder %s14, 0
      %p34 = por %p32, %p33
      %p35 = scmp.ne.s32.totalorder %s24, %s27
      %p36 = scmp.eq.s32.totalorder %s19, 1
      %p37 = por %p35, %p36
      %p38 = scmp.ne.s32.totalorder %s27, %s28
      %p39 = scmp.eq.s32.totalorder %s19, 0
      %p40 = por %p38, %p39
      %p41 = scmp.ne.s32.totalorder %s27, %s28
      %p42 = scmp.eq.s32.totalorder %s20, 1
      %p43 = por %p41, %p42
      %p45 = scmp.ne.s32.totalorder %s28, %s44
      %p46 = scmp.eq.s32.totalorder %s20, 0
      %p47 = por %p45, %p46
      %s49 = sadd.s32 %s48, 1
      %p52 = scmp.eq.s32.totalorder %s14, 1
      %p53 = scmp.ne.s32.totalorder %s48, %s50
      %p54 = scmp.eq.s32.totalorder %s14, 0
      %p55 = por %p53, %p54
      %p56 = scmp.ne.s32.totalorder %s48, %s50
      %p57 = scmp.eq.s32.totalorder %s19, 1
      %p58 = por %p56, %p57
      %p59 = scmp.ne.s32.totalorder %s50, %s51
      %p60 = scmp.eq.s32.totalorder %s19, 0
      %p61 = por %p59, %p60
      %p62 = scmp.ne.s32.totalorder %s50, %s51
      %p63 = scmp.eq.s32.totalorder %s20, 1
      %p64 = por %p62, %p63
      %p66 = scmp.ne.s32.totalorder %s51, %s65
      %p67 = scmp.eq.s32.totalorder %s20, 0
      %p68 = por %p66, %p67
      %s70 = sadd.s32 %s69, 1
      %p73 = scmp.eq.s32.totalorder %s14, 1
      %p74 = scmp.ne.s32.totalorder %s69, %s71
      %p75 = scmp.eq.s32.totalorder %s14, 0
      %p76 = por %p74, %p75
      %p77 = scmp.ne.s32.totalorder %s69, %s71
      %p78 = scmp.eq.s32.totalorder %s19, 1
      %p79 = por %p77, %p78
      %p80 = scmp.ne.s32.totalorder %s71, %s72
      %p81 = scmp.eq.s32.totalorder %s19, 0
      %p82 = por %p80, %p81
      %p83 = scmp.ne.s32.totalorder %s71, %s72
      %p84 = scmp.eq.s32.totalorder %s20, 1
      %p85 = por %p83, %p84
      %p87 = scmp.ne.s32.totalorder %s72, %s86
      %p88 = scmp.eq.s32.totalorder %s20, 0
      %p89 = por %p87, %p88
      %s91 = sadd.s32 %s90, 1
      %p94 = scmp.eq.s32.totalorder %s14, 1
      %p95 = scmp.ne.s32.totalorder %s90, %s92
      %p96 = scmp.eq.s32.totalorder %s14, 0
      %p97 = por %p95, %p96
      %p98 = scmp.ne.s32.totalorder %s90, %s92
      %p99 = scmp.eq.s32.totalorder %s19, 1
      %p100 = por %p98, %p99
      %p101 = scmp.ne.s32.totalorder %s92, %s93
      %p102 = scmp.eq.s32.totalorder %s19, 0
      %p103 = por %p101, %p102
      %p104 = scmp.ne.s32.totalorder %s92, %s93
      %p105 = scmp.eq.s32.totalorder %s20, 1
      %p106 = por %p104, %p105
      %p108 = scmp.ne.s32.totalorder %s93, %s107
      %p109 = scmp.eq.s32.totalorder %s20, 0
      %p110 = por %p108, %p109
      %s112 = sadd.s32 %s111, 1
      %p115 = scmp.eq.s32.totalorder %s14, 1
      %p116 = scmp.ne.s32.totalorder %s111, %s113
      %p117 = scmp.eq.s32.totalorder %s14, 0
      %p118 = por %p116, %p117
      %p119 = scmp.ne.s32.totalorder %s111, %s113
      %p120 = scmp.eq.s32.totalorder %s19, 1
      %p121 = por %p119, %p120
      %p122 = scmp.ne.s32.totalorder %s113, %s114
      %p123 = scmp.eq.s32.totalorder %s19, 0
      %p124 = por %p122, %p123
      %p125 = scmp.ne.s32.totalorder %s113, %s114
      %p126 = scmp.eq.s32.totalorder %s20, 1
      %p127 = por %p125, %p126
      %p129 = scmp.ne.s32.totalorder %s114, %s128
      %p130 = scmp.eq.s32.totalorder %s20, 0
      %p131 = por %p129, %p130
      %s133 = sadd.s32 %s132, 1
      %p136 = scmp.eq.s32.totalorder %s14, 1
      %p137 = scmp.ne.s32.totalorder %s132, %s134
      %p138 = scmp.eq.s32.totalorder %s14, 0
      %p139 = por %p137, %p138
      %p140 = scmp.ne.s32.totalorder %s132, %s134
      %p141 = scmp.eq.s32.totalorder %s19, 1
      %p142 = por %p140, %p141
      %p143 = scmp.ne.s32.totalorder %s134, %s135
      %p144 = scmp.eq.s32.totalorder %s19, 0
      %p145 = por %p143, %p144
      %p146 = scmp.ne.s32.totalorder %s134, %s135
      %p147 = scmp.eq.s32.totalorder %s20, 1
      %p148 = por %p146, %p147
      %p150 = scmp.ne.s32.totalorder %s135, %s149
      %p151 = scmp.eq.s32.totalorder %s20, 0
      %p152 = por %p150, %p151
      %s153 = ssub.s32 %s14, %s21
      %p154 = scmp.eq.s32.totalorder %s153, 0
      %s156 = sadd.s32 %s155, 1
      %s157 = scalar_select %p154, %s155, %s156
      %p160 = pneg %p154
      %p161 = scmp.eq.s32.totalorder %s14, 1
      %p162 = por %p160, %p161
      %p163 = scmp.ne.s32.totalorder %s155, %s158
      %p164 = scmp.eq.s32.totalorder %s14, 0
      %p165 = por %p163, %p164
      %p166 = scmp.ne.s32.totalorder %s155, %s158
      %p167 = scmp.eq.s32.totalorder %s19, 1
      %p168 = por %p166, %p167
      %p169 = scmp.ne.s32.totalorder %s158, %s159
      %p170 = scmp.eq.s32.totalorder %s19, 0
      %p171 = por %p169, %p170
      %p172 = scmp.ne.s32.totalorder %s158, %s159
      %p173 = scmp.eq.s32.totalorder %s20, 1
      %p174 = por %p172, %p173
      %p176 = scmp.ne.s32.totalorder %s159, %s175
      %p177 = scmp.eq.s32.totalorder %s20, 0
      %p178 = por %p176, %p177
      %p179 = scmp.le.s32.totalorder 1, %s14
      %p180 = scmp.lt.s32.totalorder %s14, 3
      %p181 = pnand %p179, %p180
      %p182 = pneg %p181
      // Predicated region
      $region9: #{cbam_pallas.1} parent=5 // pred_check
        _
      $region10: #{cbam_pallas.1} parent=5 // pred_check_branch
        %184 = sbr.rel (%p181) target = $region12
      $region11: #{cbam_pallas.1} parent=5 // pred_region
        %s185 = ssub.s32 %s14, 1
        // Predicated region
        $region13: #{cbam_pallas.1} parent=11 // pred_check
          %p186 = pneg %p61
        $region14: #{cbam_pallas.1} parent=11 // pred_check_branch
          %188 = sbr.rel (%p186) target = $region16
        $region15: #{cbam_pallas.1} parent=11 // pred_region
          _
        $region16: #{cbam_pallas.1} parent=11 // pred_fallthru
          _
        // Predicated region
        $region17: #{cbam_pallas.1} parent=11 // pred_check
          %p189 = pneg %p82
        $region18: #{cbam_pallas.1} parent=11 // pred_check_branch
          %191 = sbr.rel (%p189) target = $region20
        $region19: #{cbam_pallas.1} parent=11 // pred_region
          _
        $region20: #{cbam_pallas.1} parent=11 // pred_fallthru
          _
        // Predicated region
        $region21: #{cbam_pallas.1} parent=11 // pred_check
          %p192 = pneg %p103
        $region22: #{cbam_pallas.1} parent=11 // pred_check_branch
          %194 = sbr.rel (%p192) target = $region24
        $region23: #{cbam_pallas.1} parent=11 // pred_region
          _
        $region24: #{cbam_pallas.1} parent=11 // pred_fallthru
          _
        // Predicated region
        $region25: #{cbam_pallas.1} parent=11 // pred_check
          %p195 = pneg %p124
        $region26: #{cbam_pallas.1} parent=11 // pred_check_branch
          %197 = sbr.rel (%p195) target = $region28
        $region27: #{cbam_pallas.1} parent=11 // pred_region
          _
        $region28: #{cbam_pallas.1} parent=11 // pred_fallthru
          _
        // Predicated region
        $region29: #{cbam_pallas.1} parent=11 // pred_check
          %p198 = pneg %p145
        $region30: #{cbam_pallas.1} parent=11 // pred_check_branch
          %200 = sbr.rel (%p198) target = $region32
        $region31: #{cbam_pallas.1} parent=11 // pred_region
          %s202 = ssub.s32 16384, 16384
          %203 = vsyncadd [#allocation4], %s202
          %s204 = sshll.u32 [#allocation3], 4
          %s205 = int_to_ptr.vmem [resolvable:$true] %s204
          %210 = dma.hbm_to_vmem [thread:$0]  %s5, 16384, %s205, [#allocation4], 256, 256, 16
        $region32: #{cbam_pallas.1} parent=11 // pred_fallthru
          _
      $region12: #{cbam_pallas.1} parent=5 // pred_fallthru
        _
      %p211 = scmp.lt.s32.totalorder %s14, 2
      // Predicated region
      $region33: #{cbam_pallas.1} parent=5 // pred_check
        %p212 = pneg %p211
      $region34: #{cbam_pallas.1} parent=5 // pred_check_branch
        %214 = sbr.rel (%p212) target = $region36
      $region35: #{cbam_pallas.1} parent=5 // pred_region
        // Predicated region
        $region37: #{cbam_pallas.1} parent=35 // pred_check
          %p215 = pneg %p34
        $region38: #{cbam_pallas.1} parent=35 // pred_check_branch
          %217 = sbr.rel (%p215) target = $region40
        $region39: #{cbam_pallas.1} parent=35 // pred_region
          %p218 = scmp.lt.s32.totalorder %s14, 1
          %s219 = scalar_select %p218, %s14, 1
          %s220 = smul.addr %s219, 6
          %s221 = smul.addr %s220, 8
          %s222 = scalar_lea.vmem %s0, %s221
        $region40: #{cbam_pallas.1} parent=35 // pred_fallthru
          _
      $region36: #{cbam_pallas.1} parent=5 // pred_fallthru
        _
      %p223 = scmp.le.s32.totalorder 1, %s14
      %p224 = scmp.lt.s32.totalorder %s14, 3
      %p225 = pnand %p223, %p224
      %p226 = pneg %p225
      // Predicated region
      $region41: #{cbam_pallas.1} parent=5 // pred_check
        _
      $region42: #{cbam_pallas.1} parent=5 // pred_check_branch
        %228 = sbr.rel (%p225) target = $region44
      $region43: #{cbam_pallas.1} parent=5 // pred_region
        %s229 = ssub.s32 %s14, 1
        // Predicated region
        $region45: #{cbam_pallas.1} parent=43 // pred_check
          %p230 = pneg %p145
        $region46: #{cbam_pallas.1} parent=43 // pred_check_branch
          %232 = sbr.rel (%p230) target = $region48
        $region47: #{cbam_pallas.1} parent=43 // pred_region
          %233 = dma.done [#allocation4], 16384
        $region48: #{cbam_pallas.1} parent=43 // pred_fallthru
          _
        %p234 = scmp.lt.s32.totalorder %s19, 1
        %s235 = scalar_select %p234, %s19, 1
        %s236 = smul.addr %s235, 6
        %s237 = smul.addr %s236, 8
        %s238 = scalar_lea.vmem %s0, %s237
        %p239 = pneg %p40
        %p240 = pneg %p37
        %p241 = pneg %p61
        %p242 = pneg %p58
        %p243 = pneg %p82
        %p244 = pneg %p79
        %p245 = pneg %p103
        %p246 = pneg %p100
        %p247 = pneg %p124
        %p248 = pneg %p121
        %p249 = pneg %p145
        %p250 = pneg %p142
        %p251 = pneg %p171
        %p252 = pneg %p168
        %p253 = scmp.lt.s32.totalorder %s19, 1
        %s254 = scalar_select %p253, %s19, 1
        %s255 = smul.addr %s254, 6
        %s256 = smul.addr %s255, 8
        %s257 = scalar_lea.vmem %s6, %s256
        %p258 = scmp.lt.s32.totalorder %s19, 1
        %s259 = scalar_select %p258, %s19, 1
        %s260 = smul.addr %s259, 6
        %s261 = smul.addr %s260, 8
        %s262 = scalar_lea.vmem %s0, %s261
        %p263 = scmp.lt.s32.totalorder %s19, 1
        %s264 = scalar_select %p263, %s19, 1
        %s265 = smul.addr %s264, 6
        %s266 = smul.addr %s265, 8
        %s267 = scalar_lea.vmem %s6, %s266
        %v268 = vld [vmem:[%s262] sm:$0xff]
        %v269 = vld [vmem:[%s262 + $0x8] sm:$0xff]
        %v270 = vld [vmem:[%s262 + $0x10] sm:$0xff]
        %v271 = vld [vmem:[%s262 + $0x18] sm:$0xff]
        %v272 = vld [vmem:[%s262 + $0x20] sm:$0x1]
        %v273 = vld [vmem:[%s262 + $0x28] sm:$0x1]
        %v274 = vmax.f32 %v268, %v269
        %275 = vmax.xlane.f32.xlu0 %v274
        %v276 = vpop.xlane.xlu0 %275
        %v277 = vmax.f32 %v270, %v271
        %278 = vmax.xlane.f32.xlu0 %v277
        %v279 = vpop.xlane.xlu0 %278
        %vm280 = vcmask 1040384
        %v281 = vsel %vm280, %v272, -inf
        %v282 = vsel %vm280, %v273, -inf
        %v283 = vmax.f32 %v281, %v282
        %284 = vmax.xlane.f32.xlu0 %v283
        %v285 = vpop.xlane.xlu0 %284
        %v286 = vadd.f32 %v268, %v269
        %287 = vadd.xlane.f32.xlu0 %v286
        %v288 = vpop.xlane.xlu0 %287
        %v289 = vadd.f32 %v270, %v271
        %290 = vadd.xlane.f32.xlu0 %v289
        %v291 = vpop.xlane.xlu0 %290
        %v292 = vsel %vm280, %v272, 0.0
        %v293 = vsel %vm280, %v273, 0.0
        %v294 = vadd.f32 %v292, %v293
        %295 = vadd.xlane.f32.xlu0 %v294
        %v296 = vpop.xlane.xlu0 %295
        %v297 = vrcp.pop 256.0
        %v298 = vmul.f32 %v288, %v297
        %v299 = vmul.f32 %v291, %v297
        %v300 = vmul.f32 %v296, %v297
        %vm301 = vcmask 7168
        %v302 = vsel %vm301, %v276, %v298
        %v303 = vsel %vm301, %v279, %v299
        %v304 = vsel %vm301, %v285, %v300
        %v305 = vld [vmem:[%s4] sm:$0xff]
        %v306 = vld [vmem:[%s4 + $0x8] sm:$0xff]
        %v307 = vld [vmem:[%s4 + $0x10] sm:$0x1]
        %309 = vset.pattern.permute.xlu0 0
        %310 = vperm.xlu0 %309, %v305
        %v311 = vpop.permute.xlu0 %310
        %314 = vset.pattern.permute.xlu0 0
        %315 = vperm.xlu0 %314, %v306
        %v316 = vpop.permute.xlu0 %315
        %319 = vset.pattern.permute.xlu0 0
        %320 = vperm.xlu0 %319, %v307
        %v321 = vpop.permute.xlu0 %320
        %v323 = vld [vmem:[%s1] sm:$0xff]
        %v324 = vld [vmem:[%s1 + $0x8] sm:$0xff]
        %v325 = vld [vmem:[%s1 + $0x10] sm:$0x1]
        %327 = vset.pattern.permute.xlu0 0
        %328 = vperm.xlu0 %327, %v323
        %v329 = vpop.permute.xlu0 %328
        %332 = vset.pattern.permute.xlu0 0
        %333 = vperm.xlu0 %332, %v324
        %v334 = vpop.permute.xlu0 %333
        %337 = vset.pattern.permute.xlu0 0
        %338 = vperm.xlu0 %337, %v325
        %v339 = vpop.permute.xlu0 %338
        %v341 = vmul.f32 %v329, %v302
        %v342 = vmul.f32 %v334, %v303
        %v343 = vmul.f32 %v339, %v304
        %vm344 = vcmask 15360
        %v345 = vsel %vm344, %v341, 0.0
        %v346 = vsel %vm344, %v342, 0.0
        %v347 = vadd.f32 %v345, %v346
        %vm348 = vcmask 8192
        %v349 = vsel %vm348, %v343, 0.0
        %v350 = vadd.f32 %v347, %v349
        %v351 = vrot.slane %v350, 4
        %v352 = vadd.f32 %v350, %v351
        %v353 = vrot.slane %v352, 2
        %v354 = vadd.f32 %v352, %v353
        %v355 = vrot.slane %v354, 1
        %v356 = vadd.f32 %v354, %v355
        %s357 = sld [smem:[#allocation2]]
        %v358 = vstv %s357
        %v359 = vadd.f32 %v356, %v358
        %v360 = vmax.f32 %v359, 0.0
        %v361 = vld [vmem:[%s3] sm:$0xff]
        %v362 = vld [vmem:[%s3 + $0x8] sm:$0xff]
        %v363 = vld [vmem:[%s3 + $0x10] sm:$0x1]
        %365 = vset.pattern.permute.xlu0 0
        %366 = vperm.xlu0 %365, %v361
        %v367 = vpop.permute.xlu0 %366
        %370 = vset.pattern.permute.xlu0 0
        %371 = vperm.xlu0 %370, %v362
        %v372 = vpop.permute.xlu0 %371
        %375 = vset.pattern.permute.xlu0 0
        %376 = vperm.xlu0 %375, %v363
        %v377 = vpop.permute.xlu0 %376
        %v379 = vmul.f32 %v367, %v360
        %v380 = vmul.f32 %v372, %v360
        %v381 = vmul.f32 %v377, %v360
        %v382 = vadd.f32 %v311, %v379
        %v383 = vadd.f32 %v316, %v380
        %v384 = vadd.f32 %v321, %v381
        %388 = vrot.lane.b32.xlu0 %v382, 127
        %v389 = vpop.permute.xlu0 %388
        %390 = vrot.lane.b32.xlu0 %v383, 127
        %v391 = vpop.permute.xlu0 %390
        %392 = vrot.lane.b32.xlu0 %v384, 127
        %v393 = vpop.permute.xlu0 %392
        %v397 = vadd.f32 %v382, %v389
        %v398 = vadd.f32 %v383, %v391
        %v399 = vadd.f32 %v384, %v393
        %v400 = vxor.u32 %v397, 2147483648
        %v401 = vxor.u32 %v398, 2147483648
        %v402 = vxor.u32 %v399, 2147483648
        %v403 = vmul.f32 %v400, 1.442695
        %v404 = vpow.pop %v403
        %v405 = vmul.f32 %v401, 1.442695
        %v406 = vpow.pop %v405
        %v407 = vmul.f32 %v402, 1.442695
        %v408 = vpow.pop %v407
        %v409 = vadd.f32 %v404, 1.0
        %v410 = vadd.f32 %v406, 1.0
        %v411 = vadd.f32 %v408, 1.0
        %v412 = vrcp.pop %v409
        %v413 = vmul.f32 1.0, %v412
        %v414 = vrcp.pop %v410
        %v415 = vmul.f32 1.0, %v414
        %v416 = vrcp.pop %v411
        %v417 = vmul.f32 1.0, %v416
        %419 = vset.pattern.permute.xlu0 0
        %420 = vperm.xlu0 %419, %v413
        %v421 = vpop.permute.xlu0 %420
        %424 = vset.pattern.permute.xlu0 0
        %425 = vperm.xlu0 %424, %v415
        %v426 = vpop.permute.xlu0 %425
        %429 = vset.pattern.permute.xlu0 0
        %430 = vperm.xlu0 %429, %v417
        %v431 = vpop.permute.xlu0 %430
        %v433 = vmul.f32 %v268, %v421
        %v434 = vmul.f32 %v269, %v421
        %v435 = vmul.f32 %v270, %v426
        %v436 = vmul.f32 %v271, %v426
        %v437 = vmul.f32 %v272, %v431
        %v438 = vmul.f32 %v273, %v431
        %v439 = vadd.f32 %v433, %v435
        %v440 = vsel %vm280, %v437, 0.0
        %v441 = vadd.f32 %v439, %v440
        %v442 = vrot.slane %v441, 4
        %v443 = vadd.f32 %v441, %v442
        %v444 = vrot.slane %v443, 2
        %v445 = vadd.f32 %v443, %v444
        %v446 = vrot.slane %v445, 1
        %v447 = vadd.f32 %v445, %v446
        %v448 = vadd.f32 %v434, %v436
        %v449 = vsel %vm280, %v438, 0.0
        %v450 = vadd.f32 %v448, %v449
        %v451 = vrot.slane %v450, 4
        %v452 = vadd.f32 %v450, %v451
        %v453 = vrot.slane %v452, 2
        %v454 = vadd.f32 %v452, %v453
        %v455 = vrot.slane %v454, 1
        %v456 = vadd.f32 %v454, %v455
        %v457 = vrcp.pop 17.0
        %v458 = vmul.f32 %v447, %v457
        %v459 = vmul.f32 %v456, %v457
        %v460 = vsel %vm280, %v437, -inf
        %v461 = vmax.f32 %v433, %v460
        %v462 = vmax.f32 %v461, %v435
        %v463 = vrot.slane %v462, 4
        %v464 = vmax.f32 %v462, %v463
        %v465 = vrot.slane %v464, 2
        %v466 = vmax.f32 %v464, %v465
        %v467 = vrot.slane %v466, 1
        %v468 = vmax.f32 %v466, %v467
        %v469 = vsel %vm280, %v438, -inf
        %v470 = vmax.f32 %v434, %v469
        %v471 = vmax.f32 %v470, %v436
        %v472 = vrot.slane %v471, 4
        %v473 = vmax.f32 %v471, %v472
        %v474 = vrot.slane %v473, 2
        %v475 = vmax.f32 %v473, %v474
        %v476 = vrot.slane %v475, 1
        %v477 = vmax.f32 %v475, %v476
        %v478 = vlaneseq
        %v479 = vshrl.u32 %v478, 7
        %v480 = vsub.s32 0, %v479
        %v481 = vrot.slane %v458, %v480
        %v482 = vlaneseq
        %v483 = vshrl.u32 %v482, 7
        %v484 = vsub.s32 0, %v483
        %v485 = vrot.slane %v459, %v484
        %v486 = vlaneseq
        %v487 = vshrl.u32 %v486, 7
        %v488 = vsub.s32 0, %v487
        %v489 = vrot.slane %v468, %v488
        %v490 = vlaneseq
        %v491 = vshrl.u32 %v490, 7
        %v492 = vsub.s32 0, %v491
        %v493 = vrot.slane %v477, %v492
        %v494 = vld [vmem:[#allocation3] sm:$0xff]
        %v495 = vld [vmem:[#allocation3 + $0x8] sm:$0xff]
        %v496 = vld [vmem:[#allocation3 + $0x10] sm:$0xff]
        %v497 = vld [vmem:[#allocation3 + $0x18] sm:$0xff]
        %v498 = vld [vmem:[#allocation3 + $0x20] sm:$0xff]
        %v499 = vld [vmem:[#allocation3 + $0x28] sm:$0xff]
        %v500 = vld [vmem:[#allocation3 + $0x30] sm:$0xff]
        %v501 = vld [vmem:[#allocation3 + $0x38] sm:$0xff]
        %v502 = vld [vmem:[#allocation3 + $0x40] sm:$0xff]
        %v503 = vld [vmem:[#allocation3 + $0x48] sm:$0xff]
        %v504 = vld [vmem:[#allocation3 + $0x50] sm:$0xff]
        %v505 = vld [vmem:[#allocation3 + $0x58] sm:$0xff]
        %v506 = vld [vmem:[#allocation3 + $0x60] sm:$0xff]
        %v507 = vld [vmem:[#allocation3 + $0x68] sm:$0xff]
        %v508 = vld [vmem:[#allocation3 + $0x70] sm:$0xff]
        %v509 = vld [vmem:[#allocation3 + $0x78] sm:$0xff]
        %v510 = vld [vmem:[#allocation3 + $0x80] sm:$0xff]
        %v511 = vld [vmem:[#allocation3 + $0x88] sm:$0xff]
        %v512 = vld [vmem:[#allocation3 + $0x90] sm:$0xff]
        %v513 = vld [vmem:[#allocation3 + $0x98] sm:$0xff]
        %v514 = vld [vmem:[#allocation3 + $0xa0] sm:$0xff]
        %v515 = vld [vmem:[#allocation3 + $0xa8] sm:$0xff]
        %v516 = vld [vmem:[#allocation3 + $0xb0] sm:$0xff]
        %v517 = vld [vmem:[#allocation3 + $0xb8] sm:$0xff]
        %v518 = vld [vmem:[#allocation3 + $0xc0] sm:$0xff]
        %v519 = vld [vmem:[#allocation3 + $0xc8] sm:$0xff]
        %v520 = vld [vmem:[#allocation3 + $0xd0] sm:$0xff]
        %v521 = vld [vmem:[#allocation3 + $0xd8] sm:$0xff]
        %v522 = vld [vmem:[#allocation3 + $0xe0] sm:$0xff]
        %v523 = vld [vmem:[#allocation3 + $0xe8] sm:$0xff]
        %v524 = vld [vmem:[#allocation3 + $0xf0] sm:$0xff]
        %v525 = vld [vmem:[#allocation3 + $0xf8] sm:$0xff]
        %v526 = vld [vmem:[#allocation3 + $0x100] sm:$0xff]
        %v527 = vld [vmem:[#allocation3 + $0x108] sm:$0xff]
        %v528 = vld [vmem:[#allocation3 + $0x110] sm:$0xff]
        %v529 = vld [vmem:[#allocation3 + $0x118] sm:$0xff]
        %v530 = vld [vmem:[#allocation3 + $0x120] sm:$0xff]
        %v531 = vld [vmem:[#allocation3 + $0x128] sm:$0xff]
        %v532 = vld [vmem:[#allocation3 + $0x130] sm:$0xff]
        %v533 = vld [vmem:[#allocation3 + $0x138] sm:$0xff]
        %v534 = vld [vmem:[#allocation3 + $0x140] sm:$0xff]
        %v535 = vld [vmem:[#allocation3 + $0x148] sm:$0xff]
        %v536 = vld [vmem:[#allocation3 + $0x150] sm:$0xff]
        %v537 = vld [vmem:[#allocation3 + $0x158] sm:$0xff]
        %v538 = vld [vmem:[#allocation3 + $0x160] sm:$0xff]
        %v539 = vld [vmem:[#allocation3 + $0x168] sm:$0xff]
        %v540 = vld [vmem:[#allocation3 + $0x170] sm:$0xff]
        %v541 = vld [vmem:[#allocation3 + $0x178] sm:$0xff]
        %v542 = vld [vmem:[#allocation3 + $0x180] sm:$0xff]
        %v543 = vld [vmem:[#allocation3 + $0x188] sm:$0xff]
        %v544 = vld [vmem:[#allocation3 + $0x190] sm:$0xff]
        %v545 = vld [vmem:[#allocation3 + $0x198] sm:$0xff]
        %v546 = vld [vmem:[#allocation3 + $0x1a0] sm:$0xff]
        %v547 = vld [vmem:[#allocation3 + $0x1a8] sm:$0xff]
        %v548 = vld [vmem:[#allocation3 + $0x1b0] sm:$0xff]
        %v549 = vld [vmem:[#allocation3 + $0x1b8] sm:$0xff]
        %v550 = vld [vmem:[#allocation3 + $0x1c0] sm:$0xff]
        %v551 = vld [vmem:[#allocation3 + $0x1c8] sm:$0xff]
        %v552 = vld [vmem:[#allocation3 + $0x1d0] sm:$0xff]
        %v553 = vld [vmem:[#allocation3 + $0x1d8] sm:$0xff]
        %v554 = vld [vmem:[#allocation3 + $0x1e0] sm:$0xff]
        %v555 = vld [vmem:[#allocation3 + $0x1e8] sm:$0xff]
        %v556 = vld [vmem:[#allocation3 + $0x1f0] sm:$0xff]
        %v557 = vld [vmem:[#allocation3 + $0x1f8] sm:$0xff]
        %v558 = vld [vmem:[#allocation3 + $0x200] sm:$0xff]
        %v559 = vld [vmem:[#allocation3 + $0x208] sm:$0xff]
        %v560 = vld [vmem:[#allocation3 + $0x210] sm:$0xff]
        %v561 = vld [vmem:[#allocation3 + $0x218] sm:$0xff]
        %v562 = vld [vmem:[#allocation3 + $0x220] sm:$0xff]
        %v563 = vld [vmem:[#allocation3 + $0x228] sm:$0xff]
        %v564 = vld [vmem:[#allocation3 + $0x230] sm:$0xff]
        %v565 = vld [vmem:[#allocation3 + $0x238] sm:$0xff]
        %v566 = vld [vmem:[#allocation3 + $0x240] sm:$0xff]
        %v567 = vld [vmem:[#allocation3 + $0x248] sm:$0xff]
        %v568 = vld [vmem:[#allocation3 + $0x250] sm:$0xff]
        %v569 = vld [vmem:[#allocation3 + $0x258] sm:$0xff]
        %v570 = vld [vmem:[#allocation3 + $0x260] sm:$0xff]
        %v571 = vld [vmem:[#allocation3 + $0x268] sm:$0xff]
        %v572 = vld [vmem:[#allocation3 + $0x270] sm:$0xff]
        %v573 = vld [vmem:[#allocation3 + $0x278] sm:$0xff]
        %v574 = vld [vmem:[#allocation3 + $0x280] sm:$0xff]
        %v575 = vld [vmem:[#allocation3 + $0x288] sm:$0xff]
        %v576 = vld [vmem:[#allocation3 + $0x290] sm:$0xff]
        %v577 = vld [vmem:[#allocation3 + $0x298] sm:$0xff]
        %v578 = vld [vmem:[#allocation3 + $0x2a0] sm:$0xff]
        %v579 = vld [vmem:[#allocation3 + $0x2a8] sm:$0xff]
        %v580 = vld [vmem:[#allocation3 + $0x2b0] sm:$0xff]
        %v581 = vld [vmem:[#allocation3 + $0x2b8] sm:$0xff]
        %v582 = vld [vmem:[#allocation3 + $0x2c0] sm:$0xff]
        %v583 = vld [vmem:[#allocation3 + $0x2c8] sm:$0xff]
        %v584 = vld [vmem:[#allocation3 + $0x2d0] sm:$0xff]
        %v585 = vld [vmem:[#allocation3 + $0x2d8] sm:$0xff]
        %v586 = vld [vmem:[#allocation3 + $0x2e0] sm:$0xff]
        %v587 = vld [vmem:[#allocation3 + $0x2e8] sm:$0xff]
        %v588 = vld [vmem:[#allocation3 + $0x2f0] sm:$0xff]
        %v589 = vld [vmem:[#allocation3 + $0x2f8] sm:$0xff]
        %v590 = vld [vmem:[#allocation3 + $0x300] sm:$0xff]
        %v591 = vld [vmem:[#allocation3 + $0x308] sm:$0xff]
        %v592 = vld [vmem:[#allocation3 + $0x310] sm:$0xff]
        %v593 = vld [vmem:[#allocation3 + $0x318] sm:$0xff]
        %v594 = vld [vmem:[#allocation3 + $0x320] sm:$0xff]
        %v595 = vld [vmem:[#allocation3 + $0x328] sm:$0xff]
        %v596 = vld [vmem:[#allocation3 + $0x330] sm:$0xff]
        %v597 = vld [vmem:[#allocation3 + $0x338] sm:$0xff]
        %v598 = vld [vmem:[#allocation3 + $0x340] sm:$0xff]
        %v599 = vld [vmem:[#allocation3 + $0x348] sm:$0xff]
        %v600 = vld [vmem:[#allocation3 + $0x350] sm:$0xff]
        %v601 = vld [vmem:[#allocation3 + $0x358] sm:$0xff]
        %v602 = vld [vmem:[#allocation3 + $0x360] sm:$0xff]
        %v603 = vld [vmem:[#allocation3 + $0x368] sm:$0xff]
        %v604 = vld [vmem:[#allocation3 + $0x370] sm:$0xff]
        %v605 = vld [vmem:[#allocation3 + $0x378] sm:$0xff]
        %v606 = vld [vmem:[#allocation3 + $0x380] sm:$0xff]
        %v607 = vld [vmem:[#allocation3 + $0x388] sm:$0xff]
        %v608 = vld [vmem:[#allocation3 + $0x390] sm:$0xff]
        %v609 = vld [vmem:[#allocation3 + $0x398] sm:$0xff]
        %v610 = vld [vmem:[#allocation3 + $0x3a0] sm:$0xff]
        %v611 = vld [vmem:[#allocation3 + $0x3a8] sm:$0xff]
        %v612 = vld [vmem:[#allocation3 + $0x3b0] sm:$0xff]
        %v613 = vld [vmem:[#allocation3 + $0x3b8] sm:$0xff]
        %v614 = vld [vmem:[#allocation3 + $0x3c0] sm:$0xff]
        %v615 = vld [vmem:[#allocation3 + $0x3c8] sm:$0xff]
        %v616 = vld [vmem:[#allocation3 + $0x3d0] sm:$0xff]
        %v617 = vld [vmem:[#allocation3 + $0x3d8] sm:$0xff]
        %v618 = vld [vmem:[#allocation3 + $0x3e0] sm:$0xff]
        %v619 = vld [vmem:[#allocation3 + $0x3e8] sm:$0xff]
        %v620 = vld [vmem:[#allocation3 + $0x3f0] sm:$0xff]
        %v621 = vld [vmem:[#allocation3 + $0x3f8] sm:$0xff]
        %v622 = vand.u32 %v495, 4294901760
        %623 = vmatprep.subr.mxu0 %v622
        %v624 = vand.u32 %v494, 4294901760
        %625 = vmatpush1.msra.mxu0 %v624
        %v626 = vand.u32 %v497, 4294901760
        %627 = vmatprep.subr.mxu0 %v626
        %v628 = vand.u32 %v496, 4294901760
        %629 = vmatpush1.msra.mxu0 %v628
        %v630 = vand.u32 %v499, 4294901760
        %631 = vmatprep.subr.mxu0 %v630
        %v632 = vand.u32 %v498, 4294901760
        %633 = vmatpush1.msra.mxu0 %v632
        %v634 = vand.u32 %v501, 4294901760
        %635 = vmatprep.subr.mxu0 %v634
        %v636 = vand.u32 %v500, 4294901760
        %637 = vmatpush1.msra.mxu0 %v636
        %v638 = vand.u32 %v503, 4294901760
        %639 = vmatprep.subr.mxu0 %v638
        %v640 = vand.u32 %v502, 4294901760
        %641 = vmatpush1.msra.mxu0 %v640
        %v642 = vand.u32 %v505, 4294901760
        %643 = vmatprep.subr.mxu0 %v642
        %v644 = vand.u32 %v504, 4294901760
        %645 = vmatpush1.msra.mxu0 %v644
        %v646 = vand.u32 %v507, 4294901760
        %647 = vmatprep.subr.mxu0 %v646
        %v648 = vand.u32 %v506, 4294901760
        %649 = vmatpush1.msra.mxu0 %v648
        %v650 = vand.u32 %v509, 4294901760
        %651 = vmatprep.subr.mxu0 %v650
        %v652 = vand.u32 %v508, 4294901760
        %653 = vmatpush1.msra.mxu0 %v652
        %v654 = vand.u32 %v511, 4294901760
        %655 = vmatprep.subr.mxu0 %v654
        %v656 = vand.u32 %v510, 4294901760
        %657 = vmatpush1.msra.mxu0 %v656
        %v658 = vand.u32 %v513, 4294901760
        %659 = vmatprep.subr.mxu0 %v658
        %v660 = vand.u32 %v512, 4294901760
        %661 = vmatpush1.msra.mxu0 %v660
        %v662 = vand.u32 %v515, 4294901760
        %663 = vmatprep.subr.mxu0 %v662
        %v664 = vand.u32 %v514, 4294901760
        %665 = vmatpush1.msra.mxu0 %v664
        %v666 = vand.u32 %v517, 4294901760
        %667 = vmatprep.subr.mxu0 %v666
        %v668 = vand.u32 %v516, 4294901760
        %669 = vmatpush1.msra.mxu0 %v668
        %v670 = vand.u32 %v519, 4294901760
        %671 = vmatprep.subr.mxu0 %v670
        %v672 = vand.u32 %v518, 4294901760
        %673 = vmatpush1.msra.mxu0 %v672
        %v674 = vand.u32 %v521, 4294901760
        %675 = vmatprep.subr.mxu0 %v674
        %v676 = vand.u32 %v520, 4294901760
        %677 = vmatpush1.msra.mxu0 %v676
        %v678 = vand.u32 %v523, 4294901760
        %679 = vmatprep.subr.mxu0 %v678
        %v680 = vand.u32 %v522, 4294901760
        %681 = vmatpush1.msra.mxu0 %v680
        %v682 = vand.u32 %v525, 4294901760
        %683 = vmatprep.subr.mxu0 %v682
        %v684 = vand.u32 %v524, 4294901760
        %685 = vmatpush1.msra.mxu0 %v684
        %v686 = vand.u32 %v527, 4294901760
        %687 = vmatprep.subr.mxu0 %v686
        %v688 = vand.u32 %v526, 4294901760
        %689 = vmatpush1.msra.mxu0 %v688
        %v690 = vand.u32 %v529, 4294901760
        %691 = vmatprep.subr.mxu0 %v690
        %v692 = vand.u32 %v528, 4294901760
        %693 = vmatpush1.msra.mxu0 %v692
        %v694 = vand.u32 %v531, 4294901760
        %695 = vmatprep.subr.mxu0 %v694
        %v696 = vand.u32 %v530, 4294901760
        %697 = vmatpush1.msra.mxu0 %v696
        %v698 = vand.u32 %v533, 4294901760
        %699 = vmatprep.subr.mxu0 %v698
        %v700 = vand.u32 %v532, 4294901760
        %701 = vmatpush1.msra.mxu0 %v700
        %v702 = vand.u32 %v535, 4294901760
        %703 = vmatprep.subr.mxu0 %v702
        %v704 = vand.u32 %v534, 4294901760
        %705 = vmatpush1.msra.mxu0 %v704
        %v706 = vand.u32 %v537, 4294901760
        %707 = vmatprep.subr.mxu0 %v706
        %v708 = vand.u32 %v536, 4294901760
        %709 = vmatpush1.msra.mxu0 %v708
        %v710 = vand.u32 %v539, 4294901760
        %711 = vmatprep.subr.mxu0 %v710
        %v712 = vand.u32 %v538, 4294901760
        %713 = vmatpush1.msra.mxu0 %v712
        %v714 = vand.u32 %v541, 4294901760
        %715 = vmatprep.subr.mxu0 %v714
        %v716 = vand.u32 %v540, 4294901760
        %717 = vmatpush1.msra.mxu0 %v716
        %v718 = vand.u32 %v543, 4294901760
        %719 = vmatprep.subr.mxu0 %v718
        %v720 = vand.u32 %v542, 4294901760
        %721 = vmatpush1.msra.mxu0 %v720
        %v722 = vand.u32 %v545, 4294901760
        %723 = vmatprep.subr.mxu0 %v722
        %v724 = vand.u32 %v544, 4294901760
        %725 = vmatpush1.msra.mxu0 %v724
        %v726 = vand.u32 %v547, 4294901760
        %727 = vmatprep.subr.mxu0 %v726
        %v728 = vand.u32 %v546, 4294901760
        %729 = vmatpush1.msra.mxu0 %v728
        %v730 = vand.u32 %v549, 4294901760
        %731 = vmatprep.subr.mxu0 %v730
        %v732 = vand.u32 %v548, 4294901760
        %733 = vmatpush1.msra.mxu0 %v732
        %v734 = vand.u32 %v551, 4294901760
        %735 = vmatprep.subr.mxu0 %v734
        %v736 = vand.u32 %v550, 4294901760
        %737 = vmatpush1.msra.mxu0 %v736
        %v738 = vand.u32 %v553, 4294901760
        %739 = vmatprep.subr.mxu0 %v738
        %v740 = vand.u32 %v552, 4294901760
        %741 = vmatpush1.msra.mxu0 %v740
        %v742 = vand.u32 %v555, 4294901760
        %743 = vmatprep.subr.mxu0 %v742
        %v744 = vand.u32 %v554, 4294901760
        %745 = vmatpush1.msra.mxu0 %v744
        %v746 = vand.u32 %v557, 4294901760
        %747 = vmatprep.subr.mxu0 %v746
        %v748 = vand.u32 %v556, 4294901760
        %749 = vmatpush1.msra.mxu0 %v748
        %v750 = vand.u32 %v485, 4294901760
        %v751 = vsub.f32 %v485, %v750
        %v752 = vand.u32 %v751, 4294901760
        %v753 = vsub.f32 %v751, %v752
        %v754 = vand.u32 %v753, 4294901760
        %755 = vmatprep.mubr.f32.mxu0 %v754
        %v756 = vand.u32 %v481, 4294901760
        %v757 = vsub.f32 %v481, %v756
        %v758 = vand.u32 %v757, 4294901760
        %v759 = vsub.f32 %v757, %v758
        %v760 = vand.u32 %v759, 4294901760
        %761 = vmatmul.mubr.f32.gmra.mrb[0].mxu0 %v760
        %v762 = vpop.f32.mrb[0].mxu0
        %v763 = vadd.f32 0.0, %v762
        %v764 = vpop.f32.mrb[0].mxu0
        %v765 = vadd.f32 0.0, %v764
        %766 = vdwg.mxu0
        %v767 = vand.u32 %v495, 4294901760
        %v768 = vsub.f32 %v495, %v767
        %v769 = vand.u32 %v768, 4294901760
        %v770 = vsub.f32 %v768, %v769
        %v771 = vand.u32 %v770, 4294901760
        %772 = vmatprep.subr.mxu0 %v771
        %v773 = vand.u32 %v494, 4294901760
        %v774 = vsub.f32 %v494, %v773
        %v775 = vand.u32 %v774, 4294901760
        %v776 = vsub.f32 %v774, %v775
        %v777 = vand.u32 %v776, 4294901760
        %778 = vmatpush1.msra.mxu0 %v777
        %v779 = vand.u32 %v497, 4294901760
        %v780 = vsub.f32 %v497, %v779
        %v781 = vand.u32 %v780, 4294901760
        %v782 = vsub.f32 %v780, %v781
        %v783 = vand.u32 %v782, 4294901760
        %784 = vmatprep.subr.mxu0 %v783
        %v785 = vand.u32 %v496, 4294901760
        %v786 = vsub.f32 %v496, %v785
        %v787 = vand.u32 %v786, 4294901760
        %v788 = vsub.f32 %v786, %v787
        %v789 = vand.u32 %v788, 4294901760
        %790 = vmatpush1.msra.mxu0 %v789
        %v791 = vand.u32 %v499, 4294901760
        %v792 = vsub.f32 %v499, %v791
        %v793 = vand.u32 %v792, 4294901760
        %v794 = vsub.f32 %v792, %v793
        %v795 = vand.u32 %v794, 4294901760
        %796 = vmatprep.subr.mxu0 %v795
        %v797 = vand.u32 %v498, 4294901760
        %v798 = vsub.f32 %v498, %v797
        %v799 = vand.u32 %v798, 4294901760
        %v800 = vsub.f32 %v798, %v799
        %v801 = vand.u32 %v800, 4294901760
        %802 = vmatpush1.msra.mxu0 %v801
        %v803 = vand.u32 %v501, 4294901760
        %v804 = vsub.f32 %v501, %v803
        %v805 = vand.u32 %v804, 4294901760
        %v806 = vsub.f32 %v804, %v805
        %v807 = vand.u32 %v806, 4294901760
        %808 = vmatprep.subr.mxu0 %v807
        %v809 = vand.u32 %v500, 4294901760
        %v810 = vsub.f32 %v500, %v809
        %v811 = vand.u32 %v810, 4294901760
        %v812 = vsub.f32 %v810, %v811
        %v813 = vand.u32 %v812, 4294901760
        %814 = vmatpush1.msra.mxu0 %v813
        %v815 = vand.u32 %v503, 4294901760
        %v816 = vsub.f32 %v503, %v815
        %v817 = vand.u32 %v816, 4294901760
        %v818 = vsub.f32 %v816, %v817
        %v819 = vand.u32 %v818, 4294901760
        %820 = vmatprep.subr.mxu0 %v819
        %v821 = vand.u32 %v502, 4294901760
        %v822 = vsub.f32 %v502, %v821
        %v823 = vand.u32 %v822, 4294901760
        %v824 = vsub.f32 %v822, %v823
        %v825 = vand.u32 %v824, 4294901760
        %826 = vmatpush1.msra.mxu0 %v825
        %v827 = vand.u32 %v505, 4294901760
        %v828 = vsub.f32 %v505, %v827
        %v829 = vand.u32 %v828, 4294901760
        %v830 = vsub.f32 %v828, %v829
        %v831 = vand.u32 %v830, 4294901760
        %832 = vmatprep.subr.mxu0 %v831
        %v833 = vand.u32 %v504, 4294901760
        %v834 = vsub.f32 %v504, %v833
        %v835 = vand.u32 %v834, 4294901760
        %v836 = vsub.f32 %v834, %v835
        %v837 = vand.u32 %v836, 4294901760
        %838 = vmatpush1.msra.mxu0 %v837
        %v839 = vand.u32 %v507, 4294901760
        %v840 = vsub.f32 %v507, %v839
        %v841 = vand.u32 %v840, 4294901760
        %v842 = vsub.f32 %v840, %v841
        %v843 = vand.u32 %v842, 4294901760
        %844 = vmatprep.subr.mxu0 %v843
        %v845 = vand.u32 %v506, 4294901760
        %v846 = vsub.f32 %v506, %v845
        %v847 = vand.u32 %v846, 4294901760
        %v848 = vsub.f32 %v846, %v847
        %v849 = vand.u32 %v848, 4294901760
        %850 = vmatpush1.msra.mxu0 %v849
        %v851 = vand.u32 %v509, 4294901760
        %v852 = vsub.f32 %v509, %v851
        %v853 = vand.u32 %v852, 4294901760
        %v854 = vsub.f32 %v852, %v853
        %v855 = vand.u32 %v854, 4294901760
        %856 = vmatprep.subr.mxu0 %v855
        %v857 = vand.u32 %v508, 4294901760
        %v858 = vsub.f32 %v508, %v857
        %v859 = vand.u32 %v858, 4294901760
        %v860 = vsub.f32 %v858, %v859
        %v861 = vand.u32 %v860, 4294901760
        %862 = vmatpush1.msra.mxu0 %v861
        %v863 = vand.u32 %v511, 4294901760
        %v864 = vsub.f32 %v511, %v863
        %v865 = vand.u32 %v864, 4294901760
        %v866 = vsub.f32 %v864, %v865
        %v867 = vand.u32 %v866, 4294901760
        %868 = vmatprep.subr.mxu0 %v867
        %v869 = vand.u32 %v510, 4294901760
        %v870 = vsub.f32 %v510, %v869
        %v871 = vand.u32 %v870, 4294901760
        %v872 = vsub.f32 %v870, %v871
        %v873 = vand.u32 %v872, 4294901760
        %874 = vmatpush1.msra.mxu0 %v873
        %v875 = vand.u32 %v513, 4294901760
        %v876 = vsub.f32 %v513, %v875
        %v877 = vand.u32 %v876, 4294901760
        %v878 = vsub.f32 %v876, %v877
        %v879 = vand.u32 %v878, 4294901760
        %880 = vmatprep.subr.mxu0 %v879
        %v881 = vand.u32 %v512, 4294901760
        %v882 = vsub.f32 %v512, %v881
        %v883 = vand.u32 %v882, 4294901760
        %v884 = vsub.f32 %v882, %v883
        %v885 = vand.u32 %v884, 4294901760
        %886 = vmatpush1.msra.mxu0 %v885
        %v887 = vand.u32 %v515, 4294901760
        %v888 = vsub.f32 %v515, %v887
        %v889 = vand.u32 %v888, 4294901760
        %v890 = vsub.f32 %v888, %v889
        %v891 = vand.u32 %v890, 4294901760
        %892 = vmatprep.subr.mxu0 %v891
        %v893 = vand.u32 %v514, 4294901760
        %v894 = vsub.f32 %v514, %v893
        %v895 = vand.u32 %v894, 4294901760
        %v896 = vsub.f32 %v894, %v895
        %v897 = vand.u32 %v896, 4294901760
        %898 = vmatpush1.msra.mxu0 %v897
        %v899 = vand.u32 %v517, 4294901760
        %v900 = vsub.f32 %v517, %v899
        %v901 = vand.u32 %v900, 4294901760
        %v902 = vsub.f32 %v900, %v901
        %v903 = vand.u32 %v902, 4294901760
        %904 = vmatprep.subr.mxu0 %v903
        %v905 = vand.u32 %v516, 4294901760
        %v906 = vsub.f32 %v516, %v905
        %v907 = vand.u32 %v906, 4294901760
        %v908 = vsub.f32 %v906, %v907
        %v909 = vand.u32 %v908, 4294901760
        %910 = vmatpush1.msra.mxu0 %v909
        %v911 = vand.u32 %v519, 4294901760
        %v912 = vsub.f32 %v519, %v911
        %v913 = vand.u32 %v912, 4294901760
        %v914 = vsub.f32 %v912, %v913
        %v915 = vand.u32 %v914, 4294901760
        %916 = vmatprep.subr.mxu0 %v915
        %v917 = vand.u32 %v518, 4294901760
        %v918 = vsub.f32 %v518, %v917
        %v919 = vand.u32 %v918, 4294901760
        %v920 = vsub.f32 %v918, %v919
        %v921 = vand.u32 %v920, 4294901760
        %922 = vmatpush1.msra.mxu0 %v921
        %v923 = vand.u32 %v521, 4294901760
        %v924 = vsub.f32 %v521, %v923
        %v925 = vand.u32 %v924, 4294901760
        %v926 = vsub.f32 %v924, %v925
        %v927 = vand.u32 %v926, 4294901760
        %928 = vmatprep.subr.mxu0 %v927
        %v929 = vand.u32 %v520, 4294901760
        %v930 = vsub.f32 %v520, %v929
        %v931 = vand.u32 %v930, 4294901760
        %v932 = vsub.f32 %v930, %v931
        %v933 = vand.u32 %v932, 4294901760
        %934 = vmatpush1.msra.mxu0 %v933
        %v935 = vand.u32 %v523, 4294901760
        %v936 = vsub.f32 %v523, %v935
        %v937 = vand.u32 %v936, 4294901760
        %v938 = vsub.f32 %v936, %v937
        %v939 = vand.u32 %v938, 4294901760
        %940 = vmatprep.subr.mxu0 %v939
        %v941 = vand.u32 %v522, 4294901760
        %v942 = vsub.f32 %v522, %v941
        %v943 = vand.u32 %v942, 4294901760
        %v944 = vsub.f32 %v942, %v943
        %v945 = vand.u32 %v944, 4294901760
        %946 = vmatpush1.msra.mxu0 %v945
        %v947 = vand.u32 %v525, 4294901760
        %v948 = vsub.f32 %v525, %v947
        %v949 = vand.u32 %v948, 4294901760
        %v950 = vsub.f32 %v948, %v949
        %v951 = vand.u32 %v950, 4294901760
        %952 = vmatprep.subr.mxu0 %v951
        %v953 = vand.u32 %v524, 4294901760
        %v954 = vsub.f32 %v524, %v953
        %v955 = vand.u32 %v954, 4294901760
        %v956 = vsub.f32 %v954, %v955
        %v957 = vand.u32 %v956, 4294901760
        %958 = vmatpush1.msra.mxu0 %v957
        %v959 = vand.u32 %v527, 4294901760
        %v960 = vsub.f32 %v527, %v959
        %v961 = vand.u32 %v960, 4294901760
        %v962 = vsub.f32 %v960, %v961
        %v963 = vand.u32 %v962, 4294901760
        %964 = vmatprep.subr.mxu0 %v963
        %v965 = vand.u32 %v526, 4294901760
        %v966 = vsub.f32 %v526, %v965
        %v967 = vand.u32 %v966, 4294901760
        %v968 = vsub.f32 %v966, %v967
        %v969 = vand.u32 %v968, 4294901760
        %970 = vmatpush1.msra.mxu0 %v969
        %v971 = vand.u32 %v529, 4294901760
        %v972 = vsub.f32 %v529, %v971
        %v973 = vand.u32 %v972, 4294901760
        %v974 = vsub.f32 %v972, %v973
        %v975 = vand.u32 %v974, 4294901760
        %976 = vmatprep.subr.mxu0 %v975
        %v977 = vand.u32 %v528, 4294901760
        %v978 = vsub.f32 %v528, %v977
        %v979 = vand.u32 %v978, 4294901760
        %v980 = vsub.f32 %v978, %v979
        %v981 = vand.u32 %v980, 4294901760
        %982 = vmatpush1.msra.mxu0 %v981
        %v983 = vand.u32 %v531, 4294901760
        %v984 = vsub.f32 %v531, %v983
        %v985 = vand.u32 %v984, 4294901760
        %v986 = vsub.f32 %v984, %v985
        %v987 = vand.u32 %v986, 4294901760
        %988 = vmatprep.subr.mxu0 %v987
        %v989 = vand.u32 %v530, 4294901760
        %v990 = vsub.f32 %v530, %v989
        %v991 = vand.u32 %v990, 4294901760
        %v992 = vsub.f32 %v990, %v991
        %v993 = vand.u32 %v992, 4294901760
        %994 = vmatpush1.msra.mxu0 %v993
        %v995 = vand.u32 %v533, 4294901760
        %v996 = vsub.f32 %v533, %v995
        %v997 = vand.u32 %v996, 4294901760
        %v998 = vsub.f32 %v996, %v997
        %v999 = vand.u32 %v998, 4294901760
        %1000 = vmatprep.subr.mxu0 %v999
        %v1001 = vand.u32 %v532, 4294901760
        %v1002 = vsub.f32 %v532, %v1001
        %v1003 = vand.u32 %v1002, 4294901760
        %v1004 = vsub.f32 %v1002, %v1003
        %v1005 = vand.u32 %v1004, 4294901760
        %1006 = vmatpush1.msra.mxu0 %v1005
        %v1007 = vand.u32 %v535, 4294901760
        %v1008 = vsub.f32 %v535, %v1007
        %v1009 = vand.u32 %v1008, 4294901760
        %v1010 = vsub.f32 %v1008, %v1009
        %v1011 = vand.u32 %v1010, 4294901760
        %1012 = vmatprep.subr.mxu0 %v1011
        %v1013 = vand.u32 %v534, 4294901760
        %v1014 = vsub.f32 %v534, %v1013
        %v1015 = vand.u32 %v1014, 4294901760
        %v1016 = vsub.f32 %v1014, %v1015
        %v1017 = vand.u32 %v1016, 4294901760
        %1018 = vmatpush1.msra.mxu0 %v1017
        %v1019 = vand.u32 %v537, 4294901760
        %v1020 = vsub.f32 %v537, %v1019
        %v1021 = vand.u32 %v1020, 4294901760
        %v1022 = vsub.f32 %v1020, %v1021
        %v1023 = vand.u32 %v1022, 4294901760
        %1024 = vmatprep.subr.mxu0 %v1023
        %v1025 = vand.u32 %v536, 4294901760
        %v1026 = vsub.f32 %v536, %v1025
        %v1027 = vand.u32 %v1026, 4294901760
        %v1028 = vsub.f32 %v1026, %v1027
        %v1029 = vand.u32 %v1028, 4294901760
        %1030 = vmatpush1.msra.mxu0 %v1029
        %v1031 = vand.u32 %v539, 4294901760
        %v1032 = vsub.f32 %v539, %v1031
        %v1033 = vand.u32 %v1032, 4294901760
        %v1034 = vsub.f32 %v1032, %v1033
        %v1035 = vand.u32 %v1034, 4294901760
        %1036 = vmatprep.subr.mxu0 %v1035
        %v1037 = vand.u32 %v538, 4294901760
        %v1038 = vsub.f32 %v538, %v1037
        %v1039 = vand.u32 %v1038, 4294901760
        %v1040 = vsub.f32 %v1038, %v1039
        %v1041 = vand.u32 %v1040, 4294901760
        %1042 = vmatpush1.msra.mxu0 %v1041
        %v1043 = vand.u32 %v541, 4294901760
        %v1044 = vsub.f32 %v541, %v1043
        %v1045 = vand.u32 %v1044, 4294901760
        %v1046 = vsub.f32 %v1044, %v1045
        %v1047 = vand.u32 %v1046, 4294901760
        %1048 = vmatprep.subr.mxu0 %v1047
        %v1049 = vand.u32 %v540, 4294901760
        %v1050 = vsub.f32 %v540, %v1049
        %v1051 = vand.u32 %v1050, 4294901760
        %v1052 = vsub.f32 %v1050, %v1051
        %v1053 = vand.u32 %v1052, 4294901760
        %1054 = vmatpush1.msra.mxu0 %v1053
        %v1055 = vand.u32 %v543, 4294901760
        %v1056 = vsub.f32 %v543, %v1055
        %v1057 = vand.u32 %v1056, 4294901760
        %v1058 = vsub.f32 %v1056, %v1057
        %v1059 = vand.u32 %v1058, 4294901760
        %1060 = vmatprep.subr.mxu0 %v1059
        %v1061 = vand.u32 %v542, 4294901760
        %v1062 = vsub.f32 %v542, %v1061
        %v1063 = vand.u32 %v1062, 4294901760
        %v1064 = vsub.f32 %v1062, %v1063
        %v1065 = vand.u32 %v1064, 4294901760
        %1066 = vmatpush1.msra.mxu0 %v1065
        %v1067 = vand.u32 %v545, 4294901760
        %v1068 = vsub.f32 %v545, %v1067
        %v1069 = vand.u32 %v1068, 4294901760
        %v1070 = vsub.f32 %v1068, %v1069
        %v1071 = vand.u32 %v1070, 4294901760
        %1072 = vmatprep.subr.mxu0 %v1071
        %v1073 = vand.u32 %v544, 4294901760
        %v1074 = vsub.f32 %v544, %v1073
        %v1075 = vand.u32 %v1074, 4294901760
        %v1076 = vsub.f32 %v1074, %v1075
        %v1077 = vand.u32 %v1076, 4294901760
        %1078 = vmatpush1.msra.mxu0 %v1077
        %v1079 = vand.u32 %v547, 4294901760
        %v1080 = vsub.f32 %v547, %v1079
        %v1081 = vand.u32 %v1080, 4294901760
        %v1082 = vsub.f32 %v1080, %v1081
        %v1083 = vand.u32 %v1082, 4294901760
        %1084 = vmatprep.subr.mxu0 %v1083
        %v1085 = vand.u32 %v546, 4294901760
        %v1086 = vsub.f32 %v546, %v1085
        %v1087 = vand.u32 %v1086, 4294901760
        %v1088 = vsub.f32 %v1086, %v1087
        %v1089 = vand.u32 %v1088, 4294901760
        %1090 = vmatpush1.msra.mxu0 %v1089
        %v1091 = vand.u32 %v549, 4294901760
        %v1092 = vsub.f32 %v549, %v1091
        %v1093 = vand.u32 %v1092, 4294901760
        %v1094 = vsub.f32 %v1092, %v1093
        %v1095 = vand.u32 %v1094, 4294901760
        %1096 = vmatprep.subr.mxu0 %v1095
        %v1097 = vand.u32 %v548, 4294901760
        %v1098 = vsub.f32 %v548, %v1097
        %v1099 = vand.u32 %v1098, 4294901760
        %v1100 = vsub.f32 %v1098, %v1099
        %v1101 = vand.u32 %v1100, 4294901760
        %1102 = vmatpush1.msra.mxu0 %v1101
        %v1103 = vand.u32 %v551, 4294901760
        %v1104 = vsub.f32 %v551, %v1103
        %v1105 = vand.u32 %v1104, 4294901760
        %v1106 = vsub.f32 %v1104, %v1105
        %v1107 = vand.u32 %v1106, 4294901760
        %1108 = vmatprep.subr.mxu0 %v1107
        %v1109 = vand.u32 %v550, 4294901760
        %v1110 = vsub.f32 %v550, %v1109
        %v1111 = vand.u32 %v1110, 4294901760
        %v1112 = vsub.f32 %v1110, %v1111
        %v1113 = vand.u32 %v1112, 4294901760
        %1114 = vmatpush1.msra.mxu0 %v1113
        %v1115 = vand.u32 %v553, 4294901760
        %v1116 = vsub.f32 %v553, %v1115
        %v1117 = vand.u32 %v1116, 4294901760
        %v1118 = vsub.f32 %v1116, %v1117
        %v1119 = vand.u32 %v1118, 4294901760
        %1120 = vmatprep.subr.mxu0 %v1119
        %v1121 = vand.u32 %v552, 4294901760
        %v1122 = vsub.f32 %v552, %v1121
        %v1123 = vand.u32 %v1122, 4294901760
        %v1124 = vsub.f32 %v1122, %v1123
        %v1125 = vand.u32 %v1124, 4294901760
        %1126 = vmatpush1.msra.mxu0 %v1125
        %v1127 = vand.u32 %v555, 4294901760
        %v1128 = vsub.f32 %v555, %v1127
        %v1129 = vand.u32 %v1128, 4294901760
        %v1130 = vsub.f32 %v1128, %v1129
        %v1131 = vand.u32 %v1130, 4294901760
        %1132 = vmatprep.subr.mxu0 %v1131
        %v1133 = vand.u32 %v554, 4294901760
        %v1134 = vsub.f32 %v554, %v1133
        %v1135 = vand.u32 %v1134, 4294901760
        %v1136 = vsub.f32 %v1134, %v1135
        %v1137 = vand.u32 %v1136, 4294901760
        %1138 = vmatpush1.msra.mxu0 %v1137
        %v1139 = vand.u32 %v557, 4294901760
        %v1140 = vsub.f32 %v557, %v1139
        %v1141 = vand.u32 %v1140, 4294901760
        %v1142 = vsub.f32 %v1140, %v1141
        %v1143 = vand.u32 %v1142, 4294901760
        %1144 = vmatprep.subr.mxu0 %v1143
        %v1145 = vand.u32 %v556, 4294901760
        %v1146 = vsub.f32 %v556, %v1145
        %v1147 = vand.u32 %v1146, 4294901760
        %v1148 = vsub.f32 %v1146, %v1147
        %v1149 = vand.u32 %v1148, 4294901760
        %1150 = vmatpush1.msra.mxu0 %v1149
        %v1151 = vand.u32 %v485, 4294901760
        %1152 = vmatprep.mubr.f32.mxu0 %v1151
        %v1153 = vand.u32 %v481, 4294901760
        %1154 = vmatmul.mubr.f32.gmra.mrb[0].mxu0 %v1153
        %v1155 = vpop.f32.mrb[0].mxu0
        %v1156 = vadd.f32 %v763, %v1155
        %v1157 = vpop.f32.mrb[0].mxu0
        %v1158 = vadd.f32 %v765, %v1157
        %1159 = vdwg.mxu0
        %v1160 = vand.u32 %v495, 4294901760
        %v1161 = vsub.f32 %v495, %v1160
        %1162 = vmatprep.subr.mxu0 %v1161
        %v1163 = vand.u32 %v494, 4294901760
        %v1164 = vsub.f32 %v494, %v1163
        %1165 = vmatpush1.msra.mxu0 %v1164
        %v1166 = vand.u32 %v497, 4294901760
        %v1167 = vsub.f32 %v497, %v1166
        %1168 = vmatprep.subr.mxu0 %v1167
        %v1169 = vand.u32 %v496, 4294901760
        %v1170 = vsub.f32 %v496, %v1169
        %1171 = vmatpush1.msra.mxu0 %v1170
        %v1172 = vand.u32 %v499, 4294901760
        %v1173 = vsub.f32 %v499, %v1172
        %1174 = vmatprep.subr.mxu0 %v1173
        %v1175 = vand.u32 %v498, 4294901760
        %v1176 = vsub.f32 %v498, %v1175
        %1177 = vmatpush1.msra.mxu0 %v1176
        %v1178 = vand.u32 %v501, 4294901760
        %v1179 = vsub.f32 %v501, %v1178
        %1180 = vmatprep.subr.mxu0 %v1179
        %v1181 = vand.u32 %v500, 4294901760
        %v1182 = vsub.f32 %v500, %v1181
        %1183 = vmatpush1.msra.mxu0 %v1182
        %v1184 = vand.u32 %v503, 4294901760
        %v1185 = vsub.f32 %v503, %v1184
        %1186 = vmatprep.subr.mxu0 %v1185
        %v1187 = vand.u32 %v502, 4294901760
        %v1188 = vsub.f32 %v502, %v1187
        %1189 = vmatpush1.msra.mxu0 %v1188
        %v1190 = vand.u32 %v505, 4294901760
        %v1191 = vsub.f32 %v505, %v1190
        %1192 = vmatprep.subr.mxu0 %v1191
        %v1193 = vand.u32 %v504, 4294901760
        %v1194 = vsub.f32 %v504, %v1193
        %1195 = vmatpush1.msra.mxu0 %v1194
        %v1196 = vand.u32 %v507, 4294901760
        %v1197 = vsub.f32 %v507, %v1196
        %1198 = vmatprep.subr.mxu0 %v1197
        %v1199 = vand.u32 %v506, 4294901760
        %v1200 = vsub.f32 %v506, %v1199
        %1201 = vmatpush1.msra.mxu0 %v1200
        %v1202 = vand.u32 %v509, 4294901760
        %v1203 = vsub.f32 %v509, %v1202
        %1204 = vmatprep.subr.mxu0 %v1203
        %v1205 = vand.u32 %v508, 4294901760
        %v1206 = vsub.f32 %v508, %v1205
        %1207 = vmatpush1.msra.mxu0 %v1206
        %v1208 = vand.u32 %v511, 4294901760
        %v1209 = vsub.f32 %v511, %v1208
        %1210 = vmatprep.subr.mxu0 %v1209
        %v1211 = vand.u32 %v510, 4294901760
        %v1212 = vsub.f32 %v510, %v1211
        %1213 = vmatpush1.msra.mxu0 %v1212
        %v1214 = vand.u32 %v513, 4294901760
        %v1215 = vsub.f32 %v513, %v1214
        %1216 = vmatprep.subr.mxu0 %v1215
        %v1217 = vand.u32 %v512, 4294901760
        %v1218 = vsub.f32 %v512, %v1217
        %1219 = vmatpush1.msra.mxu0 %v1218
        %v1220 = vand.u32 %v515, 4294901760
        %v1221 = vsub.f32 %v515, %v1220
        %1222 = vmatprep.subr.mxu0 %v1221
        %v1223 = vand.u32 %v514, 4294901760
        %v1224 = vsub.f32 %v514, %v1223
        %1225 = vmatpush1.msra.mxu0 %v1224
        %v1226 = vand.u32 %v517, 4294901760
        %v1227 = vsub.f32 %v517, %v1226
        %1228 = vmatprep.subr.mxu0 %v1227
        %v1229 = vand.u32 %v516, 4294901760
        %v1230 = vsub.f32 %v516, %v1229
        %1231 = vmatpush1.msra.mxu0 %v1230
        %v1232 = vand.u32 %v519, 4294901760
        %v1233 = vsub.f32 %v519, %v1232
        %1234 = vmatprep.subr.mxu0 %v1233
        %v1235 = vand.u32 %v518, 4294901760
        %v1236 = vsub.f32 %v518, %v1235
        %1237 = vmatpush1.msra.mxu0 %v1236
        %v1238 = vand.u32 %v521, 4294901760
        %v1239 = vsub.f32 %v521, %v1238
        %1240 = vmatprep.subr.mxu0 %v1239
        %v1241 = vand.u32 %v520, 4294901760
        %v1242 = vsub.f32 %v520, %v1241
        %1243 = vmatpush1.msra.mxu0 %v1242
        %v1244 = vand.u32 %v523, 4294901760
        %v1245 = vsub.f32 %v523, %v1244
        %1246 = vmatprep.subr.mxu0 %v1245
        %v1247 = vand.u32 %v522, 4294901760
        %v1248 = vsub.f32 %v522, %v1247
        %1249 = vmatpush1.msra.mxu0 %v1248
        %v1250 = vand.u32 %v525, 4294901760
        %v1251 = vsub.f32 %v525, %v1250
        %1252 = vmatprep.subr.mxu0 %v1251
        %v1253 = vand.u32 %v524, 4294901760
        %v1254 = vsub.f32 %v524, %v1253
        %1255 = vmatpush1.msra.mxu0 %v1254
        %v1256 = vand.u32 %v527, 4294901760
        %v1257 = vsub.f32 %v527, %v1256
        %1258 = vmatprep.subr.mxu0 %v1257
        %v1259 = vand.u32 %v526, 4294901760
        %v1260 = vsub.f32 %v526, %v1259
        %1261 = vmatpush1.msra.mxu0 %v1260
        %v1262 = vand.u32 %v529, 4294901760
        %v1263 = vsub.f32 %v529, %v1262
        %1264 = vmatprep.subr.mxu0 %v1263
        %v1265 = vand.u32 %v528, 4294901760
        %v1266 = vsub.f32 %v528, %v1265
        %1267 = vmatpush1.msra.mxu0 %v1266
        %v1268 = vand.u32 %v531, 4294901760
        %v1269 = vsub.f32 %v531, %v1268
        %1270 = vmatprep.subr.mxu0 %v1269
        %v1271 = vand.u32 %v530, 4294901760
        %v1272 = vsub.f32 %v530, %v1271
        %1273 = vmatpush1.msra.mxu0 %v1272
        %v1274 = vand.u32 %v533, 4294901760
        %v1275 = vsub.f32 %v533, %v1274
        %1276 = vmatprep.subr.mxu0 %v1275
        %v1277 = vand.u32 %v532, 4294901760
        %v1278 = vsub.f32 %v532, %v1277
        %1279 = vmatpush1.msra.mxu0 %v1278
        %v1280 = vand.u32 %v535, 4294901760
        %v1281 = vsub.f32 %v535, %v1280
        %1282 = vmatprep.subr.mxu0 %v1281
        %v1283 = vand.u32 %v534, 4294901760
        %v1284 = vsub.f32 %v534, %v1283
        %1285 = vmatpush1.msra.mxu0 %v1284
        %v1286 = vand.u32 %v537, 4294901760
        %v1287 = vsub.f32 %v537, %v1286
        %1288 = vmatprep.subr.mxu0 %v1287
        %v1289 = vand.u32 %v536, 4294901760
        %v1290 = vsub.f32 %v536, %v1289
        %1291 = vmatpush1.msra.mxu0 %v1290
        %v1292 = vand.u32 %v539, 4294901760
        %v1293 = vsub.f32 %v539, %v1292
        %1294 = vmatprep.subr.mxu0 %v1293
        %v1295 = vand.u32 %v538, 4294901760
        %v1296 = vsub.f32 %v538, %v1295
        %1297 = vmatpush1.msra.mxu0 %v1296
        %v1298 = vand.u32 %v541, 4294901760
        %v1299 = vsub.f32 %v541, %v1298
        %1300 = vmatprep.subr.mxu0 %v1299
        %v1301 = vand.u32 %v540, 4294901760
        %v1302 = vsub.f32 %v540, %v1301
        %1303 = vmatpush1.msra.mxu0 %v1302
        %v1304 = vand.u32 %v543, 4294901760
        %v1305 = vsub.f32 %v543, %v1304
        %1306 = vmatprep.subr.mxu0 %v1305
        %v1307 = vand.u32 %v542, 4294901760
        %v1308 = vsub.f32 %v542, %v1307
        %1309 = vmatpush1.msra.mxu0 %v1308
        %v1310 = vand.u32 %v545, 4294901760
        %v1311 = vsub.f32 %v545, %v1310
        %1312 = vmatprep.subr.mxu0 %v1311
        %v1313 = vand.u32 %v544, 4294901760
        %v1314 = vsub.f32 %v544, %v1313
        %1315 = vmatpush1.msra.mxu0 %v1314
        %v1316 = vand.u32 %v547, 4294901760
        %v1317 = vsub.f32 %v547, %v1316
        %1318 = vmatprep.subr.mxu0 %v1317
        %v1319 = vand.u32 %v546, 4294901760
        %v1320 = vsub.f32 %v546, %v1319
        %1321 = vmatpush1.msra.mxu0 %v1320
        %v1322 = vand.u32 %v549, 4294901760
        %v1323 = vsub.f32 %v549, %v1322
        %1324 = vmatprep.subr.mxu0 %v1323
        %v1325 = vand.u32 %v548, 4294901760
        %v1326 = vsub.f32 %v548, %v1325
        %1327 = vmatpush1.msra.mxu0 %v1326
        %v1328 = vand.u32 %v551, 4294901760
        %v1329 = vsub.f32 %v551, %v1328
        %1330 = vmatprep.subr.mxu0 %v1329
        %v1331 = vand.u32 %v550, 4294901760
        %v1332 = vsub.f32 %v550, %v1331
        %1333 = vmatpush1.msra.mxu0 %v1332
        %v1334 = vand.u32 %v553, 4294901760
        %v1335 = vsub.f32 %v553, %v1334
        %1336 = vmatprep.subr.mxu0 %v1335
        %v1337 = vand.u32 %v552, 4294901760
        %v1338 = vsub.f32 %v552, %v1337
        %1339 = vmatpush1.msra.mxu0 %v1338
        %v1340 = vand.u32 %v555, 4294901760
        %v1341 = vsub.f32 %v555, %v1340
        %1342 = vmatprep.subr.mxu0 %v1341
        %v1343 = vand.u32 %v554, 4294901760
        %v1344 = vsub.f32 %v554, %v1343
        %1345 = vmatpush1.msra.mxu0 %v1344
        %v1346 = vand.u32 %v557, 4294901760
        %v1347 = vsub.f32 %v557, %v1346
        %1348 = vmatprep.subr.mxu0 %v1347
        %v1349 = vand.u32 %v556, 4294901760
        %v1350 = vsub.f32 %v556, %v1349
        %1351 = vmatpush1.msra.mxu0 %v1350
        %v1352 = vand.u32 %v485, 4294901760
        %v1353 = vsub.f32 %v485, %v1352
        %1354 = vmatprep.mubr.f32.mxu0 %v1353
        %v1355 = vand.u32 %v481, 4294901760
        %v1356 = vsub.f32 %v481, %v1355
        %1357 = vmatmul.mubr.f32.gmra.mrb[0].mxu0 %v1356
        %v1358 = vpop.f32.mrb[0].mxu0
        %v1359 = vadd.f32 %v1156, %v1358
        %v1360 = vpop.f32.mrb[0].mxu0
        %v1361 = vadd.f32 %v1158, %v1360
        %1362 = vdwg.mxu0
        %v1363 = vand.u32 %v495, 4294901760
        %1364 = vmatprep.subr.mxu0 %v1363
        %v1365 = vand.u32 %v494, 4294901760
        %1366 = vmatpush1.msra.mxu0 %v1365
        %v1367 = vand.u32 %v497, 4294901760
        %1368 = vmatprep.subr.mxu0 %v1367
        %v1369 = vand.u32 %v496, 4294901760
        %1370 = vmatpush1.msra.mxu0 %v1369
        %v1371 = vand.u32 %v499, 4294901760
        %1372 = vmatprep.subr.mxu0 %v1371
        %v1373 = vand.u32 %v498, 4294901760
        %1374 = vmatpush1.msra.mxu0 %v1373
        %v1375 = vand.u32 %v501, 4294901760
        %1376 = vmatprep.subr.mxu0 %v1375
        %v1377 = vand.u32 %v500, 4294901760
        %1378 = vmatpush1.msra.mxu0 %v1377
        %v1379 = vand.u32 %v503, 4294901760
        %1380 = vmatprep.subr.mxu0 %v1379
        %v1381 = vand.u32 %v502, 4294901760
        %1382 = vmatpush1.msra.mxu0 %v1381
        %v1383 = vand.u32 %v505, 4294901760
        %1384 = vmatprep.subr.mxu0 %v1383
        %v1385 = vand.u32 %v504, 4294901760
        %1386 = vmatpush1.msra.mxu0 %v1385
        %v1387 = vand.u32 %v507, 4294901760
        %1388 = vmatprep.subr.mxu0 %v1387
        %v1389 = vand.u32 %v506, 4294901760
        %1390 = vmatpush1.msra.mxu0 %v1389
        %v1391 = vand.u32 %v509, 4294901760
        %1392 = vmatprep.subr.mxu0 %v1391
        %v1393 = vand.u32 %v508, 4294901760
        %1394 = vmatpush1.msra.mxu0 %v1393
        %v1395 = vand.u32 %v511, 4294901760
        %1396 = vmatprep.subr.mxu0 %v1395
        %v1397 = vand.u32 %v510, 4294901760
        %1398 = vmatpush1.msra.mxu0 %v1397
        %v1399 = vand.u32 %v513, 4294901760
        %1400 = vmatprep.subr.mxu0 %v1399
        %v1401 = vand.u32 %v512, 4294901760
        %1402 = vmatpush1.msra.mxu0 %v1401
        %v1403 = vand.u32 %v515, 4294901760
        %1404 = vmatprep.subr.mxu0 %v1403
        %v1405 = vand.u32 %v514, 4294901760
        %1406 = vmatpush1.msra.mxu0 %v1405
        %v1407 = vand.u32 %v517, 4294901760
        %1408 = vmatprep.subr.mxu0 %v1407
        %v1409 = vand.u32 %v516, 4294901760
        %1410 = vmatpush1.msra.mxu0 %v1409
        %v1411 = vand.u32 %v519, 4294901760
        %1412 = vmatprep.subr.mxu0 %v1411
        %v1413 = vand.u32 %v518, 4294901760
        %1414 = vmatpush1.msra.mxu0 %v1413
        %v1415 = vand.u32 %v521, 4294901760
        %1416 = vmatprep.subr.mxu0 %v1415
        %v1417 = vand.u32 %v520, 4294901760
        %1418 = vmatpush1.msra.mxu0 %v1417
        %v1419 = vand.u32 %v523, 4294901760
        %1420 = vmatprep.subr.mxu0 %v1419
        %v1421 = vand.u32 %v522, 4294901760
        %1422 = vmatpush1.msra.mxu0 %v1421
        %v1423 = vand.u32 %v525, 4294901760
        %1424 = vmatprep.subr.mxu0 %v1423
        %v1425 = vand.u32 %v524, 4294901760
        %1426 = vmatpush1.msra.mxu0 %v1425
        %v1427 = vand.u32 %v527, 4294901760
        %1428 = vmatprep.subr.mxu0 %v1427
        %v1429 = vand.u32 %v526, 4294901760
        %1430 = vmatpush1.msra.mxu0 %v1429
        %v1431 = vand.u32 %v529, 4294901760
        %1432 = vmatprep.subr.mxu0 %v1431
        %v1433 = vand.u32 %v528, 4294901760
        %1434 = vmatpush1.msra.mxu0 %v1433
        %v1435 = vand.u32 %v531, 4294901760
        %1436 = vmatprep.subr.mxu0 %v1435
        %v1437 = vand.u32 %v530, 4294901760
        %1438 = vmatpush1.msra.mxu0 %v1437
        %v1439 = vand.u32 %v533, 4294901760
        %1440 = vmatprep.subr.mxu0 %v1439
        %v1441 = vand.u32 %v532, 4294901760
        %1442 = vmatpush1.msra.mxu0 %v1441
        %v1443 = vand.u32 %v535, 4294901760
        %1444 = vmatprep.subr.mxu0 %v1443
        %v1445 = vand.u32 %v534, 4294901760
        %1446 = vmatpush1.msra.mxu0 %v1445
        %v1447 = vand.u32 %v537, 4294901760
        %1448 = vmatprep.subr.mxu0 %v1447
        %v1449 = vand.u32 %v536, 4294901760
        %1450 = vmatpush1.msra.mxu0 %v1449
        %v1451 = vand.u32 %v539, 4294901760
        %1452 = vmatprep.subr.mxu0 %v1451
        %v1453 = vand.u32 %v538, 4294901760
        %1454 = vmatpush1.msra.mxu0 %v1453
        %v1455 = vand.u32 %v541, 4294901760
        %1456 = vmatprep.subr.mxu0 %v1455
        %v1457 = vand.u32 %v540, 4294901760
        %1458 = vmatpush1.msra.mxu0 %v1457
        %v1459 = vand.u32 %v543, 4294901760
        %1460 = vmatprep.subr.mxu0 %v1459
        %v1461 = vand.u32 %v542, 4294901760
        %1462 = vmatpush1.msra.mxu0 %v1461
        %v1463 = vand.u32 %v545, 4294901760
        %1464 = vmatprep.subr.mxu0 %v1463
        %v1465 = vand.u32 %v544, 4294901760
        %1466 = vmatpush1.msra.mxu0 %v1465
        %v1467 = vand.u32 %v547, 4294901760
        %1468 = vmatprep.subr.mxu0 %v1467
        %v1469 = vand.u32 %v546, 4294901760
        %1470 = vmatpush1.msra.mxu0 %v1469
        %v1471 = vand.u32 %v549, 4294901760
        %1472 = vmatprep.subr.mxu0 %v1471
        %v1473 = vand.u32 %v548, 4294901760
        %1474 = vmatpush1.msra.mxu0 %v1473
        %v1475 = vand.u32 %v551, 4294901760
        %1476 = vmatprep.subr.mxu0 %v1475
        %v1477 = vand.u32 %v550, 4294901760
        %1478 = vmatpush1.msra.mxu0 %v1477
        %v1479 = vand.u32 %v553, 4294901760
        %1480 = vmatprep.subr.mxu0 %v1479
        %v1481 = vand.u32 %v552, 4294901760
        %1482 = vmatpush1.msra.mxu0 %v1481
        %v1483 = vand.u32 %v555, 4294901760
        %1484 = vmatprep.subr.mxu0 %v1483
        %v1485 = vand.u32 %v554, 4294901760
        %1486 = vmatpush1.msra.mxu0 %v1485
        %v1487 = vand.u32 %v557, 4294901760
        %1488 = vmatprep.subr.mxu0 %v1487
        %v1489 = vand.u32 %v556, 4294901760
        %1490 = vmatpush1.msra.mxu0 %v1489
        %v1491 = vand.u32 %v485, 4294901760
        %v1492 = vsub.f32 %v485, %v1491
        %v1493 = vand.u32 %v1492, 4294901760
        %1494 = vmatprep.mubr.f32.mxu0 %v1493
        %v1495 = vand.u32 %v481, 4294901760
        %v1496 = vsub.f32 %v481, %v1495
        %v1497 = vand.u32 %v1496, 4294901760
        %1498 = vmatmul.mubr.f32.gmra.mrb[0].mxu0 %v1497
        %v1499 = vpop.f32.mrb[0].mxu0
        %v1500 = vadd.f32 %v1359, %v1499
        %v1501 = vpop.f32.mrb[0].mxu0
        %v1502 = vadd.f32 %v1361, %v1501
        %1503 = vdwg.mxu0
        %v1504 = vand.u32 %v495, 4294901760
        %v1505 = vsub.f32 %v495, %v1504
        %v1506 = vand.u32 %v1505, 4294901760
        %1507 = vmatprep.subr.mxu0 %v1506
        %v1508 = vand.u32 %v494, 4294901760
        %v1509 = vsub.f32 %v494, %v1508
        %v1510 = vand.u32 %v1509, 4294901760
        %1511 = vmatpush1.msra.mxu0 %v1510
        %v1512 = vand.u32 %v497, 4294901760
        %v1513 = vsub.f32 %v497, %v1512
        %v1514 = vand.u32 %v1513, 4294901760
        %1515 = vmatprep.subr.mxu0 %v1514
        %v1516 = vand.u32 %v496, 4294901760
        %v1517 = vsub.f32 %v496, %v1516
        %v1518 = vand.u32 %v1517, 4294901760
        %1519 = vmatpush1.msra.mxu0 %v1518
        %v1520 = vand.u32 %v499, 4294901760
        %v1521 = vsub.f32 %v499, %v1520
        %v1522 = vand.u32 %v1521, 4294901760
        %1523 = vmatprep.subr.mxu0 %v1522
        %v1524 = vand.u32 %v498, 4294901760
        %v1525 = vsub.f32 %v498, %v1524
        %v1526 = vand.u32 %v1525, 4294901760
        %1527 = vmatpush1.msra.mxu0 %v1526
        %v1528 = vand.u32 %v501, 4294901760
        %v1529 = vsub.f32 %v501, %v1528
        %v1530 = vand.u32 %v1529, 4294901760
        %1531 = vmatprep.subr.mxu0 %v1530
        %v1532 = vand.u32 %v500, 4294901760
        %v1533 = vsub.f32 %v500, %v1532
        %v1534 = vand.u32 %v1533, 4294901760
        %1535 = vmatpush1.msra.mxu0 %v1534
        %v1536 = vand.u32 %v503, 4294901760
        %v1537 = vsub.f32 %v503, %v1536
        %v1538 = vand.u32 %v1537, 4294901760
        %1539 = vmatprep.subr.mxu0 %v1538
        %v1540 = vand.u32 %v502, 4294901760
        %v1541 = vsub.f32 %v502, %v1540
        %v1542 = vand.u32 %v1541, 4294901760
        %1543 = vmatpush1.msra.mxu0 %v1542
        %v1544 = vand.u32 %v505, 4294901760
        %v1545 = vsub.f32 %v505, %v1544
        %v1546 = vand.u32 %v1545, 4294901760
        %1547 = vmatprep.subr.mxu0 %v1546
        %v1548 = vand.u32 %v504, 4294901760
        %v1549 = vsub.f32 %v504, %v1548
        %v1550 = vand.u32 %v1549, 4294901760
        %1551 = vmatpush1.msra.mxu0 %v1550
        %v1552 = vand.u32 %v507, 4294901760
        %v1553 = vsub.f32 %v507, %v1552
        %v1554 = vand.u32 %v1553, 4294901760
        %1555 = vmatprep.subr.mxu0 %v1554
        %v1556 = vand.u32 %v506, 4294901760
        %v1557 = vsub.f32 %v506, %v1556
        %v1558 = vand.u32 %v1557, 4294901760
        %1559 = vmatpush1.msra.mxu0 %v1558
        %v1560 = vand.u32 %v509, 4294901760
        %v1561 = vsub.f32 %v509, %v1560
        %v1562 = vand.u32 %v1561, 4294901760
        %1563 = vmatprep.subr.mxu0 %v1562
        %v1564 = vand.u32 %v508, 4294901760
        %v1565 = vsub.f32 %v508, %v1564
        %v1566 = vand.u32 %v1565, 4294901760
        %1567 = vmatpush1.msra.mxu0 %v1566
        %v1568 = vand.u32 %v511, 4294901760
        %v1569 = vsub.f32 %v511, %v1568
        %v1570 = vand.u32 %v1569, 4294901760
        %1571 = vmatprep.subr.mxu0 %v1570
        %v1572 = vand.u32 %v510, 4294901760
        %v1573 = vsub.f32 %v510, %v1572
        %v1574 = vand.u32 %v1573, 4294901760
        %1575 = vmatpush1.msra.mxu0 %v1574
        %v1576 = vand.u32 %v513, 4294901760
        %v1577 = vsub.f32 %v513, %v1576
        %v1578 = vand.u32 %v1577, 4294901760
        %1579 = vmatprep.subr.mxu0 %v1578
        %v1580 = vand.u32 %v512, 4294901760
        %v1581 = vsub.f32 %v512, %v1580
        %v1582 = vand.u32 %v1581, 4294901760
        %1583 = vmatpush1.msra.mxu0 %v1582
        %v1584 = vand.u32 %v515, 4294901760
        %v1585 = vsub.f32 %v515, %v1584
        %v1586 = vand.u32 %v1585, 4294901760
        %1587 = vmatprep.subr.mxu0 %v1586
        %v1588 = vand.u32 %v514, 4294901760
        %v1589 = vsub.f32 %v514, %v1588
        %v1590 = vand.u32 %v1589, 4294901760
        %1591 = vmatpush1.msra.mxu0 %v1590
        %v1592 = vand.u32 %v517, 4294901760
        %v1593 = vsub.f32 %v517, %v1592
        %v1594 = vand.u32 %v1593, 4294901760
        %1595 = vmatprep.subr.mxu0 %v1594
        %v1596 = vand.u32 %v516, 4294901760
        %v1597 = vsub.f32 %v516, %v1596
        %v1598 = vand.u32 %v1597, 4294901760
        %1599 = vmatpush1.msra.mxu0 %v1598
        %v1600 = vand.u32 %v519, 4294901760
        %v1601 = vsub.f32 %v519, %v1600
        %v1602 = vand.u32 %v1601, 4294901760
        %1603 = vmatprep.subr.mxu0 %v1602
        %v1604 = vand.u32 %v518, 4294901760
        %v1605 = vsub.f32 %v518, %v1604
        %v1606 = vand.u32 %v1605, 4294901760
        %1607 = vmatpush1.msra.mxu0 %v1606
        %v1608 = vand.u32 %v521, 4294901760
        %v1609 = vsub.f32 %v521, %v1608
        %v1610 = vand.u32 %v1609, 4294901760
        %1611 = vmatprep.subr.mxu0 %v1610
        %v1612 = vand.u32 %v520, 4294901760
        %v1613 = vsub.f32 %v520, %v1612
        %v1614 = vand.u32 %v1613, 4294901760
        %1615 = vmatpush1.msra.mxu0 %v1614
        %v1616 = vand.u32 %v523, 4294901760
        %v1617 = vsub.f32 %v523, %v1616
        %v1618 = vand.u32 %v1617, 4294901760
        %1619 = vmatprep.subr.mxu0 %v1618
        %v1620 = vand.u32 %v522, 4294901760
        %v1621 = vsub.f32 %v522, %v1620
        %v1622 = vand.u32 %v1621, 4294901760
        %1623 = vmatpush1.msra.mxu0 %v1622
        %v1624 = vand.u32 %v525, 4294901760
        %v1625 = vsub.f32 %v525, %v1624
        %v1626 = vand.u32 %v1625, 4294901760
        %1627 = vmatprep.subr.mxu0 %v1626
        %v1628 = vand.u32 %v524, 4294901760
        %v1629 = vsub.f32 %v524, %v1628
        %v1630 = vand.u32 %v1629, 4294901760
        %1631 = vmatpush1.msra.mxu0 %v1630
        %v1632 = vand.u32 %v527, 4294901760
        %v1633 = vsub.f32 %v527, %v1632
        %v1634 = vand.u32 %v1633, 4294901760
        %1635 = vmatprep.subr.mxu0 %v1634
        %v1636 = vand.u32 %v526, 4294901760
        %v1637 = vsub.f32 %v526, %v1636
        %v1638 = vand.u32 %v1637, 4294901760
        %1639 = vmatpush1.msra.mxu0 %v1638
        %v1640 = vand.u32 %v529, 4294901760
        %v1641 = vsub.f32 %v529, %v1640
        %v1642 = vand.u32 %v1641, 4294901760
        %1643 = vmatprep.subr.mxu0 %v1642
        %v1644 = vand.u32 %v528, 4294901760
        %v1645 = vsub.f32 %v528, %v1644
        %v1646 = vand.u32 %v1645, 4294901760
        %1647 = vmatpush1.msra.mxu0 %v1646
        %v1648 = vand.u32 %v531, 4294901760
        %v1649 = vsub.f32 %v531, %v1648
        %v1650 = vand.u32 %v1649, 4294901760
        %1651 = vmatprep.subr.mxu0 %v1650
        %v1652 = vand.u32 %v530, 4294901760
        %v1653 = vsub.f32 %v530, %v1652
        %v1654 = vand.u32 %v1653, 4294901760
        %1655 = vmatpush1.msra.mxu0 %v1654
        %v1656 = vand.u32 %v533, 4294901760
        %v1657 = vsub.f32 %v533, %v1656
        %v1658 = vand.u32 %v1657, 4294901760
        %1659 = vmatprep.subr.mxu0 %v1658
        %v1660 = vand.u32 %v532, 4294901760
        %v1661 = vsub.f32 %v532, %v1660
        %v1662 = vand.u32 %v1661, 4294901760
        %1663 = vmatpush1.msra.mxu0 %v1662
        %v1664 = vand.u32 %v535, 4294901760
        %v1665 = vsub.f32 %v535, %v1664
        %v1666 = vand.u32 %v1665, 4294901760
        %1667 = vmatprep.subr.mxu0 %v1666
        %v1668 = vand.u32 %v534, 4294901760
        %v1669 = vsub.f32 %v534, %v1668
        %v1670 = vand.u32 %v1669, 4294901760
        %1671 = vmatpush1.msra.mxu0 %v1670
        %v1672 = vand.u32 %v537, 4294901760
        %v1673 = vsub.f32 %v537, %v1672
        %v1674 = vand.u32 %v1673, 4294901760
        %1675 = vmatprep.subr.mxu0 %v1674
        %v1676 = vand.u32 %v536, 4294901760
        %v1677 = vsub.f32 %v536, %v1676
        %v1678 = vand.u32 %v1677, 4294901760
        %1679 = vmatpush1.msra.mxu0 %v1678
        %v1680 = vand.u32 %v539, 4294901760
        %v1681 = vsub.f32 %v539, %v1680
        %v1682 = vand.u32 %v1681, 4294901760
        %1683 = vmatprep.subr.mxu0 %v1682
        %v1684 = vand.u32 %v538, 4294901760
        %v1685 = vsub.f32 %v538, %v1684
        %v1686 = vand.u32 %v1685, 4294901760
        %1687 = vmatpush1.msra.mxu0 %v1686
        %v1688 = vand.u32 %v541, 4294901760
        %v1689 = vsub.f32 %v541, %v1688
        %v1690 = vand.u32 %v1689, 4294901760
        %1691 = vmatprep.subr.mxu0 %v1690
        %v1692 = vand.u32 %v540, 4294901760
        %v1693 = vsub.f32 %v540, %v1692
        %v1694 = vand.u32 %v1693, 4294901760
        %1695 = vmatpush1.msra.mxu0 %v1694
        %v1696 = vand.u32 %v543, 4294901760
        %v1697 = vsub.f32 %v543, %v1696
        %v1698 = vand.u32 %v1697, 4294901760
        %1699 = vmatprep.subr.mxu0 %v1698
        %v1700 = vand.u32 %v542, 4294901760
        %v1701 = vsub.f32 %v542, %v1700
        %v1702 = vand.u32 %v1701, 4294901760
        %1703 = vmatpush1.msra.mxu0 %v1702
        %v1704 = vand.u32 %v545, 4294901760
        %v1705 = vsub.f32 %v545, %v1704
        %v1706 = vand.u32 %v1705, 4294901760
        %1707 = vmatprep.subr.mxu0 %v1706
        %v1708 = vand.u32 %v544, 4294901760
        %v1709 = vsub.f32 %v544, %v1708
        %v1710 = vand.u32 %v1709, 4294901760
        %1711 = vmatpush1.msra.mxu0 %v1710
        %v1712 = vand.u32 %v547, 4294901760
        %v1713 = vsub.f32 %v547, %v1712
        %v1714 = vand.u32 %v1713, 4294901760
        %1715 = vmatprep.subr.mxu0 %v1714
        %v1716 = vand.u32 %v546, 4294901760
        %v1717 = vsub.f32 %v546, %v1716
        %v1718 = vand.u32 %v1717, 4294901760
        %1719 = vmatpush1.msra.mxu0 %v1718
        %v1720 = vand.u32 %v549, 4294901760
        %v1721 = vsub.f32 %v549, %v1720
        %v1722 = vand.u32 %v1721, 4294901760
        %1723 = vmatprep.subr.mxu0 %v1722
        %v1724 = vand.u32 %v548, 4294901760
        %v1725 = vsub.f32 %v548, %v1724
        %v1726 = vand.u32 %v1725, 4294901760
        %1727 = vmatpush1.msra.mxu0 %v1726
        %v1728 = vand.u32 %v551, 4294901760
        %v1729 = vsub.f32 %v551, %v1728
        %v1730 = vand.u32 %v1729, 4294901760
        %1731 = vmatprep.subr.mxu0 %v1730
        %v1732 = vand.u32 %v550, 4294901760
        %v1733 = vsub.f32 %v550, %v1732
        %v1734 = vand.u32 %v1733, 4294901760
        %1735 = vmatpush1.msra.mxu0 %v1734
        %v1736 = vand.u32 %v553, 4294901760
        %v1737 = vsub.f32 %v553, %v1736
        %v1738 = vand.u32 %v1737, 4294901760
        %1739 = vmatprep.subr.mxu0 %v1738
        %v1740 = vand.u32 %v552, 4294901760
        %v1741 = vsub.f32 %v552, %v1740
        %v1742 = vand.u32 %v1741, 4294901760
        %1743 = vmatpush1.msra.mxu0 %v1742
        %v1744 = vand.u32 %v555, 4294901760
        %v1745 = vsub.f32 %v555, %v1744
        %v1746 = vand.u32 %v1745, 4294901760
        %1747 = vmatprep.subr.mxu0 %v1746
        %v1748 = vand.u32 %v554, 4294901760
        %v1749 = vsub.f32 %v554, %v1748
        %v1750 = vand.u32 %v1749, 4294901760
        %1751 = vmatpush1.msra.mxu0 %v1750
        %v1752 = vand.u32 %v557, 4294901760
        %v1753 = vsub.f32 %v557, %v1752
        %v1754 = vand.u32 %v1753, 4294901760
        %1755 = vmatprep.subr.mxu0 %v1754
        %v1756 = vand.u32 %v556, 4294901760
        %v1757 = vsub.f32 %v556, %v1756
        %v1758 = vand.u32 %v1757, 4294901760
        %1759 = vmatpush1.msra.mxu0 %v1758
        %v1760 = vand.u32 %v485, 4294901760
        %1761 = vmatprep.mubr.f32.mxu0 %v1760
        %v1762 = vand.u32 %v481, 4294901760
        %1763 = vmatmul.mubr.f32.gmra.mrb[0].mxu0 %v1762
        %v1764 = vpop.f32.mrb[0].mxu0
        %v1765 = vadd.f32 %v1500, %v1764
        %v1766 = vpop.f32.mrb[0].mxu0
        %v1767 = vadd.f32 %v1502, %v1766
        %1768 = vdwg.mxu0
        %v1769 = vand.u32 %v495, 4294901760
        %1770 = vmatprep.subr.mxu0 %v1769
        %v1771 = vand.u32 %v494, 4294901760
        %1772 = vmatpush1.msra.mxu0 %v1771
        %v1773 = vand.u32 %v497, 4294901760
        %1774 = vmatprep.subr.mxu0 %v1773
        %v1775 = vand.u32 %v496, 4294901760
        %1776 = vmatpush1.msra.mxu0 %v1775
        %v1777 = vand.u32 %v499, 4294901760
        %1778 = vmatprep.subr.mxu0 %v1777
        %v1779 = vand.u32 %v498, 4294901760
        %1780 = vmatpush1.msra.mxu0 %v1779
        %v1781 = vand.u32 %v501, 4294901760
        %1782 = vmatprep.subr.mxu0 %v1781
        %v1783 = vand.u32 %v500, 4294901760
        %1784 = vmatpush1.msra.mxu0 %v1783
        %v1785 = vand.u32 %v503, 4294901760
        %1786 = vmatprep.subr.mxu0 %v1785
        %v1787 = vand.u32 %v502, 4294901760
        %1788 = vmatpush1.msra.mxu0 %v1787
        %v1789 = vand.u32 %v505, 4294901760
        %1790 = vmatprep.subr.mxu0 %v1789
        %v1791 = vand.u32 %v504, 4294901760
        %1792 = vmatpush1.msra.mxu0 %v1791
        %v1793 = vand.u32 %v507, 4294901760
        %1794 = vmatprep.subr.mxu0 %v1793
        %v1795 = vand.u32 %v506, 4294901760
        %1796 = vmatpush1.msra.mxu0 %v1795
        %v1797 = vand.u32 %v509, 4294901760
        %1798 = vmatprep.subr.mxu0 %v1797
        %v1799 = vand.u32 %v508, 4294901760
        %1800 = vmatpush1.msra.mxu0 %v1799
        %v1801 = vand.u32 %v511, 4294901760
        %1802 = vmatprep.subr.mxu0 %v1801
        %v1803 = vand.u32 %v510, 4294901760
        %1804 = vmatpush1.msra.mxu0 %v1803
        %v1805 = vand.u32 %v513, 4294901760
        %1806 = vmatprep.subr.mxu0 %v1805
        %v1807 = vand.u32 %v512, 4294901760
        %1808 = vmatpush1.msra.mxu0 %v1807
        %v1809 = vand.u32 %v515, 4294901760
        %1810 = vmatprep.subr.mxu0 %v1809
        %v1811 = vand.u32 %v514, 4294901760
        %1812 = vmatpush1.msra.mxu0 %v1811
        %v1813 = vand.u32 %v517, 4294901760
        %1814 = vmatprep.subr.mxu0 %v1813
        %v1815 = vand.u32 %v516, 4294901760
        %1816 = vmatpush1.msra.mxu0 %v1815
        %v1817 = vand.u32 %v519, 4294901760
        %1818 = vmatprep.subr.mxu0 %v1817
        %v1819 = vand.u32 %v518, 4294901760
        %1820 = vmatpush1.msra.mxu0 %v1819
        %v1821 = vand.u32 %v521, 4294901760
        %1822 = vmatprep.subr.mxu0 %v1821
        %v1823 = vand.u32 %v520, 4294901760
        %1824 = vmatpush1.msra.mxu0 %v1823
        %v1825 = vand.u32 %v523, 4294901760
        %1826 = vmatprep.subr.mxu0 %v1825
        %v1827 = vand.u32 %v522, 4294901760
        %1828 = vmatpush1.msra.mxu0 %v1827
        %v1829 = vand.u32 %v525, 4294901760
        %1830 = vmatprep.subr.mxu0 %v1829
        %v1831 = vand.u32 %v524, 4294901760
        %1832 = vmatpush1.msra.mxu0 %v1831
        %v1833 = vand.u32 %v527, 4294901760
        %1834 = vmatprep.subr.mxu0 %v1833
        %v1835 = vand.u32 %v526, 4294901760
        %1836 = vmatpush1.msra.mxu0 %v1835
        %v1837 = vand.u32 %v529, 4294901760
        %1838 = vmatprep.subr.mxu0 %v1837
        %v1839 = vand.u32 %v528, 4294901760
        %1840 = vmatpush1.msra.mxu0 %v1839
        %v1841 = vand.u32 %v531, 4294901760
        %1842 = vmatprep.subr.mxu0 %v1841
        %v1843 = vand.u32 %v530, 4294901760
        %1844 = vmatpush1.msra.mxu0 %v1843
        %v1845 = vand.u32 %v533, 4294901760
        %1846 = vmatprep.subr.mxu0 %v1845
        %v1847 = vand.u32 %v532, 4294901760
        %1848 = vmatpush1.msra.mxu0 %v1847
        %v1849 = vand.u32 %v535, 4294901760
        %1850 = vmatprep.subr.mxu0 %v1849
        %v1851 = vand.u32 %v534, 4294901760
        %1852 = vmatpush1.msra.mxu0 %v1851
        %v1853 = vand.u32 %v537, 4294901760
        %1854 = vmatprep.subr.mxu0 %v1853
        %v1855 = vand.u32 %v536, 4294901760
        %1856 = vmatpush1.msra.mxu0 %v1855
        %v1857 = vand.u32 %v539, 4294901760
        %1858 = vmatprep.subr.mxu0 %v1857
        %v1859 = vand.u32 %v538, 4294901760
        %1860 = vmatpush1.msra.mxu0 %v1859
        %v1861 = vand.u32 %v541, 4294901760
        %1862 = vmatprep.subr.mxu0 %v1861
        %v1863 = vand.u32 %v540, 4294901760
        %1864 = vmatpush1.msra.mxu0 %v1863
        %v1865 = vand.u32 %v543, 4294901760
        %1866 = vmatprep.subr.mxu0 %v1865
        %v1867 = vand.u32 %v542, 4294901760
        %1868 = vmatpush1.msra.mxu0 %v1867
        %v1869 = vand.u32 %v545, 4294901760
        %1870 = vmatprep.subr.mxu0 %v1869
        %v1871 = vand.u32 %v544, 4294901760
        %1872 = vmatpush1.msra.mxu0 %v1871
        %v1873 = vand.u32 %v547, 4294901760
        %1874 = vmatprep.subr.mxu0 %v1873
        %v1875 = vand.u32 %v546, 4294901760
        %1876 = vmatpush1.msra.mxu0 %v1875
        %v1877 = vand.u32 %v549, 4294901760
        %1878 = vmatprep.subr.mxu0 %v1877
        %v1879 = vand.u32 %v548, 4294901760
        %1880 = vmatpush1.msra.mxu0 %v1879
        %v1881 = vand.u32 %v551, 4294901760
        %1882 = vmatprep.subr.mxu0 %v1881
        %v1883 = vand.u32 %v550, 4294901760
        %1884 = vmatpush1.msra.mxu0 %v1883
        %v1885 = vand.u32 %v553, 4294901760
        %1886 = vmatprep.subr.mxu0 %v1885
        %v1887 = vand.u32 %v552, 4294901760
        %1888 = vmatpush1.msra.mxu0 %v1887
        %v1889 = vand.u32 %v555, 4294901760
        %1890 = vmatprep.subr.mxu0 %v1889
        %v1891 = vand.u32 %v554, 4294901760
        %1892 = vmatpush1.msra.mxu0 %v1891
        %v1893 = vand.u32 %v557, 4294901760
        %1894 = vmatprep.subr.mxu0 %v1893
        %v1895 = vand.u32 %v556, 4294901760
        %1896 = vmatpush1.msra.mxu0 %v1895
        %v1897 = vand.u32 %v485, 4294901760
        %1898 = vmatprep.mubr.f32.mxu0 %v1897
        %v1899 = vand.u32 %v481, 4294901760
        %1900 = vmatmul.mubr.f32.gmra.mrb[0].mxu0 %v1899
        %v1901 = vpop.f32.mrb[0].mxu0
        %v1902 = vadd.f32 %v1765, %v1901
        %v1903 = vpop.f32.mrb[0].mxu0
        %v1904 = vadd.f32 %v1767, %v1903
        %1905 = vdwg.mxu0
        %v1906 = vand.u32 %v559, 4294901760
        %1907 = vmatprep.subr.mxu0 %v1906
        %v1908 = vand.u32 %v558, 4294901760
        %1909 = vmatpush1.msra.mxu0 %v1908
        %v1910 = vand.u32 %v561, 4294901760
        %1911 = vmatprep.subr.mxu0 %v1910
        %v1912 = vand.u32 %v560, 4294901760
        %1913 = vmatpush1.msra.mxu0 %v1912
        %v1914 = vand.u32 %v563, 4294901760
        %1915 = vmatprep.subr.mxu0 %v1914
        %v1916 = vand.u32 %v562, 4294901760
        %1917 = vmatpush1.msra.mxu0 %v1916
        %v1918 = vand.u32 %v565, 4294901760
        %1919 = vmatprep.subr.mxu0 %v1918
        %v1920 = vand.u32 %v564, 4294901760
        %1921 = vmatpush1.msra.mxu0 %v1920
        %v1922 = vand.u32 %v567, 4294901760
        %1923 = vmatprep.subr.mxu0 %v1922
        %v1924 = vand.u32 %v566, 4294901760
        %1925 = vmatpush1.msra.mxu0 %v1924
        %v1926 = vand.u32 %v569, 4294901760
        %1927 = vmatprep.subr.mxu0 %v1926
        %v1928 = vand.u32 %v568, 4294901760
        %1929 = vmatpush1.msra.mxu0 %v1928
        %v1930 = vand.u32 %v571, 4294901760
        %1931 = vmatprep.subr.mxu0 %v1930
        %v1932 = vand.u32 %v570, 4294901760
        %1933 = vmatpush1.msra.mxu0 %v1932
        %v1934 = vand.u32 %v573, 4294901760
        %1935 = vmatprep.subr.mxu0 %v1934
        %v1936 = vand.u32 %v572, 4294901760
        %1937 = vmatpush1.msra.mxu0 %v1936
        %v1938 = vand.u32 %v575, 4294901760
        %1939 = vmatprep.subr.mxu0 %v1938
        %v1940 = vand.u32 %v574, 4294901760
        %1941 = vmatpush1.msra.mxu0 %v1940
        %v1942 = vand.u32 %v577, 4294901760
        %1943 = vmatprep.subr.mxu0 %v1942
        %v1944 = vand.u32 %v576, 4294901760
        %1945 = vmatpush1.msra.mxu0 %v1944
        %v1946 = vand.u32 %v579, 4294901760
        %1947 = vmatprep.subr.mxu0 %v1946
        %v1948 = vand.u32 %v578, 4294901760
        %1949 = vmatpush1.msra.mxu0 %v1948
        %v1950 = vand.u32 %v581, 4294901760
        %1951 = vmatprep.subr.mxu0 %v1950
        %v1952 = vand.u32 %v580, 4294901760
        %1953 = vmatpush1.msra.mxu0 %v1952
        %v1954 = vand.u32 %v583, 4294901760
        %1955 = vmatprep.subr.mxu0 %v1954
        %v1956 = vand.u32 %v582, 4294901760
        %1957 = vmatpush1.msra.mxu0 %v1956
        %v1958 = vand.u32 %v585, 4294901760
        %1959 = vmatprep.subr.mxu0 %v1958
        %v1960 = vand.u32 %v584, 4294901760
        %1961 = vmatpush1.msra.mxu0 %v1960
        %v1962 = vand.u32 %v587, 4294901760
        %1963 = vmatprep.subr.mxu0 %v1962
        %v1964 = vand.u32 %v586, 4294901760
        %1965 = vmatpush1.msra.mxu0 %v1964
        %v1966 = vand.u32 %v589, 4294901760
        %1967 = vmatprep.subr.mxu0 %v1966
        %v1968 = vand.u32 %v588, 4294901760
        %1969 = vmatpush1.msra.mxu0 %v1968
        %v1970 = vand.u32 %v591, 4294901760
        %1971 = vmatprep.subr.mxu0 %v1970
        %v1972 = vand.u32 %v590, 4294901760
        %1973 = vmatpush1.msra.mxu0 %v1972
        %v1974 = vand.u32 %v593, 4294901760
        %1975 = vmatprep.subr.mxu0 %v1974
        %v1976 = vand.u32 %v592, 4294901760
        %1977 = vmatpush1.msra.mxu0 %v1976
        %v1978 = vand.u32 %v595, 4294901760
        %1979 = vmatprep.subr.mxu0 %v1978
        %v1980 = vand.u32 %v594, 4294901760
        %1981 = vmatpush1.msra.mxu0 %v1980
        %v1982 = vand.u32 %v597, 4294901760
        %1983 = vmatprep.subr.mxu0 %v1982
        %v1984 = vand.u32 %v596, 4294901760
        %1985 = vmatpush1.msra.mxu0 %v1984
        %v1986 = vand.u32 %v599, 4294901760
        %1987 = vmatprep.subr.mxu0 %v1986
        %v1988 = vand.u32 %v598, 4294901760
        %1989 = vmatpush1.msra.mxu0 %v1988
        %v1990 = vand.u32 %v601, 4294901760
        %1991 = vmatprep.subr.mxu0 %v1990
        %v1992 = vand.u32 %v600, 4294901760
        %1993 = vmatpush1.msra.mxu0 %v1992
        %v1994 = vand.u32 %v603, 4294901760
        %1995 = vmatprep.subr.mxu0 %v1994
        %v1996 = vand.u32 %v602, 4294901760
        %1997 = vmatpush1.msra.mxu0 %v1996
        %v1998 = vand.u32 %v605, 4294901760
        %1999 = vmatprep.subr.mxu0 %v1998
        %v2000 = vand.u32 %v604, 4294901760
        %2001 = vmatpush1.msra.mxu0 %v2000
        %v2002 = vand.u32 %v607, 4294901760
        %2003 = vmatprep.subr.mxu0 %v2002
        %v2004 = vand.u32 %v606, 4294901760
        %2005 = vmatpush1.msra.mxu0 %v2004
        %v2006 = vand.u32 %v609, 4294901760
        %2007 = vmatprep.subr.mxu0 %v2006
        %v2008 = vand.u32 %v608, 4294901760
        %2009 = vmatpush1.msra.mxu0 %v2008
        %v2010 = vand.u32 %v611, 4294901760
        %2011 = vmatprep.subr.mxu0 %v2010
        %v2012 = vand.u32 %v610, 4294901760
        %2013 = vmatpush1.msra.mxu0 %v2012
        %v2014 = vand.u32 %v613, 4294901760
        %2015 = vmatprep.subr.mxu0 %v2014
        %v2016 = vand.u32 %v612, 4294901760
        %2017 = vmatpush1.msra.mxu0 %v2016
        %v2018 = vand.u32 %v615, 4294901760
        %2019 = vmatprep.subr.mxu0 %v2018
        %v2020 = vand.u32 %v614, 4294901760
        %2021 = vmatpush1.msra.mxu0 %v2020
        %v2022 = vand.u32 %v617, 4294901760
        %2023 = vmatprep.subr.mxu0 %v2022
        %v2024 = vand.u32 %v616, 4294901760
        %2025 = vmatpush1.msra.mxu0 %v2024
        %v2026 = vand.u32 %v619, 4294901760
        %2027 = vmatprep.subr.mxu0 %v2026
        %v2028 = vand.u32 %v618, 4294901760
        %2029 = vmatpush1.msra.mxu0 %v2028
        %v2030 = vand.u32 %v621, 4294901760
        %2031 = vmatprep.subr.mxu0 %v2030
        %v2032 = vand.u32 %v620, 4294901760
        %2033 = vmatpush1.msra.mxu0 %v2032
        %v2034 = vand.u32 %v493, 4294901760
        %v2035 = vsub.f32 %v493, %v2034
        %v2036 = vand.u32 %v2035, 4294901760
        %v2037 = vsub.f32 %v2035, %v2036
        %v2038 = vand.u32 %v2037, 4294901760
        %2039 = vmatprep.mubr.f32.mxu0 %v2038
        %v2040 = vand.u32 %v489, 4294901760
        %v2041 = vsub.f32 %v489, %v2040
        %v2042 = vand.u32 %v2041, 4294901760
        %v2043 = vsub.f32 %v2041, %v2042
        %v2044 = vand.u32 %v2043, 4294901760
        %2045 = vmatmul.mubr.f32.gmra.mrb[0].mxu0 %v2044
        %v2046 = vpop.f32.mrb[0].mxu0
        %v2047 = vadd.f32 %v1902, %v2046
        %v2048 = vpop.f32.mrb[0].mxu0
        %v2049 = vadd.f32 %v1904, %v2048
        %2050 = vdwg.mxu0
        %v2051 = vand.u32 %v559, 4294901760
        %v2052 = vsub.f32 %v559, %v2051
        %v2053 = vand.u32 %v2052, 4294901760
        %v2054 = vsub.f32 %v2052, %v2053
        %v2055 = vand.u32 %v2054, 4294901760
        %2056 = vmatprep.subr.mxu0 %v2055
        %v2057 = vand.u32 %v558, 4294901760
        %v2058 = vsub.f32 %v558, %v2057
        %v2059 = vand.u32 %v2058, 4294901760
        %v2060 = vsub.f32 %v2058, %v2059
        %v2061 = vand.u32 %v2060, 4294901760
        %2062 = vmatpush1.msra.mxu0 %v2061
        %v2063 = vand.u32 %v561, 4294901760
        %v2064 = vsub.f32 %v561, %v2063
        %v2065 = vand.u32 %v2064, 4294901760
        %v2066 = vsub.f32 %v2064, %v2065
        %v2067 = vand.u32 %v2066, 4294901760
        %2068 = vmatprep.subr.mxu0 %v2067
        %v2069 = vand.u32 %v560, 4294901760
        %v2070 = vsub.f32 %v560, %v2069
        %v2071 = vand.u32 %v2070, 4294901760
        %v2072 = vsub.f32 %v2070, %v2071
        %v2073 = vand.u32 %v2072, 4294901760
        %2074 = vmatpush1.msra.mxu0 %v2073
        %v2075 = vand.u32 %v563, 4294901760
        %v2076 = vsub.f32 %v563, %v2075
        %v2077 = vand.u32 %v2076, 4294901760
        %v2078 = vsub.f32 %v2076, %v2077
        %v2079 = vand.u32 %v2078, 4294901760
        %2080 = vmatprep.subr.mxu0 %v2079
        %v2081 = vand.u32 %v562, 4294901760
        %v2082 = vsub.f32 %v562, %v2081
        %v2083 = vand.u32 %v2082, 4294901760
        %v2084 = vsub.f32 %v2082, %v2083
        %v2085 = vand.u32 %v2084, 4294901760
        %2086 = vmatpush1.msra.mxu0 %v2085
        %v2087 = vand.u32 %v565, 4294901760
        %v2088 = vsub.f32 %v565, %v2087
        %v2089 = vand.u32 %v2088, 4294901760
        %v2090 = vsub.f32 %v2088, %v2089
        %v2091 = vand.u32 %v2090, 4294901760
        %2092 = vmatprep.subr.mxu0 %v2091
        %v2093 = vand.u32 %v564, 4294901760
        %v2094 = vsub.f32 %v564, %v2093
        %v2095 = vand.u32 %v2094, 4294901760
        %v2096 = vsub.f32 %v2094, %v2095
        %v2097 = vand.u32 %v2096, 4294901760
        %2098 = vmatpush1.msra.mxu0 %v2097
        %v2099 = vand.u32 %v567, 4294901760
        %v2100 = vsub.f32 %v567, %v2099
        %v2101 = vand.u32 %v2100, 4294901760
        %v2102 = vsub.f32 %v2100, %v2101
        %v2103 = vand.u32 %v2102, 4294901760
        %2104 = vmatprep.subr.mxu0 %v2103
        %v2105 = vand.u32 %v566, 4294901760
        %v2106 = vsub.f32 %v566, %v2105
        %v2107 = vand.u32 %v2106, 4294901760
        %v2108 = vsub.f32 %v2106, %v2107
        %v2109 = vand.u32 %v2108, 4294901760
        %2110 = vmatpush1.msra.mxu0 %v2109
        %v2111 = vand.u32 %v569, 4294901760
        %v2112 = vsub.f32 %v569, %v2111
        %v2113 = vand.u32 %v2112, 4294901760
        %v2114 = vsub.f32 %v2112, %v2113
        %v2115 = vand.u32 %v2114, 4294901760
        %2116 = vmatprep.subr.mxu0 %v2115
        %v2117 = vand.u32 %v568, 4294901760
        %v2118 = vsub.f32 %v568, %v2117
        %v2119 = vand.u32 %v2118, 4294901760
        %v2120 = vsub.f32 %v2118, %v2119
        %v2121 = vand.u32 %v2120, 4294901760
        %2122 = vmatpush1.msra.mxu0 %v2121
        %v2123 = vand.u32 %v571, 4294901760
        %v2124 = vsub.f32 %v571, %v2123
        %v2125 = vand.u32 %v2124, 4294901760
        %v2126 = vsub.f32 %v2124, %v2125
        %v2127 = vand.u32 %v2126, 4294901760
        %2128 = vmatprep.subr.mxu0 %v2127
        %v2129 = vand.u32 %v570, 4294901760
        %v2130 = vsub.f32 %v570, %v2129
        %v2131 = vand.u32 %v2130, 4294901760
        %v2132 = vsub.f32 %v2130, %v2131
        %v2133 = vand.u32 %v2132, 4294901760
        %2134 = vmatpush1.msra.mxu0 %v2133
        %v2135 = vand.u32 %v573, 4294901760
        %v2136 = vsub.f32 %v573, %v2135
        %v2137 = vand.u32 %v2136, 4294901760
        %v2138 = vsub.f32 %v2136, %v2137
        %v2139 = vand.u32 %v2138, 4294901760
        %2140 = vmatprep.subr.mxu0 %v2139
        %v2141 = vand.u32 %v572, 4294901760
        %v2142 = vsub.f32 %v572, %v2141
        %v2143 = vand.u32 %v2142, 4294901760
        %v2144 = vsub.f32 %v2142, %v2143
        %v2145 = vand.u32 %v2144, 4294901760
        %2146 = vmatpush1.msra.mxu0 %v2145
        %v2147 = vand.u32 %v575, 4294901760
        %v2148 = vsub.f32 %v575, %v2147
        %v2149 = vand.u32 %v2148, 4294901760
        %v2150 = vsub.f32 %v2148, %v2149
        %v2151 = vand.u32 %v2150, 4294901760
        %2152 = vmatprep.subr.mxu0 %v2151
        %v2153 = vand.u32 %v574, 4294901760
        %v2154 = vsub.f32 %v574, %v2153
        %v2155 = vand.u32 %v2154, 4294901760
        %v2156 = vsub.f32 %v2154, %v2155
        %v2157 = vand.u32 %v2156, 4294901760
        %2158 = vmatpush1.msra.mxu0 %v2157
        %v2159 = vand.u32 %v577, 4294901760
        %v2160 = vsub.f32 %v577, %v2159
        %v2161 = vand.u32 %v2160, 4294901760
        %v2162 = vsub.f32 %v2160, %v2161
        %v2163 = vand.u32 %v2162, 4294901760
        %2164 = vmatprep.subr.mxu0 %v2163
        %v2165 = vand.u32 %v576, 4294901760
        %v2166 = vsub.f32 %v576, %v2165
        %v2167 = vand.u32 %v2166, 4294901760
        %v2168 = vsub.f32 %v2166, %v2167
        %v2169 = vand.u32 %v2168, 4294901760
        %2170 = vmatpush1.msra.mxu0 %v2169
        %v2171 = vand.u32 %v579, 4294901760
        %v2172 = vsub.f32 %v579, %v2171
        %v2173 = vand.u32 %v2172, 4294901760
        %v2174 = vsub.f32 %v2172, %v2173
        %v2175 = vand.u32 %v2174, 4294901760
        %2176 = vmatprep.subr.mxu0 %v2175
        %v2177 = vand.u32 %v578, 4294901760
        %v2178 = vsub.f32 %v578, %v2177
        %v2179 = vand.u32 %v2178, 4294901760
        %v2180 = vsub.f32 %v2178, %v2179
        %v2181 = vand.u32 %v2180, 4294901760
        %2182 = vmatpush1.msra.mxu0 %v2181
        %v2183 = vand.u32 %v581, 4294901760
        %v2184 = vsub.f32 %v581, %v2183
        %v2185 = vand.u32 %v2184, 4294901760
        %v2186 = vsub.f32 %v2184, %v2185
        %v2187 = vand.u32 %v2186, 4294901760
        %2188 = vmatprep.subr.mxu0 %v2187
        %v2189 = vand.u32 %v580, 4294901760
        %v2190 = vsub.f32 %v580, %v2189
        %v2191 = vand.u32 %v2190, 4294901760
        %v2192 = vsub.f32 %v2190, %v2191
        %v2193 = vand.u32 %v2192, 4294901760
        %2194 = vmatpush1.msra.mxu0 %v2193
        %v2195 = vand.u32 %v583, 4294901760
        %v2196 = vsub.f32 %v583, %v2195
        %v2197 = vand.u32 %v2196, 4294901760
        %v2198 = vsub.f32 %v2196, %v2197
        %v2199 = vand.u32 %v2198, 4294901760
        %2200 = vmatprep.subr.mxu0 %v2199
        %v2201 = vand.u32 %v582, 4294901760
        %v2202 = vsub.f32 %v582, %v2201
        %v2203 = vand.u32 %v2202, 4294901760
        %v2204 = vsub.f32 %v2202, %v2203
        %v2205 = vand.u32 %v2204, 4294901760
        %2206 = vmatpush1.msra.mxu0 %v2205
        %v2207 = vand.u32 %v585, 4294901760
        %v2208 = vsub.f32 %v585, %v2207
        %v2209 = vand.u32 %v2208, 4294901760
        %v2210 = vsub.f32 %v2208, %v2209
        %v2211 = vand.u32 %v2210, 4294901760
        %2212 = vmatprep.subr.mxu0 %v2211
        %v2213 = vand.u32 %v584, 4294901760
        %v2214 = vsub.f32 %v584, %v2213
        %v2215 = vand.u32 %v2214, 4294901760
        %v2216 = vsub.f32 %v2214, %v2215
        %v2217 = vand.u32 %v2216, 4294901760
        %2218 = vmatpush1.msra.mxu0 %v2217
        %v2219 = vand.u32 %v587, 4294901760
        %v2220 = vsub.f32 %v587, %v2219
        %v2221 = vand.u32 %v2220, 4294901760
        %v2222 = vsub.f32 %v2220, %v2221
        %v2223 = vand.u32 %v2222, 4294901760
        %2224 = vmatprep.subr.mxu0 %v2223
        %v2225 = vand.u32 %v586, 4294901760
        %v2226 = vsub.f32 %v586, %v2225
        %v2227 = vand.u32 %v2226, 4294901760
        %v2228 = vsub.f32 %v2226, %v2227
        %v2229 = vand.u32 %v2228, 4294901760
        %2230 = vmatpush1.msra.mxu0 %v2229
        %v2231 = vand.u32 %v589, 4294901760
        %v2232 = vsub.f32 %v589, %v2231
        %v2233 = vand.u32 %v2232, 4294901760
        %v2234 = vsub.f32 %v2232, %v2233
        %v2235 = vand.u32 %v2234, 4294901760
        %2236 = vmatprep.subr.mxu0 %v2235
        %v2237 = vand.u32 %v588, 4294901760
        %v2238 = vsub.f32 %v588, %v2237
        %v2239 = vand.u32 %v2238, 4294901760
        %v2240 = vsub.f32 %v2238, %v2239
        %v2241 = vand.u32 %v2240, 4294901760
        %2242 = vmatpush1.msra.mxu0 %v2241
        %v2243 = vand.u32 %v591, 4294901760
        %v2244 = vsub.f32 %v591, %v2243
        %v2245 = vand.u32 %v2244, 4294901760
        %v2246 = vsub.f32 %v2244, %v2245
        %v2247 = vand.u32 %v2246, 4294901760
        %2248 = vmatprep.subr.mxu0 %v2247
        %v2249 = vand.u32 %v590, 4294901760
        %v2250 = vsub.f32 %v590, %v2249
        %v2251 = vand.u32 %v2250, 4294901760
        %v2252 = vsub.f32 %v2250, %v2251
        %v2253 = vand.u32 %v2252, 4294901760
        %2254 = vmatpush1.msra.mxu0 %v2253
        %v2255 = vand.u32 %v593, 4294901760
        %v2256 = vsub.f32 %v593, %v2255
        %v2257 = vand.u32 %v2256, 4294901760
        %v2258 = vsub.f32 %v2256, %v2257
        %v2259 = vand.u32 %v2258, 4294901760
        %2260 = vmatprep.subr.mxu0 %v2259
        %v2261 = vand.u32 %v592, 4294901760
        %v2262 = vsub.f32 %v592, %v2261
        %v2263 = vand.u32 %v2262, 4294901760
        %v2264 = vsub.f32 %v2262, %v2263
        %v2265 = vand.u32 %v2264, 4294901760
        %2266 = vmatpush1.msra.mxu0 %v2265
        %v2267 = vand.u32 %v595, 4294901760
        %v2268 = vsub.f32 %v595, %v2267
        %v2269 = vand.u32 %v2268, 4294901760
        %v2270 = vsub.f32 %v2268, %v2269
        %v2271 = vand.u32 %v2270, 4294901760
        %2272 = vmatprep.subr.mxu0 %v2271
        %v2273 = vand.u32 %v594, 4294901760
        %v2274 = vsub.f32 %v594, %v2273
        %v2275 = vand.u32 %v2274, 4294901760
        %v2276 = vsub.f32 %v2274, %v2275
        %v2277 = vand.u32 %v2276, 4294901760
        %2278 = vmatpush1.msra.mxu0 %v2277
        %v2279 = vand.u32 %v597, 4294901760
        %v2280 = vsub.f32 %v597, %v2279
        %v2281 = vand.u32 %v2280, 4294901760
        %v2282 = vsub.f32 %v2280, %v2281
        %v2283 = vand.u32 %v2282, 4294901760
        %2284 = vmatprep.subr.mxu0 %v2283
        %v2285 = vand.u32 %v596, 4294901760
        %v2286 = vsub.f32 %v596, %v2285
        %v2287 = vand.u32 %v2286, 4294901760
        %v2288 = vsub.f32 %v2286, %v2287
        %v2289 = vand.u32 %v2288, 4294901760
        %2290 = vmatpush1.msra.mxu0 %v2289
        %v2291 = vand.u32 %v599, 4294901760
        %v2292 = vsub.f32 %v599, %v2291
        %v2293 = vand.u32 %v2292, 4294901760
        %v2294 = vsub.f32 %v2292, %v2293
        %v2295 = vand.u32 %v2294, 4294901760
        %2296 = vmatprep.subr.mxu0 %v2295
        %v2297 = vand.u32 %v598, 4294901760
        %v2298 = vsub.f32 %v598, %v2297
        %v2299 = vand.u32 %v2298, 4294901760
        %v2300 = vsub.f32 %v2298, %v2299
        %v2301 = vand.u32 %v2300, 4294901760
        %2302 = vmatpush1.msra.mxu0 %v2301
        %v2303 = vand.u32 %v601, 4294901760
        %v2304 = vsub.f32 %v601, %v2303
        %v2305 = vand.u32 %v2304, 4294901760
        %v2306 = vsub.f32 %v2304, %v2305
        %v2307 = vand.u32 %v2306, 4294901760
        %2308 = vmatprep.subr.mxu0 %v2307
        %v2309 = vand.u32 %v600, 4294901760
        %v2310 = vsub.f32 %v600, %v2309
        %v2311 = vand.u32 %v2310, 4294901760
        %v2312 = vsub.f32 %v2310, %v2311
        %v2313 = vand.u32 %v2312, 4294901760
        %2314 = vmatpush1.msra.mxu0 %v2313
        %v2315 = vand.u32 %v603, 4294901760
        %v2316 = vsub.f32 %v603, %v2315
        %v2317 = vand.u32 %v2316, 4294901760
        %v2318 = vsub.f32 %v2316, %v2317
        %v2319 = vand.u32 %v2318, 4294901760
        %2320 = vmatprep.subr.mxu0 %v2319
        %v2321 = vand.u32 %v602, 4294901760
        %v2322 = vsub.f32 %v602, %v2321
        %v2323 = vand.u32 %v2322, 4294901760
        %v2324 = vsub.f32 %v2322, %v2323
        %v2325 = vand.u32 %v2324, 4294901760
        %2326 = vmatpush1.msra.mxu0 %v2325
        %v2327 = vand.u32 %v605, 4294901760
        %v2328 = vsub.f32 %v605, %v2327
        %v2329 = vand.u32 %v2328, 4294901760
        %v2330 = vsub.f32 %v2328, %v2329
        %v2331 = vand.u32 %v2330, 4294901760
        %2332 = vmatprep.subr.mxu0 %v2331
        %v2333 = vand.u32 %v604, 4294901760
        %v2334 = vsub.f32 %v604, %v2333
        %v2335 = vand.u32 %v2334, 4294901760
        %v2336 = vsub.f32 %v2334, %v2335
        %v2337 = vand.u32 %v2336, 4294901760
        %2338 = vmatpush1.msra.mxu0 %v2337
        %v2339 = vand.u32 %v607, 4294901760
        %v2340 = vsub.f32 %v607, %v2339
        %v2341 = vand.u32 %v2340, 4294901760
        %v2342 = vsub.f32 %v2340, %v2341
        %v2343 = vand.u32 %v2342, 4294901760
        %2344 = vmatprep.subr.mxu0 %v2343
        %v2345 = vand.u32 %v606, 4294901760
        %v2346 = vsub.f32 %v606, %v2345
        %v2347 = vand.u32 %v2346, 4294901760
        %v2348 = vsub.f32 %v2346, %v2347
        %v2349 = vand.u32 %v2348, 4294901760
        %2350 = vmatpush1.msra.mxu0 %v2349
        %v2351 = vand.u32 %v609, 4294901760
        %v2352 = vsub.f32 %v609, %v2351
        %v2353 = vand.u32 %v2352, 4294901760
        %v2354 = vsub.f32 %v2352, %v2353
        %v2355 = vand.u32 %v2354, 4294901760
        %2356 = vmatprep.subr.mxu0 %v2355
        %v2357 = vand.u32 %v608, 4294901760
        %v2358 = vsub.f32 %v608, %v2357
        %v2359 = vand.u32 %v2358, 4294901760
        %v2360 = vsub.f32 %v2358, %v2359
        %v2361 = vand.u32 %v2360, 4294901760
        %2362 = vmatpush1.msra.mxu0 %v2361
        %v2363 = vand.u32 %v611, 4294901760
        %v2364 = vsub.f32 %v611, %v2363
        %v2365 = vand.u32 %v2364, 4294901760
        %v2366 = vsub.f32 %v2364, %v2365
        %v2367 = vand.u32 %v2366, 4294901760
        %2368 = vmatprep.subr.mxu0 %v2367
        %v2369 = vand.u32 %v610, 4294901760
        %v2370 = vsub.f32 %v610, %v2369
        %v2371 = vand.u32 %v2370, 4294901760
        %v2372 = vsub.f32 %v2370, %v2371
        %v2373 = vand.u32 %v2372, 4294901760
        %2374 = vmatpush1.msra.mxu0 %v2373
        %v2375 = vand.u32 %v613, 4294901760
        %v2376 = vsub.f32 %v613, %v2375
        %v2377 = vand.u32 %v2376, 4294901760
        %v2378 = vsub.f32 %v2376, %v2377
        %v2379 = vand.u32 %v2378, 4294901760
        %2380 = vmatprep.subr.mxu0 %v2379
        %v2381 = vand.u32 %v612, 4294901760
        %v2382 = vsub.f32 %v612, %v2381
        %v2383 = vand.u32 %v2382, 4294901760
        %v2384 = vsub.f32 %v2382, %v2383
        %v2385 = vand.u32 %v2384, 4294901760
        %2386 = vmatpush1.msra.mxu0 %v2385
        %v2387 = vand.u32 %v615, 4294901760
        %v2388 = vsub.f32 %v615, %v2387
        %v2389 = vand.u32 %v2388, 4294901760
        %v2390 = vsub.f32 %v2388, %v2389
        %v2391 = vand.u32 %v2390, 4294901760
        %2392 = vmatprep.subr.mxu0 %v2391
        %v2393 = vand.u32 %v614, 4294901760
        %v2394 = vsub.f32 %v614, %v2393
        %v2395 = vand.u32 %v2394, 4294901760
        %v2396 = vsub.f32 %v2394, %v2395
        %v2397 = vand.u32 %v2396, 4294901760
        %2398 = vmatpush1.msra.mxu0 %v2397
        %v2399 = vand.u32 %v617, 4294901760
        %v2400 = vsub.f32 %v617, %v2399
        %v2401 = vand.u32 %v2400, 4294901760
        %v2402 = vsub.f32 %v2400, %v2401
        %v2403 = vand.u32 %v2402, 4294901760
        %2404 = vmatprep.subr.mxu0 %v2403
        %v2405 = vand.u32 %v616, 4294901760
        %v2406 = vsub.f32 %v616, %v2405
        %v2407 = vand.u32 %v2406, 4294901760
        %v2408 = vsub.f32 %v2406, %v2407
        %v2409 = vand.u32 %v2408, 4294901760
        %2410 = vmatpush1.msra.mxu0 %v2409
        %v2411 = vand.u32 %v619, 4294901760
        %v2412 = vsub.f32 %v619, %v2411
        %v2413 = vand.u32 %v2412, 4294901760
        %v2414 = vsub.f32 %v2412, %v2413
        %v2415 = vand.u32 %v2414, 4294901760
        %2416 = vmatprep.subr.mxu0 %v2415
        %v2417 = vand.u32 %v618, 4294901760
        %v2418 = vsub.f32 %v618, %v2417
        %v2419 = vand.u32 %v2418, 4294901760
        %v2420 = vsub.f32 %v2418, %v2419
        %v2421 = vand.u32 %v2420, 4294901760
        %2422 = vmatpush1.msra.mxu0 %v2421
        %v2423 = vand.u32 %v621, 4294901760
        %v2424 = vsub.f32 %v621, %v2423
        %v2425 = vand.u32 %v2424, 4294901760
        %v2426 = vsub.f32 %v2424, %v2425
        %v2427 = vand.u32 %v2426, 4294901760
        %2428 = vmatprep.subr.mxu0 %v2427
        %v2429 = vand.u32 %v620, 4294901760
        %v2430 = vsub.f32 %v620, %v2429
        %v2431 = vand.u32 %v2430, 4294901760
        %v2432 = vsub.f32 %v2430, %v2431
        %v2433 = vand.u32 %v2432, 4294901760
        %2434 = vmatpush1.msra.mxu0 %v2433
        %v2435 = vand.u32 %v493, 4294901760
        %2436 = vmatprep.mubr.f32.mxu0 %v2435
        %v2437 = vand.u32 %v489, 4294901760
        %2438 = vmatmul.mubr.f32.gmra.mrb[0].mxu0 %v2437
        %v2439 = vpop.f32.mrb[0].mxu0
        %v2440 = vadd.f32 %v2047, %v2439
        %v2441 = vpop.f32.mrb[0].mxu0
        %v2442 = vadd.f32 %v2049, %v2441
        %2443 = vdwg.mxu0
        %v2444 = vand.u32 %v559, 4294901760
        %v2445 = vsub.f32 %v559, %v2444
        %2446 = vmatprep.subr.mxu0 %v2445
        %v2447 = vand.u32 %v558, 4294901760
        %v2448 = vsub.f32 %v558, %v2447
        %2449 = vmatpush1.msra.mxu0 %v2448
        %v2450 = vand.u32 %v561, 4294901760
        %v2451 = vsub.f32 %v561, %v2450
        %2452 = vmatprep.subr.mxu0 %v2451
        %v2453 = vand.u32 %v560, 4294901760
        %v2454 = vsub.f32 %v560, %v2453
        %2455 = vmatpush1.msra.mxu0 %v2454
        %v2456 = vand.u32 %v563, 4294901760
        %v2457 = vsub.f32 %v563, %v2456
        %2458 = vmatprep.subr.mxu0 %v2457
        %v2459 = vand.u32 %v562, 4294901760
        %v2460 = vsub.f32 %v562, %v2459
        %2461 = vmatpush1.msra.mxu0 %v2460
        %v2462 = vand.u32 %v565, 4294901760
        %v2463 = vsub.f32 %v565, %v2462
        %2464 = vmatprep.subr.mxu0 %v2463
        %v2465 = vand.u32 %v564, 4294901760
        %v2466 = vsub.f32 %v564, %v2465
        %2467 = vmatpush1.msra.mxu0 %v2466
        %v2468 = vand.u32 %v567, 4294901760
        %v2469 = vsub.f32 %v567, %v2468
        %2470 = vmatprep.subr.mxu0 %v2469
        %v2471 = vand.u32 %v566, 4294901760
        %v2472 = vsub.f32 %v566, %v2471
        %2473 = vmatpush1.msra.mxu0 %v2472
        %v2474 = vand.u32 %v569, 4294901760
        %v2475 = vsub.f32 %v569, %v2474
        %2476 = vmatprep.subr.mxu0 %v2475
        %v2477 = vand.u32 %v568, 4294901760
        %v2478 = vsub.f32 %v568, %v2477
        %2479 = vmatpush1.msra.mxu0 %v2478
        %v2480 = vand.u32 %v571, 4294901760
        %v2481 = vsub.f32 %v571, %v2480
        %2482 = vmatprep.subr.mxu0 %v2481
        %v2483 = vand.u32 %v570, 4294901760
        %v2484 = vsub.f32 %v570, %v2483
        %2485 = vmatpush1.msra.mxu0 %v2484
        %v2486 = vand.u32 %v573, 4294901760
        %v2487 = vsub.f32 %v573, %v2486
        %2488 = vmatprep.subr.mxu0 %v2487
        %v2489 = vand.u32 %v572, 4294901760
        %v2490 = vsub.f32 %v572, %v2489
        %2491 = vmatpush1.msra.mxu0 %v2490
        %v2492 = vand.u32 %v575, 4294901760
        %v2493 = vsub.f32 %v575, %v2492
        %2494 = vmatprep.subr.mxu0 %v2493
        %v2495 = vand.u32 %v574, 4294901760
        %v2496 = vsub.f32 %v574, %v2495
        %2497 = vmatpush1.msra.mxu0 %v2496
        %v2498 = vand.u32 %v577, 4294901760
        %v2499 = vsub.f32 %v577, %v2498
        %2500 = vmatprep.subr.mxu0 %v2499
        %v2501 = vand.u32 %v576, 4294901760
        %v2502 = vsub.f32 %v576, %v2501
        %2503 = vmatpush1.msra.mxu0 %v2502
        %v2504 = vand.u32 %v579, 4294901760
        %v2505 = vsub.f32 %v579, %v2504
        %2506 = vmatprep.subr.mxu0 %v2505
        %v2507 = vand.u32 %v578, 4294901760
        %v2508 = vsub.f32 %v578, %v2507
        %2509 = vmatpush1.msra.mxu0 %v2508
        %v2510 = vand.u32 %v581, 4294901760
        %v2511 = vsub.f32 %v581, %v2510
        %2512 = vmatprep.subr.mxu0 %v2511
        %v2513 = vand.u32 %v580, 4294901760
        %v2514 = vsub.f32 %v580, %v2513
        %2515 = vmatpush1.msra.mxu0 %v2514
        %v2516 = vand.u32 %v583, 4294901760
        %v2517 = vsub.f32 %v583, %v2516
        %2518 = vmatprep.subr.mxu0 %v2517
        %v2519 = vand.u32 %v582, 4294901760
        %v2520 = vsub.f32 %v582, %v2519
        %2521 = vmatpush1.msra.mxu0 %v2520
        %v2522 = vand.u32 %v585, 4294901760
        %v2523 = vsub.f32 %v585, %v2522
        %2524 = vmatprep.subr.mxu0 %v2523
        %v2525 = vand.u32 %v584, 4294901760
        %v2526 = vsub.f32 %v584, %v2525
        %2527 = vmatpush1.msra.mxu0 %v2526
        %v2528 = vand.u32 %v587, 4294901760
        %v2529 = vsub.f32 %v587, %v2528
        %2530 = vmatprep.subr.mxu0 %v2529
        %v2531 = vand.u32 %v586, 4294901760
        %v2532 = vsub.f32 %v586, %v2531
        %2533 = vmatpush1.msra.mxu0 %v2532
        %v2534 = vand.u32 %v589, 4294901760
        %v2535 = vsub.f32 %v589, %v2534
        %2536 = vmatprep.subr.mxu0 %v2535
        %v2537 = vand.u32 %v588, 4294901760
        %v2538 = vsub.f32 %v588, %v2537
        %2539 = vmatpush1.msra.mxu0 %v2538
        %v2540 = vand.u32 %v591, 4294901760
        %v2541 = vsub.f32 %v591, %v2540
        %2542 = vmatprep.subr.mxu0 %v2541
        %v2543 = vand.u32 %v590, 4294901760
        %v2544 = vsub.f32 %v590, %v2543
        %2545 = vmatpush1.msra.mxu0 %v2544
        %v2546 = vand.u32 %v593, 4294901760
        %v2547 = vsub.f32 %v593, %v2546
        %2548 = vmatprep.subr.mxu0 %v2547
        %v2549 = vand.u32 %v592, 4294901760
        %v2550 = vsub.f32 %v592, %v2549
        %2551 = vmatpush1.msra.mxu0 %v2550
        %v2552 = vand.u32 %v595, 4294901760
        %v2553 = vsub.f32 %v595, %v2552
        %2554 = vmatprep.subr.mxu0 %v2553
        %v2555 = vand.u32 %v594, 4294901760
        %v2556 = vsub.f32 %v594, %v2555
        %2557 = vmatpush1.msra.mxu0 %v2556
        %v2558 = vand.u32 %v597, 4294901760
        %v2559 = vsub.f32 %v597, %v2558
        %2560 = vmatprep.subr.mxu0 %v2559
        %v2561 = vand.u32 %v596, 4294901760
        %v2562 = vsub.f32 %v596, %v2561
        %2563 = vmatpush1.msra.mxu0 %v2562
        %v2564 = vand.u32 %v599, 4294901760
        %v2565 = vsub.f32 %v599, %v2564
        %2566 = vmatprep.subr.mxu0 %v2565
        %v2567 = vand.u32 %v598, 4294901760
        %v2568 = vsub.f32 %v598, %v2567
        %2569 = vmatpush1.msra.mxu0 %v2568
        %v2570 = vand.u32 %v601, 4294901760
        %v2571 = vsub.f32 %v601, %v2570
        %2572 = vmatprep.subr.mxu0 %v2571
        %v2573 = vand.u32 %v600, 4294901760
        %v2574 = vsub.f32 %v600, %v2573
        %2575 = vmatpush1.msra.mxu0 %v2574
        %v2576 = vand.u32 %v603, 4294901760
        %v2577 = vsub.f32 %v603, %v2576
        %2578 = vmatprep.subr.mxu0 %v2577
        %v2579 = vand.u32 %v602, 4294901760
        %v2580 = vsub.f32 %v602, %v2579
        %2581 = vmatpush1.msra.mxu0 %v2580
        %v2582 = vand.u32 %v605, 4294901760
        %v2583 = vsub.f32 %v605, %v2582
        %2584 = vmatprep.subr.mxu0 %v2583
        %v2585 = vand.u32 %v604, 4294901760
        %v2586 = vsub.f32 %v604, %v2585
        %2587 = vmatpush1.msra.mxu0 %v2586
        %v2588 = vand.u32 %v607, 4294901760
        %v2589 = vsub.f32 %v607, %v2588
        %2590 = vmatprep.subr.mxu0 %v2589
        %v2591 = vand.u32 %v606, 4294901760
        %v2592 = vsub.f32 %v606, %v2591
        %2593 = vmatpush1.msra.mxu0 %v2592
        %v2594 = vand.u32 %v609, 4294901760
        %v2595 = vsub.f32 %v609, %v2594
        %2596 = vmatprep.subr.mxu0 %v2595
        %v2597 = vand.u32 %v608, 4294901760
        %v2598 = vsub.f32 %v608, %v2597
        %2599 = vmatpush1.msra.mxu0 %v2598
        %v2600 = vand.u32 %v611, 4294901760
        %v2601 = vsub.f32 %v611, %v2600
        %2602 = vmatprep.subr.mxu0 %v2601
        %v2603 = vand.u32 %v610, 4294901760
        %v2604 = vsub.f32 %v610, %v2603
        %2605 = vmatpush1.msra.mxu0 %v2604
        %v2606 = vand.u32 %v613, 4294901760
        %v2607 = vsub.f32 %v613, %v2606
        %2608 = vmatprep.subr.mxu0 %v2607
        %v2609 = vand.u32 %v612, 4294901760
        %v2610 = vsub.f32 %v612, %v2609
        %2611 = vmatpush1.msra.mxu0 %v2610
        %v2612 = vand.u32 %v615, 4294901760
        %v2613 = vsub.f32 %v615, %v2612
        %2614 = vmatprep.subr.mxu0 %v2613
        %v2615 = vand.u32 %v614, 4294901760
        %v2616 = vsub.f32 %v614, %v2615
        %2617 = vmatpush1.msra.mxu0 %v2616
        %v2618 = vand.u32 %v617, 4294901760
        %v2619 = vsub.f32 %v617, %v2618
        %2620 = vmatprep.subr.mxu0 %v2619
        %v2621 = vand.u32 %v616, 4294901760
        %v2622 = vsub.f32 %v616, %v2621
        %2623 = vmatpush1.msra.mxu0 %v2622
        %v2624 = vand.u32 %v619, 4294901760
        %v2625 = vsub.f32 %v619, %v2624
        %2626 = vmatprep.subr.mxu0 %v2625
        %v2627 = vand.u32 %v618, 4294901760
        %v2628 = vsub.f32 %v618, %v2627
        %2629 = vmatpush1.msra.mxu0 %v2628
        %v2630 = vand.u32 %v621, 4294901760
        %v2631 = vsub.f32 %v621, %v2630
        %2632 = vmatprep.subr.mxu0 %v2631
        %v2633 = vand.u32 %v620, 4294901760
        %v2634 = vsub.f32 %v620, %v2633
        %2635 = vmatpush1.msra.mxu0 %v2634
        %v2636 = vand.u32 %v493, 4294901760
        %v2637 = vsub.f32 %v493, %v2636
        %2638 = vmatprep.mubr.f32.mxu0 %v2637
        %v2639 = vand.u32 %v489, 4294901760
        %v2640 = vsub.f32 %v489, %v2639
        %2641 = vmatmul.mubr.f32.gmra.mrb[0].mxu0 %v2640
        %v2642 = vpop.f32.mrb[0].mxu0
        %v2643 = vadd.f32 %v2440, %v2642
        %v2644 = vpop.f32.mrb[0].mxu0
        %v2645 = vadd.f32 %v2442, %v2644
        %2646 = vdwg.mxu0
        %v2647 = vand.u32 %v559, 4294901760
        %2648 = vmatprep.subr.mxu0 %v2647
        %v2649 = vand.u32 %v558, 4294901760
        %2650 = vmatpush1.msra.mxu0 %v2649
        %v2651 = vand.u32 %v561, 4294901760
        %2652 = vmatprep.subr.mxu0 %v2651
        %v2653 = vand.u32 %v560, 4294901760
        %2654 = vmatpush1.msra.mxu0 %v2653
        %v2655 = vand.u32 %v563, 4294901760
        %2656 = vmatprep.subr.mxu0 %v2655
        %v2657 = vand.u32 %v562, 4294901760
        %2658 = vmatpush1.msra.mxu0 %v2657
        %v2659 = vand.u32 %v565, 4294901760
        %2660 = vmatprep.subr.mxu0 %v2659
        %v2661 = vand.u32 %v564, 4294901760
        %2662 = vmatpush1.msra.mxu0 %v2661
        %v2663 = vand.u32 %v567, 4294901760
        %2664 = vmatprep.subr.mxu0 %v2663
        %v2665 = vand.u32 %v566, 4294901760
        %2666 = vmatpush1.msra.mxu0 %v2665
        %v2667 = vand.u32 %v569, 4294901760
        %2668 = vmatprep.subr.mxu0 %v2667
        %v2669 = vand.u32 %v568, 4294901760
        %2670 = vmatpush1.msra.mxu0 %v2669
        %v2671 = vand.u32 %v571, 4294901760
        %2672 = vmatprep.subr.mxu0 %v2671
        %v2673 = vand.u32 %v570, 4294901760
        %2674 = vmatpush1.msra.mxu0 %v2673
        %v2675 = vand.u32 %v573, 4294901760
        %2676 = vmatprep.subr.mxu0 %v2675
        %v2677 = vand.u32 %v572, 4294901760
        %2678 = vmatpush1.msra.mxu0 %v2677
        %v2679 = vand.u32 %v575, 4294901760
        %2680 = vmatprep.subr.mxu0 %v2679
        %v2681 = vand.u32 %v574, 4294901760
        %2682 = vmatpush1.msra.mxu0 %v2681
        %v2683 = vand.u32 %v577, 4294901760
        %2684 = vmatprep.subr.mxu0 %v2683
        %v2685 = vand.u32 %v576, 4294901760
        %2686 = vmatpush1.msra.mxu0 %v2685
        %v2687 = vand.u32 %v579, 4294901760
        %2688 = vmatprep.subr.mxu0 %v2687
        %v2689 = vand.u32 %v578, 4294901760
        %2690 = vmatpush1.msra.mxu0 %v2689
        %v2691 = vand.u32 %v581, 4294901760
        %2692 = vmatprep.subr.mxu0 %v2691
        %v2693 = vand.u32 %v580, 4294901760
        %2694 = vmatpush1.msra.mxu0 %v2693
        %v2695 = vand.u32 %v583, 4294901760
        %2696 = vmatprep.subr.mxu0 %v2695
        %v2697 = vand.u32 %v582, 4294901760
        %2698 = vmatpush1.msra.mxu0 %v2697
        %v2699 = vand.u32 %v585, 4294901760
        %2700 = vmatprep.subr.mxu0 %v2699
        %v2701 = vand.u32 %v584, 4294901760
        %2702 = vmatpush1.msra.mxu0 %v2701
        %v2703 = vand.u32 %v587, 4294901760
        %2704 = vmatprep.subr.mxu0 %v2703
        %v2705 = vand.u32 %v586, 4294901760
        %2706 = vmatpush1.msra.mxu0 %v2705
        %v2707 = vand.u32 %v589, 4294901760
        %2708 = vmatprep.subr.mxu0 %v2707
        %v2709 = vand.u32 %v588, 4294901760
        %2710 = vmatpush1.msra.mxu0 %v2709
        %v2711 = vand.u32 %v591, 4294901760
        %2712 = vmatprep.subr.mxu0 %v2711
        %v2713 = vand.u32 %v590, 4294901760
        %2714 = vmatpush1.msra.mxu0 %v2713
        %v2715 = vand.u32 %v593, 4294901760
        %2716 = vmatprep.subr.mxu0 %v2715
        %v2717 = vand.u32 %v592, 4294901760
        %2718 = vmatpush1.msra.mxu0 %v2717
        %v2719 = vand.u32 %v595, 4294901760
        %2720 = vmatprep.subr.mxu0 %v2719
        %v2721 = vand.u32 %v594, 4294901760
        %2722 = vmatpush1.msra.mxu0 %v2721
        %v2723 = vand.u32 %v597, 4294901760
        %2724 = vmatprep.subr.mxu0 %v2723
        %v2725 = vand.u32 %v596, 4294901760
        %2726 = vmatpush1.msra.mxu0 %v2725
        %v2727 = vand.u32 %v599, 4294901760
        %2728 = vmatprep.subr.mxu0 %v2727
        %v2729 = vand.u32 %v598, 4294901760
        %2730 = vmatpush1.msra.mxu0 %v2729
        %v2731 = vand.u32 %v601, 4294901760
        %2732 = vmatprep.subr.mxu0 %v2731
        %v2733 = vand.u32 %v600, 4294901760
        %2734 = vmatpush1.msra.mxu0 %v2733
        %v2735 = vand.u32 %v603, 4294901760
        %2736 = vmatprep.subr.mxu0 %v2735
        %v2737 = vand.u32 %v602, 4294901760
        %2738 = vmatpush1.msra.mxu0 %v2737
        %v2739 = vand.u32 %v605, 4294901760
        %2740 = vmatprep.subr.mxu0 %v2739
        %v2741 = vand.u32 %v604, 4294901760
        %2742 = vmatpush1.msra.mxu0 %v2741
        %v2743 = vand.u32 %v607, 4294901760
        %2744 = vmatprep.subr.mxu0 %v2743
        %v2745 = vand.u32 %v606, 4294901760
        %2746 = vmatpush1.msra.mxu0 %v2745
        %v2747 = vand.u32 %v609, 4294901760
        %2748 = vmatprep.subr.mxu0 %v2747
        %v2749 = vand.u32 %v608, 4294901760
        %2750 = vmatpush1.msra.mxu0 %v2749
        %v2751 = vand.u32 %v611, 4294901760
        %2752 = vmatprep.subr.mxu0 %v2751
        %v2753 = vand.u32 %v610, 4294901760
        %2754 = vmatpush1.msra.mxu0 %v2753
        %v2755 = vand.u32 %v613, 4294901760
        %2756 = vmatprep.subr.mxu0 %v2755
        %v2757 = vand.u32 %v612, 4294901760
        %2758 = vmatpush1.msra.mxu0 %v2757
        %v2759 = vand.u32 %v615, 4294901760
        %2760 = vmatprep.subr.mxu0 %v2759
        %v2761 = vand.u32 %v614, 4294901760
        %2762 = vmatpush1.msra.mxu0 %v2761
        %v2763 = vand.u32 %v617, 4294901760
        %2764 = vmatprep.subr.mxu0 %v2763
        %v2765 = vand.u32 %v616, 4294901760
        %2766 = vmatpush1.msra.mxu0 %v2765
        %v2767 = vand.u32 %v619, 4294901760
        %2768 = vmatprep.subr.mxu0 %v2767
        %v2769 = vand.u32 %v618, 4294901760
        %2770 = vmatpush1.msra.mxu0 %v2769
        %v2771 = vand.u32 %v621, 4294901760
        %2772 = vmatprep.subr.mxu0 %v2771
        %v2773 = vand.u32 %v620, 4294901760
        %2774 = vmatpush1.msra.mxu0 %v2773
        %v2775 = vand.u32 %v493, 4294901760
        %v2776 = vsub.f32 %v493, %v2775
        %v2777 = vand.u32 %v2776, 4294901760
        %2778 = vmatprep.mubr.f32.mxu0 %v2777
        %v2779 = vand.u32 %v489, 4294901760
        %v2780 = vsub.f32 %v489, %v2779
        %v2781 = vand.u32 %v2780, 4294901760
        %2782 = vmatmul.mubr.f32.gmra.mrb[0].mxu0 %v2781
        %v2783 = vpop.f32.mrb[0].mxu0
        %v2784 = vadd.f32 %v2643, %v2783
        %v2785 = vpop.f32.mrb[0].mxu0
        %v2786 = vadd.f32 %v2645, %v2785
        %2787 = vdwg.mxu0
        %v2788 = vand.u32 %v559, 4294901760
        %v2789 = vsub.f32 %v559, %v2788
        %v2790 = vand.u32 %v2789, 4294901760
        %2791 = vmatprep.subr.mxu0 %v2790
        %v2792 = vand.u32 %v558, 4294901760
        %v2793 = vsub.f32 %v558, %v2792
        %v2794 = vand.u32 %v2793, 4294901760
        %2795 = vmatpush1.msra.mxu0 %v2794
        %v2796 = vand.u32 %v561, 4294901760
        %v2797 = vsub.f32 %v561, %v2796
        %v2798 = vand.u32 %v2797, 4294901760
        %2799 = vmatprep.subr.mxu0 %v2798
        %v2800 = vand.u32 %v560, 4294901760
        %v2801 = vsub.f32 %v560, %v2800
        %v2802 = vand.u32 %v2801, 4294901760
        %2803 = vmatpush1.msra.mxu0 %v2802
        %v2804 = vand.u32 %v563, 4294901760
        %v2805 = vsub.f32 %v563, %v2804
        %v2806 = vand.u32 %v2805, 4294901760
        %2807 = vmatprep.subr.mxu0 %v2806
        %v2808 = vand.u32 %v562, 4294901760
        %v2809 = vsub.f32 %v562, %v2808
        %v2810 = vand.u32 %v2809, 4294901760
        %2811 = vmatpush1.msra.mxu0 %v2810
        %v2812 = vand.u32 %v565, 4294901760
        %v2813 = vsub.f32 %v565, %v2812
        %v2814 = vand.u32 %v2813, 4294901760
        %2815 = vmatprep.subr.mxu0 %v2814
        %v2816 = vand.u32 %v564, 4294901760
        %v2817 = vsub.f32 %v564, %v2816
        %v2818 = vand.u32 %v2817, 4294901760
        %2819 = vmatpush1.msra.mxu0 %v2818
        %v2820 = vand.u32 %v567, 4294901760
        %v2821 = vsub.f32 %v567, %v2820
        %v2822 = vand.u32 %v2821, 4294901760
        %2823 = vmatprep.subr.mxu0 %v2822
        %v2824 = vand.u32 %v566, 4294901760
        %v2825 = vsub.f32 %v566, %v2824
        %v2826 = vand.u32 %v2825, 4294901760
        %2827 = vmatpush1.msra.mxu0 %v2826
        %v2828 = vand.u32 %v569, 4294901760
        %v2829 = vsub.f32 %v569, %v2828
        %v2830 = vand.u32 %v2829, 4294901760
        %2831 = vmatprep.subr.mxu0 %v2830
        %v2832 = vand.u32 %v568, 4294901760
        %v2833 = vsub.f32 %v568, %v2832
        %v2834 = vand.u32 %v2833, 4294901760
        %2835 = vmatpush1.msra.mxu0 %v2834
        %v2836 = vand.u32 %v571, 4294901760
        %v2837 = vsub.f32 %v571, %v2836
        %v2838 = vand.u32 %v2837, 4294901760
        %2839 = vmatprep.subr.mxu0 %v2838
        %v2840 = vand.u32 %v570, 4294901760
        %v2841 = vsub.f32 %v570, %v2840
        %v2842 = vand.u32 %v2841, 4294901760
        %2843 = vmatpush1.msra.mxu0 %v2842
        %v2844 = vand.u32 %v573, 4294901760
        %v2845 = vsub.f32 %v573, %v2844
        %v2846 = vand.u32 %v2845, 4294901760
        %2847 = vmatprep.subr.mxu0 %v2846
        %v2848 = vand.u32 %v572, 4294901760
        %v2849 = vsub.f32 %v572, %v2848
        %v2850 = vand.u32 %v2849, 4294901760
        %2851 = vmatpush1.msra.mxu0 %v2850
        %v2852 = vand.u32 %v575, 4294901760
        %v2853 = vsub.f32 %v575, %v2852
        %v2854 = vand.u32 %v2853, 4294901760
        %2855 = vmatprep.subr.mxu0 %v2854
        %v2856 = vand.u32 %v574, 4294901760
        %v2857 = vsub.f32 %v574, %v2856
        %v2858 = vand.u32 %v2857, 4294901760
        %2859 = vmatpush1.msra.mxu0 %v2858
        %v2860 = vand.u32 %v577, 4294901760
        %v2861 = vsub.f32 %v577, %v2860
        %v2862 = vand.u32 %v2861, 4294901760
        %2863 = vmatprep.subr.mxu0 %v2862
        %v2864 = vand.u32 %v576, 4294901760
        %v2865 = vsub.f32 %v576, %v2864
        %v2866 = vand.u32 %v2865, 4294901760
        %2867 = vmatpush1.msra.mxu0 %v2866
        %v2868 = vand.u32 %v579, 4294901760
        %v2869 = vsub.f32 %v579, %v2868
        %v2870 = vand.u32 %v2869, 4294901760
        %2871 = vmatprep.subr.mxu0 %v2870
        %v2872 = vand.u32 %v578, 4294901760
        %v2873 = vsub.f32 %v578, %v2872
        %v2874 = vand.u32 %v2873, 4294901760
        %2875 = vmatpush1.msra.mxu0 %v2874
        %v2876 = vand.u32 %v581, 4294901760
        %v2877 = vsub.f32 %v581, %v2876
        %v2878 = vand.u32 %v2877, 4294901760
        %2879 = vmatprep.subr.mxu0 %v2878
        %v2880 = vand.u32 %v580, 4294901760
        %v2881 = vsub.f32 %v580, %v2880
        %v2882 = vand.u32 %v2881, 4294901760
        %2883 = vmatpush1.msra.mxu0 %v2882
        %v2884 = vand.u32 %v583, 4294901760
        %v2885 = vsub.f32 %v583, %v2884
        %v2886 = vand.u32 %v2885, 4294901760
        %2887 = vmatprep.subr.mxu0 %v2886
        %v2888 = vand.u32 %v582, 4294901760
        %v2889 = vsub.f32 %v582, %v2888
        %v2890 = vand.u32 %v2889, 4294901760
        %2891 = vmatpush1.msra.mxu0 %v2890
        %v2892 = vand.u32 %v585, 4294901760
        %v2893 = vsub.f32 %v585, %v2892
        %v2894 = vand.u32 %v2893, 4294901760
        %2895 = vmatprep.subr.mxu0 %v2894
        %v2896 = vand.u32 %v584, 4294901760
        %v2897 = vsub.f32 %v584, %v2896
        %v2898 = vand.u32 %v2897, 4294901760
        %2899 = vmatpush1.msra.mxu0 %v2898
        %v2900 = vand.u32 %v587, 4294901760
        %v2901 = vsub.f32 %v587, %v2900
        %v2902 = vand.u32 %v2901, 4294901760
        %2903 = vmatprep.subr.mxu0 %v2902
        %v2904 = vand.u32 %v586, 4294901760
        %v2905 = vsub.f32 %v586, %v2904
        %v2906 = vand.u32 %v2905, 4294901760
        %2907 = vmatpush1.msra.mxu0 %v2906
        %v2908 = vand.u32 %v589, 4294901760
        %v2909 = vsub.f32 %v589, %v2908
        %v2910 = vand.u32 %v2909, 4294901760
        %2911 = vmatprep.subr.mxu0 %v2910
        %v2912 = vand.u32 %v588, 4294901760
        %v2913 = vsub.f32 %v588, %v2912
        %v2914 = vand.u32 %v2913, 4294901760
        %2915 = vmatpush1.msra.mxu0 %v2914
        %v2916 = vand.u32 %v591, 4294901760
        %v2917 = vsub.f32 %v591, %v2916
        %v2918 = vand.u32 %v2917, 4294901760
        %2919 = vmatprep.subr.mxu0 %v2918
        %v2920 = vand.u32 %v590, 4294901760
        %v2921 = vsub.f32 %v590, %v2920
        %v2922 = vand.u32 %v2921, 4294901760
        %2923 = vmatpush1.msra.mxu0 %v2922
        %v2924 = vand.u32 %v593, 4294901760
        %v2925 = vsub.f32 %v593, %v2924
        %v2926 = vand.u32 %v2925, 4294901760
        %2927 = vmatprep.subr.mxu0 %v2926
        %v2928 = vand.u32 %v592, 4294901760
        %v2929 = vsub.f32 %v592, %v2928
        %v2930 = vand.u32 %v2929, 4294901760
        %2931 = vmatpush1.msra.mxu0 %v2930
        %v2932 = vand.u32 %v595, 4294901760
        %v2933 = vsub.f32 %v595, %v2932
        %v2934 = vand.u32 %v2933, 4294901760
        %2935 = vmatprep.subr.mxu0 %v2934
        %v2936 = vand.u32 %v594, 4294901760
        %v2937 = vsub.f32 %v594, %v2936
        %v2938 = vand.u32 %v2937, 4294901760
        %2939 = vmatpush1.msra.mxu0 %v2938
        %v2940 = vand.u32 %v597, 4294901760
        %v2941 = vsub.f32 %v597, %v2940
        %v2942 = vand.u32 %v2941, 4294901760
        %2943 = vmatprep.subr.mxu0 %v2942
        %v2944 = vand.u32 %v596, 4294901760
        %v2945 = vsub.f32 %v596, %v2944
        %v2946 = vand.u32 %v2945, 4294901760
        %2947 = vmatpush1.msra.mxu0 %v2946
        %v2948 = vand.u32 %v599, 4294901760
        %v2949 = vsub.f32 %v599, %v2948
        %v2950 = vand.u32 %v2949, 4294901760
        %2951 = vmatprep.subr.mxu0 %v2950
        %v2952 = vand.u32 %v598, 4294901760
        %v2953 = vsub.f32 %v598, %v2952
        %v2954 = vand.u32 %v2953, 4294901760
        %2955 = vmatpush1.msra.mxu0 %v2954
        %v2956 = vand.u32 %v601, 4294901760
        %v2957 = vsub.f32 %v601, %v2956
        %v2958 = vand.u32 %v2957, 4294901760
        %2959 = vmatprep.subr.mxu0 %v2958
        %v2960 = vand.u32 %v600, 4294901760
        %v2961 = vsub.f32 %v600, %v2960
        %v2962 = vand.u32 %v2961, 4294901760
        %2963 = vmatpush1.msra.mxu0 %v2962
        %v2964 = vand.u32 %v603, 4294901760
        %v2965 = vsub.f32 %v603, %v2964
        %v2966 = vand.u32 %v2965, 4294901760
        %2967 = vmatprep.subr.mxu0 %v2966
        %v2968 = vand.u32 %v602, 4294901760
        %v2969 = vsub.f32 %v602, %v2968
        %v2970 = vand.u32 %v2969, 4294901760
        %2971 = vmatpush1.msra.mxu0 %v2970
        %v2972 = vand.u32 %v605, 4294901760
        %v2973 = vsub.f32 %v605, %v2972
        %v2974 = vand.u32 %v2973, 4294901760
        %2975 = vmatprep.subr.mxu0 %v2974
        %v2976 = vand.u32 %v604, 4294901760
        %v2977 = vsub.f32 %v604, %v2976
        %v2978 = vand.u32 %v2977, 4294901760
        %2979 = vmatpush1.msra.mxu0 %v2978
        %v2980 = vand.u32 %v607, 4294901760
        %v2981 = vsub.f32 %v607, %v2980
        %v2982 = vand.u32 %v2981, 4294901760
        %2983 = vmatprep.subr.mxu0 %v2982
        %v2984 = vand.u32 %v606, 4294901760
        %v2985 = vsub.f32 %v606, %v2984
        %v2986 = vand.u32 %v2985, 4294901760
        %2987 = vmatpush1.msra.mxu0 %v2986
        %v2988 = vand.u32 %v609, 4294901760
        %v2989 = vsub.f32 %v609, %v2988
        %v2990 = vand.u32 %v2989, 4294901760
        %2991 = vmatprep.subr.mxu0 %v2990
        %v2992 = vand.u32 %v608, 4294901760
        %v2993 = vsub.f32 %v608, %v2992
        %v2994 = vand.u32 %v2993, 4294901760
        %2995 = vmatpush1.msra.mxu0 %v2994
        %v2996 = vand.u32 %v611, 4294901760
        %v2997 = vsub.f32 %v611, %v2996
        %v2998 = vand.u32 %v2997, 4294901760
        %2999 = vmatprep.subr.mxu0 %v2998
        %v3000 = vand.u32 %v610, 4294901760
        %v3001 = vsub.f32 %v610, %v3000
        %v3002 = vand.u32 %v3001, 4294901760
        %3003 = vmatpush1.msra.mxu0 %v3002
        %v3004 = vand.u32 %v613, 4294901760
        %v3005 = vsub.f32 %v613, %v3004
        %v3006 = vand.u32 %v3005, 4294901760
        %3007 = vmatprep.subr.mxu0 %v3006
        %v3008 = vand.u32 %v612, 4294901760
        %v3009 = vsub.f32 %v612, %v3008
        %v3010 = vand.u32 %v3009, 4294901760
        %3011 = vmatpush1.msra.mxu0 %v3010
        %v3012 = vand.u32 %v615, 4294901760
        %v3013 = vsub.f32 %v615, %v3012
        %v3014 = vand.u32 %v3013, 4294901760
        %3015 = vmatprep.subr.mxu0 %v3014
        %v3016 = vand.u32 %v614, 4294901760
        %v3017 = vsub.f32 %v614, %v3016
        %v3018 = vand.u32 %v3017, 4294901760
        %3019 = vmatpush1.msra.mxu0 %v3018
        %v3020 = vand.u32 %v617, 4294901760
        %v3021 = vsub.f32 %v617, %v3020
        %v3022 = vand.u32 %v3021, 4294901760
        %3023 = vmatprep.subr.mxu0 %v3022
        %v3024 = vand.u32 %v616, 4294901760
        %v3025 = vsub.f32 %v616, %v3024
        %v3026 = vand.u32 %v3025, 4294901760
        %3027 = vmatpush1.msra.mxu0 %v3026
        %v3028 = vand.u32 %v619, 4294901760
        %v3029 = vsub.f32 %v619, %v3028
        %v3030 = vand.u32 %v3029, 4294901760
        %3031 = vmatprep.subr.mxu0 %v3030
        %v3032 = vand.u32 %v618, 4294901760
        %v3033 = vsub.f32 %v618, %v3032
        %v3034 = vand.u32 %v3033, 4294901760
        %3035 = vmatpush1.msra.mxu0 %v3034
        %v3036 = vand.u32 %v621, 4294901760
        %v3037 = vsub.f32 %v621, %v3036
        %v3038 = vand.u32 %v3037, 4294901760
        %3039 = vmatprep.subr.mxu0 %v3038
        %v3040 = vand.u32 %v620, 4294901760
        %v3041 = vsub.f32 %v620, %v3040
        %v3042 = vand.u32 %v3041, 4294901760
        %3043 = vmatpush1.msra.mxu0 %v3042
        %v3044 = vand.u32 %v493, 4294901760
        %3045 = vmatprep.mubr.f32.mxu0 %v3044
        %v3046 = vand.u32 %v489, 4294901760
        %3047 = vmatmul.mubr.f32.gmra.mrb[0].mxu0 %v3046
        %v3048 = vpop.f32.mrb[0].mxu0
        %v3049 = vadd.f32 %v2784, %v3048
        %v3050 = vpop.f32.mrb[0].mxu0
        %v3051 = vadd.f32 %v2786, %v3050
        %3052 = vdwg.mxu0
        %v3053 = vand.u32 %v559, 4294901760
        %3054 = vmatprep.subr.mxu0 %v3053
        %v3055 = vand.u32 %v558, 4294901760
        %3056 = vmatpush1.msra.mxu0 %v3055
        %v3057 = vand.u32 %v561, 4294901760
        %3058 = vmatprep.subr.mxu0 %v3057
        %v3059 = vand.u32 %v560, 4294901760
        %3060 = vmatpush1.msra.mxu0 %v3059
        %v3061 = vand.u32 %v563, 4294901760
        %3062 = vmatprep.subr.mxu0 %v3061
        %v3063 = vand.u32 %v562, 4294901760
        %3064 = vmatpush1.msra.mxu0 %v3063
        %v3065 = vand.u32 %v565, 4294901760
        %3066 = vmatprep.subr.mxu0 %v3065
        %v3067 = vand.u32 %v564, 4294901760
        %3068 = vmatpush1.msra.mxu0 %v3067
        %v3069 = vand.u32 %v567, 4294901760
        %3070 = vmatprep.subr.mxu0 %v3069
        %v3071 = vand.u32 %v566, 4294901760
        %3072 = vmatpush1.msra.mxu0 %v3071
        %v3073 = vand.u32 %v569, 4294901760
        %3074 = vmatprep.subr.mxu0 %v3073
        %v3075 = vand.u32 %v568, 4294901760
        %3076 = vmatpush1.msra.mxu0 %v3075
        %v3077 = vand.u32 %v571, 4294901760
        %3078 = vmatprep.subr.mxu0 %v3077
        %v3079 = vand.u32 %v570, 4294901760
        %3080 = vmatpush1.msra.mxu0 %v3079
        %v3081 = vand.u32 %v573, 4294901760
        %3082 = vmatprep.subr.mxu0 %v3081
        %v3083 = vand.u32 %v572, 4294901760
        %3084 = vmatpush1.msra.mxu0 %v3083
        %v3085 = vand.u32 %v575, 4294901760
        %3086 = vmatprep.subr.mxu0 %v3085
        %v3087 = vand.u32 %v574, 4294901760
        %3088 = vmatpush1.msra.mxu0 %v3087
        %v3089 = vand.u32 %v577, 4294901760
        %3090 = vmatprep.subr.mxu0 %v3089
        %v3091 = vand.u32 %v576, 4294901760
        %3092 = vmatpush1.msra.mxu0 %v3091
        %v3093 = vand.u32 %v579, 4294901760
        %3094 = vmatprep.subr.mxu0 %v3093
        %v3095 = vand.u32 %v578, 4294901760
        %3096 = vmatpush1.msra.mxu0 %v3095
        %v3097 = vand.u32 %v581, 4294901760
        %3098 = vmatprep.subr.mxu0 %v3097
        %v3099 = vand.u32 %v580, 4294901760
        %3100 = vmatpush1.msra.mxu0 %v3099
        %v3101 = vand.u32 %v583, 4294901760
        %3102 = vmatprep.subr.mxu0 %v3101
        %v3103 = vand.u32 %v582, 4294901760
        %3104 = vmatpush1.msra.mxu0 %v3103
        %v3105 = vand.u32 %v585, 4294901760
        %3106 = vmatprep.subr.mxu0 %v3105
        %v3107 = vand.u32 %v584, 4294901760
        %3108 = vmatpush1.msra.mxu0 %v3107
        %v3109 = vand.u32 %v587, 4294901760
        %3110 = vmatprep.subr.mxu0 %v3109
        %v3111 = vand.u32 %v586, 4294901760
        %3112 = vmatpush1.msra.mxu0 %v3111
        %v3113 = vand.u32 %v589, 4294901760
        %3114 = vmatprep.subr.mxu0 %v3113
        %v3115 = vand.u32 %v588, 4294901760
        %3116 = vmatpush1.msra.mxu0 %v3115
        %v3117 = vand.u32 %v591, 4294901760
        %3118 = vmatprep.subr.mxu0 %v3117
        %v3119 = vand.u32 %v590, 4294901760
        %3120 = vmatpush1.msra.mxu0 %v3119
        %v3121 = vand.u32 %v593, 4294901760
        %3122 = vmatprep.subr.mxu0 %v3121
        %v3123 = vand.u32 %v592, 4294901760
        %3124 = vmatpush1.msra.mxu0 %v3123
        %v3125 = vand.u32 %v595, 4294901760
        %3126 = vmatprep.subr.mxu0 %v3125
        %v3127 = vand.u32 %v594, 4294901760
        %3128 = vmatpush1.msra.mxu0 %v3127
        %v3129 = vand.u32 %v597, 4294901760
        %3130 = vmatprep.subr.mxu0 %v3129
        %v3131 = vand.u32 %v596, 4294901760
        %3132 = vmatpush1.msra.mxu0 %v3131
        %v3133 = vand.u32 %v599, 4294901760
        %3134 = vmatprep.subr.mxu0 %v3133
        %v3135 = vand.u32 %v598, 4294901760
        %3136 = vmatpush1.msra.mxu0 %v3135
        %v3137 = vand.u32 %v601, 4294901760
        %3138 = vmatprep.subr.mxu0 %v3137
        %v3139 = vand.u32 %v600, 4294901760
        %3140 = vmatpush1.msra.mxu0 %v3139
        %v3141 = vand.u32 %v603, 4294901760
        %3142 = vmatprep.subr.mxu0 %v3141
        %v3143 = vand.u32 %v602, 4294901760
        %3144 = vmatpush1.msra.mxu0 %v3143
        %v3145 = vand.u32 %v605, 4294901760
        %3146 = vmatprep.subr.mxu0 %v3145
        %v3147 = vand.u32 %v604, 4294901760
        %3148 = vmatpush1.msra.mxu0 %v3147
        %v3149 = vand.u32 %v607, 4294901760
        %3150 = vmatprep.subr.mxu0 %v3149
        %v3151 = vand.u32 %v606, 4294901760
        %3152 = vmatpush1.msra.mxu0 %v3151
        %v3153 = vand.u32 %v609, 4294901760
        %3154 = vmatprep.subr.mxu0 %v3153
        %v3155 = vand.u32 %v608, 4294901760
        %3156 = vmatpush1.msra.mxu0 %v3155
        %v3157 = vand.u32 %v611, 4294901760
        %3158 = vmatprep.subr.mxu0 %v3157
        %v3159 = vand.u32 %v610, 4294901760
        %3160 = vmatpush1.msra.mxu0 %v3159
        %v3161 = vand.u32 %v613, 4294901760
        %3162 = vmatprep.subr.mxu0 %v3161
        %v3163 = vand.u32 %v612, 4294901760
        %3164 = vmatpush1.msra.mxu0 %v3163
        %v3165 = vand.u32 %v615, 4294901760
        %3166 = vmatprep.subr.mxu0 %v3165
        %v3167 = vand.u32 %v614, 4294901760
        %3168 = vmatpush1.msra.mxu0 %v3167
        %v3169 = vand.u32 %v617, 4294901760
        %3170 = vmatprep.subr.mxu0 %v3169
        %v3171 = vand.u32 %v616, 4294901760
        %3172 = vmatpush1.msra.mxu0 %v3171
        %v3173 = vand.u32 %v619, 4294901760
        %3174 = vmatprep.subr.mxu0 %v3173
        %v3175 = vand.u32 %v618, 4294901760
        %3176 = vmatpush1.msra.mxu0 %v3175
        %v3177 = vand.u32 %v621, 4294901760
        %3178 = vmatprep.subr.mxu0 %v3177
        %v3179 = vand.u32 %v620, 4294901760
        %3180 = vmatpush1.msra.mxu0 %v3179
        %v3181 = vand.u32 %v493, 4294901760
        %3182 = vmatprep.mubr.f32.mxu0 %v3181
        %v3183 = vand.u32 %v489, 4294901760
        %3184 = vmatmul.mubr.f32.gmra.mrb[0].mxu0 %v3183
        %v3185 = vpop.f32.mrb[0].mxu0
        %v3186 = vadd.f32 %v3049, %v3185
        %v3187 = vpop.f32.mrb[0].mxu0
        %v3188 = vadd.f32 %v3051, %v3187
        %3189 = vdwg.mxu0
        %v3190 = vxor.u32 %v3186, 2147483648
        %v3191 = vxor.u32 %v3188, 2147483648
        %v3192 = vmul.f32 %v3190, 1.442695
        %v3193 = vpow.pop %v3192
        %v3194 = vmul.f32 %v3191, 1.442695
        %v3195 = vpow.pop %v3194
        %v3196 = vadd.f32 %v3193, 1.0
        %v3197 = vadd.f32 %v3195, 1.0
        %v3198 = vrcp.pop %v3196
        %v3199 = vmul.f32 1.0, %v3198
        %v3200 = vrcp.pop %v3197
        %v3201 = vmul.f32 1.0, %v3200
        %v3202 = vlaneseq
        %v3203 = vshrl.u32 %v3202, 7
        %v3204 = vsub.s32 0, %v3203
        %v3205 = vrot.slane %v3199, %v3204
        %v3206 = vlaneseq
        %v3207 = vshrl.u32 %v3206, 7
        %v3208 = vsub.s32 0, %v3207
        %v3209 = vrot.slane %v3201, %v3208
        %v3210 = vmul.f32 %v3205, %v433
        %v3211 = vmul.f32 %v3209, %v434
        %v3212 = vmul.f32 %v3205, %v435
        %v3213 = vmul.f32 %v3209, %v436
        %v3214 = vmul.f32 %v3205, %v437
        %v3215 = vmul.f32 %v3209, %v438
        %v3216 = vadd.f32 %v268, %v3210
        %v3217 = vadd.f32 %v269, %v3211
        %v3218 = vadd.f32 %v270, %v3212
        %v3219 = vadd.f32 %v271, %v3213
        %v3220 = vadd.f32 %v272, %v3214
        %v3221 = vadd.f32 %v273, %v3215
        %3222 = vst [vmem:[%s267] sm:$0xff] %v3216
        %3223 = vst [vmem:[%s267 + $0x8] sm:$0xff] %v3217
        %3224 = vst [vmem:[%s267 + $0x10] sm:$0xff] %v3218
        %3225 = vst [vmem:[%s267 + $0x18] sm:$0xff] %v3219
        %3226 = vst [vmem:[%s267 + $0x20] sm:$0x1] %v3220
        %3227 = vst [vmem:[%s267 + $0x28] sm:$0x1] %v3221
        %p3228 = scmp.lt.s32.totalorder %s19, 1
        %s3229 = scalar_select %p3228, %s19, 1
        %s3230 = smul.addr %s3229, 6
        %s3231 = smul.addr %s3230, 8
        %s3232 = scalar_lea.vmem %s6, %s3231
        // Predicated region
        $region49: #{cbam_pallas.1} parent=43 // pred_check
          %p3233 = pneg %p168
        $region50: #{cbam_pallas.1} parent=43 // pred_check_branch
          %3235 = sbr.rel (%p3233) target = $region52
        $region51: #{cbam_pallas.1} parent=43 // pred_region
          _
        $region52: #{cbam_pallas.1} parent=43 // pred_fallthru
          _
      $region44: #{cbam_pallas.1} parent=5 // pred_fallthru
        _
      %p3236 = scmp.le.s32.totalorder 2, %s14
      // Predicated region
      $region53: #{cbam_pallas.1} parent=5 // pred_check
        %p3237 = pneg %p3236
      $region54: #{cbam_pallas.1} parent=5 // pred_check_branch
        %3239 = sbr.rel (%p3237) target = $region56
      $region55: #{cbam_pallas.1} parent=5 // pred_region
        %s3240 = ssub.s32 %s14, 2
        // Predicated region
        $region57: #{cbam_pallas.1} parent=55 // pred_check
          %p3241 = pneg %p174
        $region58: #{cbam_pallas.1} parent=55 // pred_check_branch
          %3243 = sbr.rel (%p3241) target = $region60
        $region59: #{cbam_pallas.1} parent=55 // pred_region
          %p3244 = scmp.lt.s32.totalorder %s20, 1
          %s3245 = scalar_select %p3244, %s20, 1
          %s3246 = smul.addr %s3245, 6
          %s3247 = smul.addr %s3246, 8
          %s3248 = scalar_lea.vmem %s6, %s3247
        $region60: #{cbam_pallas.1} parent=55 // pred_fallthru
          _
      $region56: #{cbam_pallas.1} parent=5 // pred_fallthru
        _
    $region6: #{cbam_pallas.1} parent=1 // loop_footer
      %s18 = sadd.s32 1, %s14
    $region7: #{cbam_pallas.1} parent=1 // loop_footer_branch
      %13 = sbr.rel target = $region3
    $region8: #{cbam_pallas.1} parent=1 // loop_exit
      _
    %3249 = vsyncpa [#allocation4], 1
    %s3250 = scalar_lea.sflag [#allocation4], 1
    %3251 = vsyncpa %s3250, 1

</llo_original>
